<compile_context>
chip_gen: v7x
topology: tpu7x:2x2x1
jax: 0.10.0
libtpu: 0.0.40
codegen_flags: <defaults>
</compile_context>

<pallas_src>
import functools

import jax
import jax.numpy as jnp
from jax.experimental import pallas as pl
from jax.experimental.pallas import tpu as pltpu


def _round_up(x, m):
    return ((x + m - 1) // m) * m


# ----------------------------------------------------------------------------
# Pallas kernel 1: fused (A @ B) + bias -> activation, tiled over rows (M).
# Used for the encoder convolutions (JAX-side im2col feeds it).
# ----------------------------------------------------------------------------
def _mm_bias_act_kernel(a_ref, b_ref, bias_ref, o_ref, *, act):
    acc = jnp.dot(a_ref[...], b_ref[...], preferred_element_type=jnp.float32)
    acc = acc + bias_ref[...]                 # (1, N) broadcasts over rows
    if act == "relu":
        acc = jnp.maximum(acc, 0.0)
    elif act == "sigmoid":
        acc = jax.nn.sigmoid(acc)             # exp hits the EUP; cheap epilogue
    o_ref[...] = acc.astype(o_ref.dtype)


def _pick_tile_m(M, cap=4096):
    """Row tile: divisor of round_up(M, 8), >=2 grid steps when M allows it."""
    Mp8 = _round_up(max(M, 1), 8)
    if Mp8 < 16:
        return Mp8, Mp8
    hi = min(cap, max(8, (Mp8 // 2) // 8 * 8))   # >=2 steps for v7x's 2 TCs
    tm = 8
    t = hi
    while t >= 8:
        if Mp8 % t == 0:
            tm = t
            break
        t -= 8
    if Mp8 // tm > 256 and tm < hi:
        tm = hi            # pathological divisor: accept one pad copy instead
    return tm, _round_up(Mp8, tm)


def matmul_bias_act(a, b, bias, act, out_dtype=jnp.bfloat16, tile_m=4096):
    """act(a @ b + bias).  a: (M, K) bf16, b: (K, N) bf16, bias: (1, N) f32."""
    M, K = a.shape
    K2, N = b.shape
    assert K == K2
    tm, Mp = _pick_tile_m(M, tile_m)
    if Mp != M:
        # Rare (M not a multiple of 8, or a divisor-poor M); costs one copy.
        a = jnp.pad(a, ((0, Mp - M), (0, 0)))

    cost = pl.CostEstimate(
        flops=2 * Mp * K * N,
        transcendentals=Mp * N if act == "sigmoid" else 0,
        bytes_accessed=(a.size * a.dtype.itemsize
                        + b.size * b.dtype.itemsize
                        + bias.size * 4
                        + Mp * N * jnp.dtype(out_dtype).itemsize),
    )
    out = pl.pallas_call(
        functools.partial(_mm_bias_act_kernel, act=act),
        out_shape=jax.ShapeDtypeStruct((Mp, N), out_dtype),
        grid=(Mp // tm,),
        in_specs=[
            pl.BlockSpec((tm, K), lambda i: (i, 0)),
            pl.BlockSpec((K, N), lambda i: (0, 0)),
            pl.BlockSpec((1, N), lambda i: (0, 0)),
        ],
        out_specs=pl.BlockSpec((tm, N), lambda i: (i, 0)),
        compiler_params=pltpu.CompilerParams(
            dimension_semantics=("parallel",)),
        cost_estimate=cost,
    )(a, b, bias)
    return out[:M] if Mp != M else out


# ----------------------------------------------------------------------------
# Pallas kernel 2: ConvTranspose2d(k=3, s=2, p=1, op=1) via the 4-phase
# sub-pixel decomposition with IN-KERNEL tap extraction.
#   Inputs : row tile of the (bottom/right) halo-padded NHWC activation plus a
#            one-row halo block; sub-pixel weight matrix (4*Cin, 4*Cout).
#   Output : (tr, W, 4*Cout) parity-plane block; interleaved to 2x spatial in
#            JAX once per layer.
# ----------------------------------------------------------------------------
def _convt_kernel(x_ref, h_ref, w_ref, b_ref, o_ref, *, tr, wd, cin, act):
    body = x_ref[0]                                   # (tr,   wd+1, cin)
    halo = h_ref[0]                                   # (1,    wd+1, cin)
    xa = jnp.concatenate([body, halo], axis=0)        # (tr+1, wd+1, cin)
    nout = o_ref.shape[-1]
    acc = None
    for t, (dp, dq) in enumerate(((0, 0), (0, 1), (1, 0), (1, 1))):
        tap = xa[dp:dp + tr, dq:dq + wd, :].reshape(tr * wd, cin)
        d = jnp.dot(tap, w_ref[t * cin:(t + 1) * cin, :],
                    preferred_element_type=jnp.float32)
        acc = d if acc is None else acc + d
    acc = acc + b_ref[...]                            # (1, N) broadcast
    if act == "relu":
        acc = jnp.maximum(acc, 0.0)
    elif act == "sigmoid":
        acc = jax.nn.sigmoid(acc)
    o_ref[0] = acc.astype(o_ref.dtype).reshape(tr, wd, nout)


def _pick_tile_rows(B, Hd, Wd, C, nout, budget=8 << 20):
    """Largest row tile dividing Hd whose per-step working set fits `budget`
    (keeps double-buffered VMEM well under the 16/32 MiB scoped defaults on
    v5e/v6e/v7x).  With B == 1 we also keep >=2 grid steps for v7x."""
    best = 1
    for tr in range(1, Hd + 1):
        if Hd % tr:
            continue
        if B == 1 and Hd > 1 and tr == Hd:
            continue
        step = (2 * (tr + 1) * (Wd + 1) * C * 2     # double-buffered input tile
                + 2 * tr * Wd * nout * 2            # double-buffered output tile
                + tr * Wd * (nout * 4 + C * 2))     # f32 accumulator + tap temp
        if step <= budget:
            best = tr
    return best


def convtranspose2d_s2_nhwc(x, wm, bias, cout, act, out_dtype):
    """ConvTranspose2d(k=3, stride=2, padding=1, output_padding=1).
    x: (B,H,W,Cin) -> (B,2H,2W,cout); wm: (4*Cin, 4*cout)."""
    B, H, W, C = x.shape
    N = 4 * cout
    x = x.astype(jnp.bfloat16)
    xp = jnp.pad(x, ((0, 0), (0, 1), (0, 1), (0, 0)))   # 1-px bottom/right halo
    tr = _pick_tile_rows(B, H, W, C, N)
    nrb = H // tr
    hrows = xp[:, tr::tr, :, :]                          # (B, nrb, W+1, C)

    cost = pl.CostEstimate(
        flops=2 * B * H * W * (4 * C) * N,
        transcendentals=B * H * W * N if act == "sigmoid" else 0,
        bytes_accessed=((xp.size + hrows.size + wm.size) * 2 + bias.size * 4
                        + B * H * W * N * jnp.dtype(out_dtype).itemsize),
    )
    y = pl.pallas_call(
        functools.partial(_convt_kernel, tr=tr, wd=W, cin=C, act=act),
        out_shape=jax.ShapeDtypeStruct((B, H, W, N), out_dtype),
        grid=(B, nrb),
        in_specs=[
            pl.BlockSpec((1, tr, W + 1, C), lambda b, r: (b, r, 0, 0)),
            pl.BlockSpec((1, 1, W + 1, C), lambda b, r: (b, r, 0, 0)),
            pl.BlockSpec((4 * C, N), lambda b, r: (0, 0)),
            pl.BlockSpec((1, N), lambda b, r: (0, 0)),
        ],
        out_specs=pl.BlockSpec((1, tr, W, N), lambda b, r: (b, r, 0, 0)),
        compiler_params=pltpu.CompilerParams(
            dimension_semantics=("parallel", "parallel")),
        cost_estimate=cost,
    )(xp, hrows, wm, bias)

    # Single parity interleave per layer: (B,H,W,2,2,cout) -> (B,2H,2W,cout).
    y = y.reshape(B, H, W, 2, 2, cout).transpose(0, 1, 3, 2, 4, 5)
    return y.reshape(B, 2 * H, 2 * W, cout)


# ----------------------------------------------------------------------------
# Encoder layer wrapper (NHWC).  Patch extraction is thin JAX glue; the
# matmul+bias+act hot path runs in the Pallas kernel above.
# ----------------------------------------------------------------------------
def conv2d_s2_nhwc(x, wm, bias, cout, act, out_dtype):
    """Conv2d(k=3, stride=2, padding=1). x: (B,H,W,Cin), wm: (9*Cin, cout)."""
    B, H, W, C = x.shape
    Ho, Wo = (H + 1) // 2, (W + 1) // 2
    x = x.astype(jnp.bfloat16)
    xp = jnp.pad(x, ((0, 0), (1, 1), (1, 1), (0, 0)))
    # TODO(synk): pull the 9-tap im2col in-kernel (parity-plane inputs + halo
    # row blocks) to drop the remaining ~2.25x HBM expansion on these layers.
    taps = [xp[:, kh:kh + 2 * Ho:2, kw:kw + 2 * Wo:2, :]
            for kh in range(3) for kw in range(3)]
    cols = jnp.concatenate(taps, axis=-1).reshape(B * Ho * Wo, 9 * C)
    y = matmul_bias_act(cols, wm, bias, act, out_dtype)
    return y.reshape(B, Ho, Wo, cout)


def bilinear_resize_nhwc(x, out_h, out_w):
    """F.interpolate(mode='bilinear', align_corners=False) on NHWC."""
    B, H, W, C = x.shape
    if (H, W) == (out_h, out_w):
        return x  # decoder already restores the input resolution -> identity
    # TODO(synk): resize kept in plain JAX (gather + lerp); only reached for
    # input sizes that are not multiples of 8.
    x = x.astype(jnp.float32)

    def idx_weights(out_size, in_size):
        dst = jnp.arange(out_size, dtype=jnp.float32)
        src = (dst + 0.5) * (in_size / out_size) - 0.5
        src = jnp.clip(src, 0.0, in_size - 1)
        lo = jnp.floor(src).astype(jnp.int32)
        hi = jnp.minimum(lo + 1, in_size - 1)
        frac = src - lo.astype(jnp.float32)
        return lo, hi, frac

    hlo, hhi, hw = idx_weights(out_h, H)
    wlo, whi, ww = idx_weights(out_w, W)
    top = (x[:, hlo, :, :] * (1.0 - hw)[None, :, None, None]
           + x[:, hhi, :, :] * hw[None, :, None, None])
    out = (top[:, :, wlo, :] * (1.0 - ww)[None, None, :, None]
           + top[:, :, whi, :] * ww[None, None, :, None])
    return out


# ----------------------------------------------------------------------------
# Parameters: raw PyTorch-layout init + one-time matmul-ready preparation
# ----------------------------------------------------------------------------
def init_params(key, in_channels=3, hidden_dims=(16, 32, 64)):
    params = {}
    keys = jax.random.split(key, 12)
    enc_dims = [in_channels] + list(hidden_dims)
    for i in range(3):
        cin, cout = enc_dims[i], enc_dims[i + 1]
        bound = 1.0 / float(jnp.sqrt(cin * 9))
        params[f"enc{i}_w"] = jax.random.uniform(
            keys[2 * i], (cout, cin, 3, 3), jnp.float32, -bound, bound)
        params[f"enc{i}_b"] = jax.random.uniform(
            keys[2 * i + 1], (cout,), jnp.float32, -bound, bound)
    dec_dims = [hidden_dims[2], hidden_dims[1], hidden_dims[0], in_channels]
    for i in range(3):
        cin, cout = dec_dims[i], dec_dims[i + 1]
        bound = 1.0 / float(jnp.sqrt(cout * 9))
        params[f"dec{i}_w"] = jax.random.uniform(
            keys[6 + 2 * i], (cin, cout, 3, 3), jnp.float32, -bound, bound)
        params[f"dec{i}_b"] = jax.random.uniform(
            keys[7 + 2 * i], (cout,), jnp.float32, -bound, bound)
    return params


def prepare_params(params, in_channels=3, hidden_dims=(16, 32, 64)):
    """One-time conversion of PyTorch-layout weights into bf16 matmul matrices
    in the K / N order expected by the kernels (no lane padding)."""
    prep = {}
    enc_dims = [in_channels] + list(hidden_dims)
    for i in range(3):
        cin, cout = enc_dims[i], enc_dims[i + 1]
        w = params[f"enc{i}_w"]                                  # (Co,Ci,3,3)
        prep[f"enc{i}_wm"] = (w.transpose(2, 3, 1, 0)            # K=(kh,kw,ci)
                              .reshape(9 * cin, cout).astype(jnp.bfloat16))
        prep[f"enc{i}_bias"] = params[f"enc{i}_b"].astype(jnp.float32)[None, :]

    dec_dims = [hidden_dims[2], hidden_dims[1], hidden_dims[0], in_channels]
    for i in range(3):
        cin, cout = dec_dims[i], dec_dims[i + 1]
        w = params[f"dec{i}_w"]                                  # (Ci,Co,3,3)
        # Sub-pixel weights: y[2i+di,2j+dj] += x[i+dp,j+dq] @ w[:,:,kh,kw]
        # with kh = di-2dp+1, kw = dj-2dq+1 (invalid taps stay zero).
        wsub = jnp.zeros((2, 2, cin, 2, 2, cout), jnp.float32)
        for dp in range(2):
            for di in range(2):
                kh = di - 2 * dp + 1
                if not 0 <= kh <= 2:
                    continue
                for dq in range(2):
                    for dj in range(2):
                        kw = dj - 2 * dq + 1
                        if not 0 <= kw <= 2:
                            continue
                        wsub = wsub.at[dp, dq, :, di, dj, :].set(w[:, :, kh, kw])
        prep[f"dec{i}_wm"] = wsub.reshape(4 * cin, 4 * cout).astype(jnp.bfloat16)
        prep[f"dec{i}_bias"] = jnp.tile(
            params[f"dec{i}_b"], 4).astype(jnp.float32)[None, :]
    return prep


# ----------------------------------------------------------------------------
# Forward pass
# ----------------------------------------------------------------------------
def _forward_impl(prep, x, *, in_channels, hidden_dims):
    B, _, H, W = x.shape
    h = x.astype(jnp.bfloat16).transpose(0, 2, 3, 1)     # NCHW -> NHWC (once)
    enc_dims = [in_channels] + list(hidden_dims)
    for i in range(3):                                   # encoder: conv s2 + relu
        h = conv2d_s2_nhwc(h, prep[f"enc{i}_wm"], prep[f"enc{i}_bias"],
                           enc_dims[i + 1], "relu", jnp.bfloat16)
    dec_dims = [hidden_dims[2], hidden_dims[1], hidden_dims[0], in_channels]
    acts = ("relu", "relu", "sigmoid")
    for i in range(3):                                   # decoder: convT s2 (bf16)
        h = convtranspose2d_s2_nhwc(h, prep[f"dec{i}_wm"], prep[f"dec{i}_bias"],
                                    dec_dims[i + 1], acts[i], jnp.bfloat16)
    h = bilinear_resize_nhwc(h, H, W)
    # NHWC -> NCHW once, then the single cast to f32 at the very end.
    return h.transpose(0, 3, 1, 2).astype(jnp.float32)


def make_forward(in_channels=3, hidden_dims=(16, 32, 64)):
    return jax.jit(functools.partial(
        _forward_impl, in_channels=in_channels, hidden_dims=tuple(hidden_dims)))


if __name__ == "__main__":
    key = jax.random.PRNGKey(0)
    pkey, xkey = jax.random.split(key)
    raw_params = init_params(pkey, in_channels=3, hidden_dims=(16, 32, 64))
    prep = prepare_params(raw_params, in_channels=3, hidden_dims=(16, 32, 64))
    forward = make_forward(3, (16, 32, 64))

    x = jax.random.normal(xkey, (2, 3, 16, 16), dtype=jnp.float32)
    y = jax.block_until_ready(forward(prep, x))

    assert y.shape == x.shape, (y.shape, x.shape)
    assert bool(jnp.all(jnp.isfinite(y)))
    assert bool(jnp.all((y >= 0.0) & (y <= 1.0)))        # sigmoid output range
    print("KERNEL_OK")
</pallas_src>

<mosaic_0001>
module attributes {stable_mosaic.version = 11 : i64} {
  func.func @_mm_bias_act_kernel(%arg0: i32, %arg1: memref<64x27xbf16, #tpu.memory_space<vmem>>, %arg2: memref<27x16xbf16, #tpu.memory_space<vmem>>, %arg3: memref<1x16xf32, #tpu.memory_space<vmem>>, %arg4: memref<64x16xbf16, #tpu.memory_space<vmem>>) attributes {dimension_semantics = [#tpu.dimension_semantics<parallel>], iteration_bounds = array<i64: 2>, scalar_prefetch = 0 : i64, scratch_operands = 0 : i64, tpu.core_type = #tpu.core_type<tc>, window_params = [{transform_indices = @transform_0, window_bounds = array<i64: 64, 27>}, {pipeline_mode = #tpu.pipeline_mode<synchronous>, transform_indices = @transform_1, window_bounds = array<i64: 27, 16>}, {pipeline_mode = #tpu.pipeline_mode<synchronous>, transform_indices = @transform_2, window_bounds = array<i64: 1, 16>}, {transform_indices = @transform_3, window_bounds = array<i64: 64, 16>}]} {
    %c0 = arith.constant 0 : index
    %c0_0 = arith.constant 0 : index
    %0 = vector.load %arg1[%c0, %c0_0] : memref<64x27xbf16, #tpu.memory_space<vmem>>, vector<64x27xbf16>
    %c0_1 = arith.constant 0 : index
    %c0_2 = arith.constant 0 : index
    %1 = vector.load %arg2[%c0_1, %c0_2] : memref<27x16xbf16, #tpu.memory_space<vmem>>, vector<27x16xbf16>
    %cst = arith.constant dense<0.000000e+00> : vector<64x16xf32>
    %2 = tpu.matmul %0, %1, %cst {dimension_numbers = #tpu.dot_dimension_numbers<[1], [0], [0], [1], [0, 0, 1, 1], [], []>} : vector<64x27xbf16>, vector<27x16xbf16>, vector<64x16xf32> -> vector<64x16xf32>
    %c0_3 = arith.constant 0 : index
    %c0_4 = arith.constant 0 : index
    %3 = vector.load %arg3[%c0_3, %c0_4] : memref<1x16xf32, #tpu.memory_space<vmem>>, vector<1x16xf32>
    %4 = vector.broadcast %3 : vector<1x16xf32> to vector<64x16xf32>
    %5 = arith.addf %2, %4 : vector<64x16xf32>
    %cst_5 = arith.constant 0.000000e+00 : f32
    %6 = vector.broadcast %cst_5 : f32 to vector<64x16xf32>
    %7 = arith.maximumf %5, %6 : vector<64x16xf32>
    %8 = arith.truncf %7 : vector<64x16xf32> to vector<64x16xbf16>
    %c0_6 = arith.constant 0 : index
    %c0_7 = arith.constant 0 : index
    %9 = vector.load %arg4[%c0_6, %c0_7] : memref<64x16xbf16, #tpu.memory_space<vmem>>, vector<64x16xbf16>
    tpu.vector_store %arg4[%c0_6, %c0_7], %8 {strides = array<i32>} : memref<64x16xbf16, #tpu.memory_space<vmem>>, vector<64x16xbf16>,
    return
  }
  func.func @transform_0(%arg0: i32) -> (i32, i32) {
    %c0_i32 = arith.constant 0 : i32
    %c0_i32_0 = arith.constant 0 : i32
    return %arg0, %c0_i32 : i32, i32
  }
  func.func @transform_1(%arg0: i32) -> (i32, i32) {
    %c0_i32 = arith.constant 0 : i32
    %c0_i32_0 = arith.constant 0 : i32
    %c0_i32_1 = arith.constant 0 : i32
    return %c0_i32, %c0_i32_0 : i32, i32
  }
  func.func @transform_2(%arg0: i32) -> (i32, i32) {
    %c0_i32 = arith.constant 0 : i32
    %c0_i32_0 = arith.constant 0 : i32
    %c0_i32_1 = arith.constant 0 : i32
    return %c0_i32, %c0_i32_0 : i32, i32
  }
  func.func @transform_3(%arg0: i32) -> (i32, i32) {
    %c0_i32 = arith.constant 0 : i32
    %c0_i32_0 = arith.constant 0 : i32
    return %arg0, %c0_i32 : i32, i32
  }
}

module attributes {stable_mosaic.version = 11 : i64} {
  func.func @_mm_bias_act_kernel(%arg0: i32, %arg1: memref<16x144xbf16, #tpu.memory_space<vmem>>, %arg2: memref<144x32xbf16, #tpu.memory_space<vmem>>, %arg3: memref<1x32xf32, #tpu.memory_space<vmem>>, %arg4: memref<16x32xbf16, #tpu.memory_space<vmem>>) attributes {dimension_semantics = [#tpu.dimension_semantics<parallel>], iteration_bounds = array<i64: 2>, scalar_prefetch = 0 : i64, scratch_operands = 0 : i64, tpu.core_type = #tpu.core_type<tc>, window_params = [{transform_indices = @transform_0, window_bounds = array<i64: 16, 144>}, {pipeline_mode = #tpu.pipeline_mode<synchronous>, transform_indices = @transform_1, window_bounds = array<i64: 144, 32>}, {pipeline_mode = #tpu.pipeline_mode<synchronous>, transform_indices = @transform_2, window_bounds = array<i64: 1, 32>}, {transform_indices = @transform_3, window_bounds = array<i64: 16, 32>}]} {
    %c0 = arith.constant 0 : index
    %c0_0 = arith.constant 0 : index
    %0 = vector.load %arg1[%c0, %c0_0] : memref<16x144xbf16, #tpu.memory_space<vmem>>, vector<16x144xbf16>
    %c0_1 = arith.constant 0 : index
    %c0_2 = arith.constant 0 : index
    %1 = vector.load %arg2[%c0_1, %c0_2] : memref<144x32xbf16, #tpu.memory_space<vmem>>, vector<144x32xbf16>
    %cst = arith.constant dense<0.000000e+00> : vector<16x32xf32>
    %2 = tpu.matmul %0, %1, %cst {dimension_numbers = #tpu.dot_dimension_numbers<[1], [0], [0], [1], [0, 0, 1, 1], [], []>} : vector<16x144xbf16>, vector<144x32xbf16>, vector<16x32xf32> -> vector<16x32xf32>
    %c0_3 = arith.constant 0 : index
    %c0_4 = arith.constant 0 : index
    %3 = vector.load %arg3[%c0_3, %c0_4] : memref<1x32xf32, #tpu.memory_space<vmem>>, vector<1x32xf32>
    %4 = vector.broadcast %3 : vector<1x32xf32> to vector<16x32xf32>
    %5 = arith.addf %2, %4 : vector<16x32xf32>
    %cst_5 = arith.constant 0.000000e+00 : f32
    %6 = vector.broadcast %cst_5 : f32 to vector<16x32xf32>
    %7 = arith.maximumf %5, %6 : vector<16x32xf32>
    %8 = arith.truncf %7 : vector<16x32xf32> to vector<16x32xbf16>
    %c0_6 = arith.constant 0 : index
    %c0_7 = arith.constant 0 : index
    %9 = vector.load %arg4[%c0_6, %c0_7] : memref<16x32xbf16, #tpu.memory_space<vmem>>, vector<16x32xbf16>
    tpu.vector_store %arg4[%c0_6, %c0_7], %8 {strides = array<i32>} : memref<16x32xbf16, #tpu.memory_space<vmem>>, vector<16x32xbf16>,
    return
  }
  func.func @transform_0(%arg0: i32) -> (i32, i32) {
    %c0_i32 = arith.constant 0 : i32
    %c0_i32_0 = arith.constant 0 : i32
    return %arg0, %c0_i32 : i32, i32
  }
  func.func @transform_1(%arg0: i32) -> (i32, i32) {
    %c0_i32 = arith.constant 0 : i32
    %c0_i32_0 = arith.constant 0 : i32
    %c0_i32_1 = arith.constant 0 : i32
    return %c0_i32, %c0_i32_0 : i32, i32
  }
  func.func @transform_2(%arg0: i32) -> (i32, i32) {
    %c0_i32 = arith.constant 0 : i32
    %c0_i32_0 = arith.constant 0 : i32
    %c0_i32_1 = arith.constant 0 : i32
    return %c0_i32, %c0_i32_0 : i32, i32
  }
  func.func @transform_3(%arg0: i32) -> (i32, i32) {
    %c0_i32 = arith.constant 0 : i32
    %c0_i32_0 = arith.constant 0 : i32
    return %arg0, %c0_i32 : i32, i32
  }
}

module attributes {stable_mosaic.version = 11 : i64} {
  func.func @_mm_bias_act_kernel(%arg0: i32, %arg1: memref<8x288xbf16, #tpu.memory_space<vmem>>, %arg2: memref<288x64xbf16, #tpu.memory_space<vmem>>, %arg3: memref<1x64xf32, #tpu.memory_space<vmem>>, %arg4: memref<8x64xbf16, #tpu.memory_space<vmem>>) attributes {dimension_semantics = [#tpu.dimension_semantics<parallel>], iteration_bounds = array<i64: 1>, scalar_prefetch = 0 : i64, scratch_operands = 0 : i64, tpu.core_type = #tpu.core_type<tc>, window_params = [{transform_indices = @transform_0, window_bounds = array<i64: 8, 288>}, {pipeline_mode = #tpu.pipeline_mode<synchronous>, transform_indices = @transform_1, window_bounds = array<i64: 288, 64>}, {pipeline_mode = #tpu.pipeline_mode<synchronous>, transform_indices = @transform_2, window_bounds = array<i64: 1, 64>}, {transform_indices = @transform_3, window_bounds = array<i64: 8, 64>}]} {
    %c0 = arith.constant 0 : index
    %c0_0 = arith.constant 0 : index
    %0 = vector.load %arg1[%c0, %c0_0] : memref<8x288xbf16, #tpu.memory_space<vmem>>, vector<8x288xbf16>
    %c0_1 = arith.constant 0 : index
    %c0_2 = arith.constant 0 : index
    %1 = vector.load %arg2[%c0_1, %c0_2] : memref<288x64xbf16, #tpu.memory_space<vmem>>, vector<288x64xbf16>
    %cst = arith.constant dense<0.000000e+00> : vector<8x64xf32>
    %2 = tpu.matmul %0, %1, %cst {dimension_numbers = #tpu.dot_dimension_numbers<[1], [0], [0], [1], [0, 0, 1, 1], [], []>} : vector<8x288xbf16>, vector<288x64xbf16>, vector<8x64xf32> -> vector<8x64xf32>
    %c0_3 = arith.constant 0 : index
    %c0_4 = arith.constant 0 : index
    %3 = vector.load %arg3[%c0_3, %c0_4] : memref<1x64xf32, #tpu.memory_space<vmem>>, vector<1x64xf32>
    %4 = vector.broadcast %3 : vector<1x64xf32> to vector<8x64xf32>
    %5 = arith.addf %2, %4 : vector<8x64xf32>
    %cst_5 = arith.constant 0.000000e+00 : f32
    %6 = vector.broadcast %cst_5 : f32 to vector<8x64xf32>
    %7 = arith.maximumf %5, %6 : vector<8x64xf32>
    %8 = arith.truncf %7 : vector<8x64xf32> to vector<8x64xbf16>
    %c0_6 = arith.constant 0 : index
    %c0_7 = arith.constant 0 : index
    %9 = vector.load %arg4[%c0_6, %c0_7] : memref<8x64xbf16, #tpu.memory_space<vmem>>, vector<8x64xbf16>
    tpu.vector_store %arg4[%c0_6, %c0_7], %8 {strides = array<i32>} : memref<8x64xbf16, #tpu.memory_space<vmem>>, vector<8x64xbf16>,
    return
  }
  func.func @transform_0(%arg0: i32) -> (i32, i32) {
    %c0_i32 = arith.constant 0 : i32
    %c0_i32_0 = arith.constant 0 : i32
    return %arg0, %c0_i32 : i32, i32
  }
  func.func @transform_1(%arg0: i32) -> (i32, i32) {
    %c0_i32 = arith.constant 0 : i32
    %c0_i32_0 = arith.constant 0 : i32
    %c0_i32_1 = arith.constant 0 : i32
    return %c0_i32, %c0_i32_0 : i32, i32
  }
  func.func @transform_2(%arg0: i32) -> (i32, i32) {
    %c0_i32 = arith.constant 0 : i32
    %c0_i32_0 = arith.constant 0 : i32
    %c0_i32_1 = arith.constant 0 : i32
    return %c0_i32, %c0_i32_0 : i32, i32
  }
  func.func @transform_3(%arg0: i32) -> (i32, i32) {
    %c0_i32 = arith.constant 0 : i32
    %c0_i32_0 = arith.constant 0 : i32
    return %arg0, %c0_i32 : i32, i32
  }
}

module attributes {stable_mosaic.version = 11 : i64} {
  func.func @_convt_kernel(%arg0: i32, %arg1: i32, %arg2: memref<1x2x3x64xbf16, #tpu.memory_space<vmem>>, %arg3: memref<1x1x3x64xbf16, #tpu.memory_space<vmem>>, %arg4: memref<256x128xbf16, #tpu.memory_space<vmem>>, %arg5: memref<1x128xf32, #tpu.memory_space<vmem>>, %arg6: memref<1x2x2x128xbf16, #tpu.memory_space<vmem>>) attributes {dimension_semantics = [#tpu.dimension_semantics<parallel>, #tpu.dimension_semantics<parallel>], iteration_bounds = array<i64: 2, 1>, scalar_prefetch = 0 : i64, scratch_operands = 0 : i64, tpu.core_type = #tpu.core_type<tc>, window_params = [{transform_indices = @transform_0, window_bounds = array<i64: 1, 2, 3, 64>}, {transform_indices = @transform_1, window_bounds = array<i64: 1, 1, 3, 64>}, {pipeline_mode = #tpu.pipeline_mode<synchronous>, transform_indices = @transform_2, window_bounds = array<i64: 256, 128>}, {pipeline_mode = #tpu.pipeline_mode<synchronous>, transform_indices = @transform_3, window_bounds = array<i64: 1, 128>}, {transform_indices = @transform_4, window_bounds = array<i64: 1, 2, 2, 128>}]} {
    %c0 = arith.constant 0 : index
    %c0_0 = arith.constant 0 : index
    %c0_1 = arith.constant 0 : index
    %c0_2 = arith.constant 0 : index
    %0 = vector.load %arg2[%c0, %c0_0, %c0_1, %c0_2] : memref<1x2x3x64xbf16, #tpu.memory_space<vmem>>, vector<1x2x3x64xbf16>
    %1 = vector.shape_cast %0 : vector<1x2x3x64xbf16> to vector<2x3x64xbf16>
    %c0_3 = arith.constant 0 : index
    %c0_4 = arith.constant 0 : index
    %c0_5 = arith.constant 0 : index
    %c0_6 = arith.constant 0 : index
    %2 = vector.load %arg3[%c0_3, %c0_4, %c0_5, %c0_6] : memref<1x1x3x64xbf16, #tpu.memory_space<vmem>>, vector<1x1x3x64xbf16>
    %3 = vector.shape_cast %2 : vector<1x1x3x64xbf16> to vector<1x3x64xbf16>
    %4 = tpu.concatenate %1, %3 in 0 : vector<2x3x64xbf16>, vector<1x3x64xbf16> -> vector<3x3x64xbf16>
    %5 = vector.extract_strided_slice %4 {offsets = [0, 0, 0], sizes = [2, 2, 64], strides = [1, 1, 1]} : vector<3x3x64xbf16> to vector<2x2x64xbf16>
    %6 = vector.shape_cast %5 : vector<2x2x64xbf16> to vector<4x64xbf16>
    %c0_7 = arith.constant 0 : index
    %c0_8 = arith.constant 0 : index
    %7 = vector.load %arg4[%c0_7, %c0_8] : memref<256x128xbf16, #tpu.memory_space<vmem>>, vector<64x128xbf16>
    %cst = arith.constant dense<0.000000e+00> : vector<4x128xf32>
    %8 = tpu.matmul %6, %7, %cst {dimension_numbers = #tpu.dot_dimension_numbers<[1], [0], [0], [1], [0, 0, 1, 1], [], []>} : vector<4x64xbf16>, vector<64x128xbf16>, vector<4x128xf32> -> vector<4x128xf32>
    %9 = vector.extract_strided_slice %4 {offsets = [0, 1, 0], sizes = [2, 2, 64], strides = [1, 1, 1]} : vector<3x3x64xbf16> to vector<2x2x64xbf16>
    %10 = vector.shape_cast %9 : vector<2x2x64xbf16> to vector<4x64xbf16>
    %c64 = arith.constant 64 : index
    %c0_9 = arith.constant 0 : index
    %11 = vector.load %arg4[%c64, %c0_9] : memref<256x128xbf16, #tpu.memory_space<vmem>>, vector<64x128xbf16>
    %cst_10 = arith.constant dense<0.000000e+00> : vector<4x128xf32>
    %12 = tpu.matmul %10, %11, %cst_10 {dimension_numbers = #tpu.dot_dimension_numbers<[1], [0], [0], [1], [0, 0, 1, 1], [], []>} : vector<4x64xbf16>, vector<64x128xbf16>, vector<4x128xf32> -> vector<4x128xf32>
    %13 = arith.addf %8, %12 : vector<4x128xf32>
    %14 = vector.extract_strided_slice %4 {offsets = [1, 0, 0], sizes = [2, 2, 64], strides = [1, 1, 1]} : vector<3x3x64xbf16> to vector<2x2x64xbf16>
    %15 = vector.shape_cast %14 : vector<2x2x64xbf16> to vector<4x64xbf16>
    %c128 = arith.constant 128 : index
    %c0_11 = arith.constant 0 : index
    %16 = vector.load %arg4[%c128, %c0_11] : memref<256x128xbf16, #tpu.memory_space<vmem>>, vector<64x128xbf16>
    %cst_12 = arith.constant dense<0.000000e+00> : vector<4x128xf32>
    %17 = tpu.matmul %15, %16, %cst_12 {dimension_numbers = #tpu.dot_dimension_numbers<[1], [0], [0], [1], [0, 0, 1, 1], [], []>} : vector<4x64xbf16>, vector<64x128xbf16>, vector<4x128xf32> -> vector<4x128xf32>
    %18 = arith.addf %13, %17 : vector<4x128xf32>
    %19 = vector.extract_strided_slice %4 {offsets = [1, 1, 0], sizes = [2, 2, 64], strides = [1, 1, 1]} : vector<3x3x64xbf16> to vector<2x2x64xbf16>
    %20 = vector.shape_cast %19 : vector<2x2x64xbf16> to vector<4x64xbf16>
    %c192 = arith.constant 192 : index
    %c0_13 = arith.constant 0 : index
    %21 = vector.load %arg4[%c192, %c0_13] : memref<256x128xbf16, #tpu.memory_space<vmem>>, vector<64x128xbf16>
    %cst_14 = arith.constant dense<0.000000e+00> : vector<4x128xf32>
    %22 = tpu.matmul %20, %21, %cst_14 {dimension_numbers = #tpu.dot_dimension_numbers<[1], [0], [0], [1], [0, 0, 1, 1], [], []>} : vector<4x64xbf16>, vector<64x128xbf16>, vector<4x128xf32> -> vector<4x128xf32>
    %23 = arith.addf %18, %22 : vector<4x128xf32>
    %c0_15 = arith.constant 0 : index
    %c0_16 = arith.constant 0 : index
    %24 = vector.load %arg5[%c0_15, %c0_16] : memref<1x128xf32, #tpu.memory_space<vmem>>, vector<1x128xf32>
    %25 = vector.broadcast %24 : vector<1x128xf32> to vector<4x128xf32>
    %26 = arith.addf %23, %25 : vector<4x128xf32>
    %cst_17 = arith.constant 0.000000e+00 : f32
    %27 = vector.broadcast %cst_17 : f32 to vector<4x128xf32>
    %28 = arith.maximumf %26, %27 : vector<4x128xf32>
    %29 = arith.truncf %28 : vector<4x128xf32> to vector<4x128xbf16>
    %30 = vector.shape_cast %29 : vector<4x128xbf16> to vector<2x2x128xbf16>
    %c0_18 = arith.constant 0 : index
    %c0_19 = arith.constant 0 : index
    %c0_20 = arith.constant 0 : index
    %c0_21 = arith.constant 0 : index
    %31 = vector.load %arg6[%c0_18, %c0_19, %c0_20, %c0_21] : memref<1x2x2x128xbf16, #tpu.memory_space<vmem>>, vector<1x2x2x128xbf16>
    %32 = vector.shape_cast %31 : vector<1x2x2x128xbf16> to vector<2x2x128xbf16>
    %33 = vector.shape_cast %30 : vector<2x2x128xbf16> to vector<1x2x2x128xbf16>
    tpu.vector_store %arg6[%c0_18, %c0_19, %c0_20, %c0_21], %33 {strides = array<i32>} : memref<1x2x2x128xbf16, #tpu.memory_space<vmem>>, vector<1x2x2x128xbf16>,
    return
  }
  func.func @transform_0(%arg0: i32, %arg1: i32) -> (i32, i32, i32, i32) {
    %c0_i32 = arith.constant 0 : i32
    %c0_i32_0 = arith.constant 0 : i32
    %c0_i32_1 = arith.constant 0 : i32
    return %arg0, %arg1, %c0_i32, %c0_i32_0 : i32, i32, i32, i32
  }
  func.func @transform_1(%arg0: i32, %arg1: i32) -> (i32, i32, i32, i32) {
    %c0_i32 = arith.constant 0 : i32
    %c0_i32_0 = arith.constant 0 : i32
    %c0_i32_1 = arith.constant 0 : i32
    return %arg0, %arg1, %c0_i32, %c0_i32_0 : i32, i32, i32, i32
  }
  func.func @transform_2(%arg0: i32, %arg1: i32) -> (i32, i32) {
    %c0_i32 = arith.constant 0 : i32
    %c0_i32_0 = arith.constant 0 : i32
    %c0_i32_1 = arith.constant 0 : i32
    return %c0_i32, %c0_i32_0 : i32, i32
  }
  func.func @transform_3(%arg0: i32, %arg1: i32) -> (i32, i32) {
    %c0_i32 = arith.constant 0 : i32
    %c0_i32_0 = arith.constant 0 : i32
    %c0_i32_1 = arith.constant 0 : i32
    return %c0_i32, %c0_i32_0 : i32, i32
  }
  func.func @transform_4(%arg0: i32, %arg1: i32) -> (i32, i32, i32, i32) {
    %c0_i32 = arith.constant 0 : i32
    %c0_i32_0 = arith.constant 0 : i32
    %c0_i32_1 = arith.constant 0 : i32
    return %arg0, %arg1, %c0_i32, %c0_i32_0 : i32, i32, i32, i32
  }
}

module attributes {stable_mosaic.version = 11 : i64} {
  func.func @_convt_kernel(%arg0: i32, %arg1: i32, %arg2: memref<1x4x5x32xbf16, #tpu.memory_space<vmem>>, %arg3: memref<1x1x5x32xbf16, #tpu.memory_space<vmem>>, %arg4: memref<128x64xbf16, #tpu.memory_space<vmem>>, %arg5: memref<1x64xf32, #tpu.memory_space<vmem>>, %arg6: memref<1x4x4x64xbf16, #tpu.memory_space<vmem>>) attributes {dimension_semantics = [#tpu.dimension_semantics<parallel>, #tpu.dimension_semantics<parallel>], iteration_bounds = array<i64: 2, 1>, scalar_prefetch = 0 : i64, scratch_operands = 0 : i64, tpu.core_type = #tpu.core_type<tc>, window_params = [{transform_indices = @transform_0, window_bounds = array<i64: 1, 4, 5, 32>}, {transform_indices = @transform_1, window_bounds = array<i64: 1, 1, 5, 32>}, {pipeline_mode = #tpu.pipeline_mode<synchronous>, transform_indices = @transform_2, window_bounds = array<i64: 128, 64>}, {pipeline_mode = #tpu.pipeline_mode<synchronous>, transform_indices = @transform_3, window_bounds = array<i64: 1, 64>}, {transform_indices = @transform_4, window_bounds = array<i64: 1, 4, 4, 64>}]} {
    %c0 = arith.constant 0 : index
    %c0_0 = arith.constant 0 : index
    %c0_1 = arith.constant 0 : index
    %c0_2 = arith.constant 0 : index
    %0 = vector.load %arg2[%c0, %c0_0, %c0_1, %c0_2] : memref<1x4x5x32xbf16, #tpu.memory_space<vmem>>, vector<1x4x5x32xbf16>
    %1 = vector.shape_cast %0 : vector<1x4x5x32xbf16> to vector<4x5x32xbf16>
    %c0_3 = arith.constant 0 : index
    %c0_4 = arith.constant 0 : index
    %c0_5 = arith.constant 0 : index
    %c0_6 = arith.constant 0 : index
    %2 = vector.load %arg3[%c0_3, %c0_4, %c0_5, %c0_6] : memref<1x1x5x32xbf16, #tpu.memory_space<vmem>>, vector<1x1x5x32xbf16>
    %3 = vector.shape_cast %2 : vector<1x1x5x32xbf16> to vector<1x5x32xbf16>
    %4 = tpu.concatenate %1, %3 in 0 : vector<4x5x32xbf16>, vector<1x5x32xbf16> -> vector<5x5x32xbf16>
    %5 = vector.extract_strided_slice %4 {offsets = [0, 0, 0], sizes = [4, 4, 32], strides = [1, 1, 1]} : vector<5x5x32xbf16> to vector<4x4x32xbf16>
    %6 = vector.shape_cast %5 : vector<4x4x32xbf16> to vector<16x32xbf16>
    %c0_7 = arith.constant 0 : index
    %c0_8 = arith.constant 0 : index
    %7 = vector.load %arg4[%c0_7, %c0_8] : memref<128x64xbf16, #tpu.memory_space<vmem>>, vector<32x64xbf16>
    %cst = arith.constant dense<0.000000e+00> : vector<16x64xf32>
    %8 = tpu.matmul %6, %7, %cst {dimension_numbers = #tpu.dot_dimension_numbers<[1], [0], [0], [1], [0, 0, 1, 1], [], []>} : vector<16x32xbf16>, vector<32x64xbf16>, vector<16x64xf32> -> vector<16x64xf32>
    %9 = vector.extract_strided_slice %4 {offsets = [0, 1, 0], sizes = [4, 4, 32], strides = [1, 1, 1]} : vector<5x5x32xbf16> to vector<4x4x32xbf16>
    %10 = vector.shape_cast %9 : vector<4x4x32xbf16> to vector<16x32xbf16>
    %c32 = arith.constant 32 : index
    %c0_9 = arith.constant 0 : index
    %11 = vector.load %arg4[%c32, %c0_9] : memref<128x64xbf16, #tpu.memory_space<vmem>>, vector<32x64xbf16>
    %cst_10 = arith.constant dense<0.000000e+00> : vector<16x64xf32>
    %12 = tpu.matmul %10, %11, %cst_10 {dimension_numbers = #tpu.dot_dimension_numbers<[1], [0], [0], [1], [0, 0, 1, 1], [], []>} : vector<16x32xbf16>, vector<32x64xbf16>, vector<16x64xf32> -> vector<16x64xf32>
    %13 = arith.addf %8, %12 : vector<16x64xf32>
    %14 = vector.extract_strided_slice %4 {offsets = [1, 0, 0], sizes = [4, 4, 32], strides = [1, 1, 1]} : vector<5x5x32xbf16> to vector<4x4x32xbf16>
    %15 = vector.shape_cast %14 : vector<4x4x32xbf16> to vector<16x32xbf16>
    %c64 = arith.constant 64 : index
    %c0_11 = arith.constant 0 : index
    %16 = vector.load %arg4[%c64, %c0_11] : memref<128x64xbf16, #tpu.memory_space<vmem>>, vector<32x64xbf16>
    %cst_12 = arith.constant dense<0.000000e+00> : vector<16x64xf32>
    %17 = tpu.matmul %15, %16, %cst_12 {dimension_numbers = #tpu.dot_dimension_numbers<[1], [0], [0], [1], [0, 0, 1, 1], [], []>} : vector<16x32xbf16>, vector<32x64xbf16>, vector<16x64xf32> -> vector<16x64xf32>
    %18 = arith.addf %13, %17 : vector<16x64xf32>
    %19 = vector.extract_strided_slice %4 {offsets = [1, 1, 0], sizes = [4, 4, 32], strides = [1, 1, 1]} : vector<5x5x32xbf16> to vector<4x4x32xbf16>
    %20 = vector.shape_cast %19 : vector<4x4x32xbf16> to vector<16x32xbf16>
    %c96 = arith.constant 96 : index
    %c0_13 = arith.constant 0 : index
    %21 = vector.load %arg4[%c96, %c0_13] : memref<128x64xbf16, #tpu.memory_space<vmem>>, vector<32x64xbf16>
    %cst_14 = arith.constant dense<0.000000e+00> : vector<16x64xf32>
    %22 = tpu.matmul %20, %21, %cst_14 {dimension_numbers = #tpu.dot_dimension_numbers<[1], [0], [0], [1], [0, 0, 1, 1], [], []>} : vector<16x32xbf16>, vector<32x64xbf16>, vector<16x64xf32> -> vector<16x64xf32>
    %23 = arith.addf %18, %22 : vector<16x64xf32>
    %c0_15 = arith.constant 0 : index
    %c0_16 = arith.constant 0 : index
    %24 = vector.load %arg5[%c0_15, %c0_16] : memref<1x64xf32, #tpu.memory_space<vmem>>, vector<1x64xf32>
    %25 = vector.broadcast %24 : vector<1x64xf32> to vector<16x64xf32>
    %26 = arith.addf %23, %25 : vector<16x64xf32>
    %cst_17 = arith.constant 0.000000e+00 : f32
    %27 = vector.broadcast %cst_17 : f32 to vector<16x64xf32>
    %28 = arith.maximumf %26, %27 : vector<16x64xf32>
    %29 = arith.truncf %28 : vector<16x64xf32> to vector<16x64xbf16>
    %30 = vector.shape_cast %29 : vector<16x64xbf16> to vector<4x4x64xbf16>
    %c0_18 = arith.constant 0 : index
    %c0_19 = arith.constant 0 : index
    %c0_20 = arith.constant 0 : index
    %c0_21 = arith.constant 0 : index
    %31 = vector.load %arg6[%c0_18, %c0_19, %c0_20, %c0_21] : memref<1x4x4x64xbf16, #tpu.memory_space<vmem>>, vector<1x4x4x64xbf16>
    %32 = vector.shape_cast %31 : vector<1x4x4x64xbf16> to vector<4x4x64xbf16>
    %33 = vector.shape_cast %30 : vector<4x4x64xbf16> to vector<1x4x4x64xbf16>
    tpu.vector_store %arg6[%c0_18, %c0_19, %c0_20, %c0_21], %33 {strides = array<i32>} : memref<1x4x4x64xbf16, #tpu.memory_space<vmem>>, vector<1x4x4x64xbf16>,
    return
  }
  func.func @transform_0(%arg0: i32, %arg1: i32) -> (i32, i32, i32, i32) {
    %c0_i32 = arith.constant 0 : i32
    %c0_i32_0 = arith.constant 0 : i32
    %c0_i32_1 = arith.constant 0 : i32
    return %arg0, %arg1, %c0_i32, %c0_i32_0 : i32, i32, i32, i32
  }
  func.func @transform_1(%arg0: i32, %arg1: i32) -> (i32, i32, i32, i32) {
    %c0_i32 = arith.constant 0 : i32
    %c0_i32_0 = arith.constant 0 : i32
    %c0_i32_1 = arith.constant 0 : i32
    return %arg0, %arg1, %c0_i32, %c0_i32_0 : i32, i32, i32, i32
  }
  func.func @transform_2(%arg0: i32, %arg1: i32) -> (i32, i32) {
    %c0_i32 = arith.constant 0 : i32
    %c0_i32_0 = arith.constant 0 : i32
    %c0_i32_1 = arith.constant 0 : i32
    return %c0_i32, %c0_i32_0 : i32, i32
  }
  func.func @transform_3(%arg0: i32, %arg1: i32) -> (i32, i32) {
    %c0_i32 = arith.constant 0 : i32
    %c0_i32_0 = arith.constant 0 : i32
    %c0_i32_1 = arith.constant 0 : i32
    return %c0_i32, %c0_i32_0 : i32, i32
  }
  func.func @transform_4(%arg0: i32, %arg1: i32) -> (i32, i32, i32, i32) {
    %c0_i32 = arith.constant 0 : i32
    %c0_i32_0 = arith.constant 0 : i32
    %c0_i32_1 = arith.constant 0 : i32
    return %arg0, %arg1, %c0_i32, %c0_i32_0 : i32, i32, i32, i32
  }
}

module attributes {stable_mosaic.version = 11 : i64} {
  func.func @_convt_kernel(%arg0: i32, %arg1: i32, %arg2: memref<1x8x9x16xbf16, #tpu.memory_space<vmem>>, %arg3: memref<1x1x9x16xbf16, #tpu.memory_space<vmem>>, %arg4: memref<64x12xbf16, #tpu.memory_space<vmem>>, %arg5: memref<1x12xf32, #tpu.memory_space<vmem>>, %arg6: memref<1x8x8x12xbf16, #tpu.memory_space<vmem>>) attributes {dimension_semantics = [#tpu.dimension_semantics<parallel>, #tpu.dimension_semantics<parallel>], iteration_bounds = array<i64: 2, 1>, scalar_prefetch = 0 : i64, scratch_operands = 0 : i64, tpu.core_type = #tpu.core_type<tc>, window_params = [{transform_indices = @transform_0, window_bounds = array<i64: 1, 8, 9, 16>}, {transform_indices = @transform_1, window_bounds = array<i64: 1, 1, 9, 16>}, {pipeline_mode = #tpu.pipeline_mode<synchronous>, transform_indices = @transform_2, window_bounds = array<i64: 64, 12>}, {pipeline_mode = #tpu.pipeline_mode<synchronous>, transform_indices = @transform_3, window_bounds = array<i64: 1, 12>}, {transform_indices = @transform_4, window_bounds = array<i64: 1, 8, 8, 12>}]} {
    %c0 = arith.constant 0 : index
    %c0_0 = arith.constant 0 : index
    %c0_1 = arith.constant 0 : index
    %c0_2 = arith.constant 0 : index
    %0 = vector.load %arg2[%c0, %c0_0, %c0_1, %c0_2] : memref<1x8x9x16xbf16, #tpu.memory_space<vmem>>, vector<1x8x9x16xbf16>
    %1 = vector.shape_cast %0 : vector<1x8x9x16xbf16> to vector<8x9x16xbf16>
    %c0_3 = arith.constant 0 : index
    %c0_4 = arith.constant 0 : index
    %c0_5 = arith.constant 0 : index
    %c0_6 = arith.constant 0 : index
    %2 = vector.load %arg3[%c0_3, %c0_4, %c0_5, %c0_6] : memref<1x1x9x16xbf16, #tpu.memory_space<vmem>>, vector<1x1x9x16xbf16>
    %3 = vector.shape_cast %2 : vector<1x1x9x16xbf16> to vector<1x9x16xbf16>
    %4 = tpu.concatenate %1, %3 in 0 : vector<8x9x16xbf16>, vector<1x9x16xbf16> -> vector<9x9x16xbf16>
    %5 = vector.extract_strided_slice %4 {offsets = [0, 0, 0], sizes = [8, 8, 16], strides = [1, 1, 1]} : vector<9x9x16xbf16> to vector<8x8x16xbf16>
    %6 = vector.shape_cast %5 : vector<8x8x16xbf16> to vector<64x16xbf16>
    %c0_7 = arith.constant 0 : index
    %c0_8 = arith.constant 0 : index
    %7 = vector.load %arg4[%c0_7, %c0_8] : memref<64x12xbf16, #tpu.memory_space<vmem>>, vector<16x12xbf16>
    %cst = arith.constant dense<0.000000e+00> : vector<64x12xf32>
    %8 = tpu.matmul %6, %7, %cst {dimension_numbers = #tpu.dot_dimension_numbers<[1], [0], [0], [1], [0, 0, 1, 1], [], []>} : vector<64x16xbf16>, vector<16x12xbf16>, vector<64x12xf32> -> vector<64x12xf32>
    %9 = vector.extract_strided_slice %4 {offsets = [0, 1, 0], sizes = [8, 8, 16], strides = [1, 1, 1]} : vector<9x9x16xbf16> to vector<8x8x16xbf16>
    %10 = vector.shape_cast %9 : vector<8x8x16xbf16> to vector<64x16xbf16>
    %c16 = arith.constant 16 : index
    %c0_9 = arith.constant 0 : index
    %11 = vector.load %arg4[%c16, %c0_9] : memref<64x12xbf16, #tpu.memory_space<vmem>>, vector<16x12xbf16>
    %cst_10 = arith.constant dense<0.000000e+00> : vector<64x12xf32>
    %12 = tpu.matmul %10, %11, %cst_10 {dimension_numbers = #tpu.dot_dimension_numbers<[1], [0], [0], [1], [0, 0, 1, 1], [], []>} : vector<64x16xbf16>, vector<16x12xbf16>, vector<64x12xf32> -> vector<64x12xf32>
    %13 = arith.addf %8, %12 : vector<64x12xf32>
    %14 = vector.extract_strided_slice %4 {offsets = [1, 0, 0], sizes = [8, 8, 16], strides = [1, 1, 1]} : vector<9x9x16xbf16> to vector<8x8x16xbf16>
    %15 = vector.shape_cast %14 : vector<8x8x16xbf16> to vector<64x16xbf16>
    %c32 = arith.constant 32 : index
    %c0_11 = arith.constant 0 : index
    %16 = vector.load %arg4[%c32, %c0_11] : memref<64x12xbf16, #tpu.memory_space<vmem>>, vector<16x12xbf16>
    %cst_12 = arith.constant dense<0.000000e+00> : vector<64x12xf32>
    %17 = tpu.matmul %15, %16, %cst_12 {dimension_numbers = #tpu.dot_dimension_numbers<[1], [0], [0], [1], [0, 0, 1, 1], [], []>} : vector<64x16xbf16>, vector<16x12xbf16>, vector<64x12xf32> -> vector<64x12xf32>
    %18 = arith.addf %13, %17 : vector<64x12xf32>
    %19 = vector.extract_strided_slice %4 {offsets = [1, 1, 0], sizes = [8, 8, 16], strides = [1, 1, 1]} : vector<9x9x16xbf16> to vector<8x8x16xbf16>
    %20 = vector.shape_cast %19 : vector<8x8x16xbf16> to vector<64x16xbf16>
    %c48 = arith.constant 48 : index
    %c0_13 = arith.constant 0 : index
    %21 = vector.load %arg4[%c48, %c0_13] : memref<64x12xbf16, #tpu.memory_space<vmem>>, vector<16x12xbf16>
    %cst_14 = arith.constant dense<0.000000e+00> : vector<64x12xf32>
    %22 = tpu.matmul %20, %21, %cst_14 {dimension_numbers = #tpu.dot_dimension_numbers<[1], [0], [0], [1], [0, 0, 1, 1], [], []>} : vector<64x16xbf16>, vector<16x12xbf16>, vector<64x12xf32> -> vector<64x12xf32>
    %23 = arith.addf %18, %22 : vector<64x12xf32>
    %c0_15 = arith.constant 0 : index
    %c0_16 = arith.constant 0 : index
    %24 = vector.load %arg5[%c0_15, %c0_16] : memref<1x12xf32, #tpu.memory_space<vmem>>, vector<1x12xf32>
    %25 = vector.broadcast %24 : vector<1x12xf32> to vector<64x12xf32>
    %26 = arith.addf %23, %25 : vector<64x12xf32>
    %27 = arith.negf %26 : vector<64x12xf32>
    %28 = math.exp %27 : vector<64x12xf32>
    %cst_17 = arith.constant 1.000000e+00 : f32
    %29 = vector.broadcast %cst_17 : f32 to vector<64x12xf32>
    %30 = arith.addf %29, %28 : vector<64x12xf32>
    %31 = arith.divf %29, %30 : vector<64x12xf32>
    %32 = arith.truncf %31 : vector<64x12xf32> to vector<64x12xbf16>
    %33 = vector.shape_cast %32 : vector<64x12xbf16> to vector<8x8x12xbf16>
    %c0_18 = arith.constant 0 : index
    %c0_19 = arith.constant 0 : index
    %c0_20 = arith.constant 0 : index
    %c0_21 = arith.constant 0 : index
    %34 = vector.load %arg6[%c0_18, %c0_19, %c0_20, %c0_21] : memref<1x8x8x12xbf16, #tpu.memory_space<vmem>>, vector<1x8x8x12xbf16>
    %35 = vector.shape_cast %34 : vector<1x8x8x12xbf16> to vector<8x8x12xbf16>
    %36 = vector.shape_cast %33 : vector<8x8x12xbf16> to vector<1x8x8x12xbf16>
    tpu.vector_store %arg6[%c0_18, %c0_19, %c0_20, %c0_21], %36 {strides = array<i32>} : memref<1x8x8x12xbf16, #tpu.memory_space<vmem>>, vector<1x8x8x12xbf16>,
    return
  }
  func.func @transform_0(%arg0: i32, %arg1: i32) -> (i32, i32, i32, i32) {
    %c0_i32 = arith.constant 0 : i32
    %c0_i32_0 = arith.constant 0 : i32
    %c0_i32_1 = arith.constant 0 : i32
    return %arg0, %arg1, %c0_i32, %c0_i32_0 : i32, i32, i32, i32
  }
  func.func @transform_1(%arg0: i32, %arg1: i32) -> (i32, i32, i32, i32) {
    %c0_i32 = arith.constant 0 : i32
    %c0_i32_0 = arith.constant 0 : i32
    %c0_i32_1 = arith.constant 0 : i32
    return %arg0, %arg1, %c0_i32, %c0_i32_0 : i32, i32, i32, i32
  }
  func.func @transform_2(%arg0: i32, %arg1: i32) -> (i32, i32) {
    %c0_i32 = arith.constant 0 : i32
    %c0_i32_0 = arith.constant 0 : i32
    %c0_i32_1 = arith.constant 0 : i32
    return %c0_i32, %c0_i32_0 : i32, i32
  }
  func.func @transform_3(%arg0: i32, %arg1: i32) -> (i32, i32) {
    %c0_i32 = arith.constant 0 : i32
    %c0_i32_0 = arith.constant 0 : i32
    %c0_i32_1 = arith.constant 0 : i32
    return %c0_i32, %c0_i32_0 : i32, i32
  }
  func.func @transform_4(%arg0: i32, %arg1: i32) -> (i32, i32, i32, i32) {
    %c0_i32 = arith.constant 0 : i32
    %c0_i32_0 = arith.constant 0 : i32
    %c0_i32_1 = arith.constant 0 : i32
    return %arg0, %arg1, %c0_i32, %c0_i32_0 : i32, i32, i32, i32
  }
}

</mosaic_0001>

<llo_original>
// kernel: _forward_impl.6
$region0: #{_forward_impl.6}
  #allocation0 [shape = 'u32[]', space=smem, size = 0x4, offset = 0x4, fixed_abs, tag = 'smem constant byte address 0x4 - core index']
  #allocation1 [shape = 'u32[144,128]{1,0:T(1,128)}', space=vmem, size = 0x12000, scoped, tag = 'internal scratch']
  %s0 = inlined_call_operand.vmem [shape: bf16[128,27], index: 0, kind: input, shape index: {}]
  %s1 = inlined_call_operand.vmem [shape: bf16[27,16], index: 1, kind: input, shape index: {}]
  %s2 = inlined_call_operand.vmem [shape: f32[1,16], index: 2, kind: input, shape index: {}]
  %s3 = inlined_call_operand.vmem [shape: bf16[128,16], index: 3, kind: output, shape index: {}]
  %s4 = sld [smem:[#allocation0]]
  $region45: #{_forward_impl.6} parent=0
    _
  %s6 = ssub.s32 1, %s4
  %s7 = scalar_select 0, %s6, %s4
  loop: start=0, step=1, limit=4
  $region2: #{_forward_impl.6} parent=0 // loop_pre_header
    _
  $region3: #{_forward_impl.6} parent=0 // loop_header
    %s9 = sphi 0, %s13
    %p10 = scmp.ge.s32.totalorder %s9, 4
    %s19 = sphi 0, %s21
    %s22 = sphi 0, %s19
    %s23 = sphi 0, %s22
    %s39 = sphi 0, %s23
    %s43 = sphi 0, %s43
    %s45 = sphi 0, %s43
    %s46 = sphi 0, %s45
    %s60 = sphi 0, %s46
    %s64 = sphi 0, %s64
    %s66 = sphi 0, %s64
    %s67 = sphi 0, %s66
    %s81 = sphi 0, %s67
    %s87 = sphi 0, %s89
    %s90 = sphi 0, %s87
    %s91 = sphi 0, %s90
    %s107 = sphi 0, %s91
  $region4: #{_forward_impl.6} parent=0 // loop_header_branch
    %12 = sbr.rel (%p10) target = $region8
  $region5: #{_forward_impl.6} parent=0 // loop_body
    %s14 = ssub.s32 %s9, 1
    %s15 = ssub.s32 %s9, 2
    %s16 = sadd.s32 %s9, 1
    %s17 = ssub.s32 %s9, %s16
    %p18 = scmp.eq.s32.totalorder %s17, 0
    %s20 = sadd.s32 %s19, 1
    %s21 = scalar_select %p18, %s19, %s20
    %p24 = pneg %p18
    %p25 = scmp.eq.s32.totalorder %s9, 1
    %p26 = por %p24, %p25
    %p27 = scmp.ne.s32.totalorder %s19, %s22
    %p28 = scmp.eq.s32.totalorder %s9, 0
    %p29 = por %p27, %p28
    %p30 = scmp.ne.s32.totalorder %s19, %s22
    %p31 = scmp.eq.s32.totalorder %s14, 1
    %p32 = por %p30, %p31
    %p33 = scmp.ne.s32.totalorder %s22, %s23
    %p34 = scmp.eq.s32.totalorder %s14, 0
    %p35 = por %p33, %p34
    %p36 = scmp.ne.s32.totalorder %s22, %s23
    %p37 = scmp.eq.s32.totalorder %s15, 1
    %p38 = por %p36, %p37
    %p40 = scmp.ne.s32.totalorder %s23, %s39
    %p41 = scmp.eq.s32.totalorder %s15, 0
    %p42 = por %p40, %p41
    %s44 = sadd.s32 %s43, 1
    %p47 = scmp.eq.s32.totalorder %s9, 1
    %p48 = scmp.ne.s32.totalorder %s43, %s45
    %p49 = scmp.eq.s32.totalorder %s9, 0
    %p50 = por %p48, %p49
    %p51 = scmp.ne.s32.totalorder %s43, %s45
    %p52 = scmp.eq.s32.totalorder %s14, 1
    %p53 = por %p51, %p52
    %p54 = scmp.ne.s32.totalorder %s45, %s46
    %p55 = scmp.eq.s32.totalorder %s14, 0
    %p56 = por %p54, %p55
    %p57 = scmp.ne.s32.totalorder %s45, %s46
    %p58 = scmp.eq.s32.totalorder %s15, 1
    %p59 = por %p57, %p58
    %p61 = scmp.ne.s32.totalorder %s46, %s60
    %p62 = scmp.eq.s32.totalorder %s15, 0
    %p63 = por %p61, %p62
    %s65 = sadd.s32 %s64, 1
    %p68 = scmp.eq.s32.totalorder %s9, 1
    %p69 = scmp.ne.s32.totalorder %s64, %s66
    %p70 = scmp.eq.s32.totalorder %s9, 0
    %p71 = por %p69, %p70
    %p72 = scmp.ne.s32.totalorder %s64, %s66
    %p73 = scmp.eq.s32.totalorder %s14, 1
    %p74 = por %p72, %p73
    %p75 = scmp.ne.s32.totalorder %s66, %s67
    %p76 = scmp.eq.s32.totalorder %s14, 0
    %p77 = por %p75, %p76
    %p78 = scmp.ne.s32.totalorder %s66, %s67
    %p79 = scmp.eq.s32.totalorder %s15, 1
    %p80 = por %p78, %p79
    %p82 = scmp.ne.s32.totalorder %s67, %s81
    %p83 = scmp.eq.s32.totalorder %s15, 0
    %p84 = por %p82, %p83
    %s85 = ssub.s32 %s9, %s16
    %p86 = scmp.eq.s32.totalorder %s85, 0
    %s88 = sadd.s32 %s87, 1
    %s89 = scalar_select %p86, %s87, %s88
    %p92 = pneg %p86
    %p93 = scmp.eq.s32.totalorder %s9, 1
    %p94 = por %p92, %p93
    %p95 = scmp.ne.s32.totalorder %s87, %s90
    %p96 = scmp.eq.s32.totalorder %s9, 0
    %p97 = por %p95, %p96
    %p98 = scmp.ne.s32.totalorder %s87, %s90
    %p99 = scmp.eq.s32.totalorder %s14, 1
    %p100 = por %p98, %p99
    %p101 = scmp.ne.s32.totalorder %s90, %s91
    %p102 = scmp.eq.s32.totalorder %s14, 0
    %p103 = por %p101, %p102
    %p104 = scmp.ne.s32.totalorder %s90, %s91
    %p105 = scmp.eq.s32.totalorder %s15, 1
    %p106 = por %p104, %p105
    %p108 = scmp.ne.s32.totalorder %s91, %s107
    %p109 = scmp.eq.s32.totalorder %s15, 0
    %p110 = por %p108, %p109
    %p111 = scmp.le.s32.totalorder 1, %s9
    %p112 = scmp.lt.s32.totalorder %s9, 3
    %p113 = pnand %p111, %p112
    %p114 = pneg %p113
    // Predicated region
    $region9: #{_forward_impl.6} parent=5 // pred_check
      _
    $region10: #{_forward_impl.6} parent=5 // pred_check_branch
      %116 = sbr.rel (%p113) target = $region12
    $region11: #{_forward_impl.6} parent=5 // pred_region
      %s117 = ssub.s32 %s9, 1
      // Predicated region
      $region13: #{_forward_impl.6} parent=11 // pred_check
        %p118 = pneg %p56
      $region14: #{_forward_impl.6} parent=11 // pred_check_branch
        %120 = sbr.rel (%p118) target = $region16
      $region15: #{_forward_impl.6} parent=11 // pred_region
        _
      $region16: #{_forward_impl.6} parent=11 // pred_fallthru
        _
      // Predicated region
      $region17: #{_forward_impl.6} parent=11 // pred_check
        %p121 = pneg %p77
      $region18: #{_forward_impl.6} parent=11 // pred_check_branch
        %123 = sbr.rel (%p121) target = $region20
      $region19: #{_forward_impl.6} parent=11 // pred_region
        _
      $region20: #{_forward_impl.6} parent=11 // pred_fallthru
        _
    $region12: #{_forward_impl.6} parent=5 // pred_fallthru
      _
    %p124 = scmp.lt.s32.totalorder %s9, 2
    // Predicated region
    $region21: #{_forward_impl.6} parent=5 // pred_check
      %p125 = pneg %p124
    $region22: #{_forward_impl.6} parent=5 // pred_check_branch
      %127 = sbr.rel (%p125) target = $region24
    $region23: #{_forward_impl.6} parent=5 // pred_region
      // Predicated region
      $region25: #{_forward_impl.6} parent=23 // pred_check
        %p128 = pneg %p29
      $region26: #{_forward_impl.6} parent=23 // pred_check_branch
        %130 = sbr.rel (%p128) target = $region28
      $region27: #{_forward_impl.6} parent=23 // pred_region
        %s131 = smul.u32 8, %s9
        %p132 = scmp.lt.s32.totalorder %s131, 15
        %s133 = scalar_select %p132, %s131, 15
        %s134 = smul.addr %s133, 4
        %s135 = scalar_lea.vmem %s0, %s134
        %s136 = smul.u32 8, %s9
      $region28: #{_forward_impl.6} parent=23 // pred_fallthru
        _
    $region24: #{_forward_impl.6} parent=5 // pred_fallthru
      _
    %p137 = scmp.le.s32.totalorder 1, %s9
    %p138 = scmp.lt.s32.totalorder %s9, 3
    %p139 = pnand %p137, %p138
    %p140 = pneg %p139
    // Predicated region
    $region29: #{_forward_impl.6} parent=5 // pred_check
      _
    $region30: #{_forward_impl.6} parent=5 // pred_check_branch
      %142 = sbr.rel (%p139) target = $region32
    $region31: #{_forward_impl.6} parent=5 // pred_region
      %s143 = ssub.s32 %s9, 1
      %s144 = smul.u32 8, %s14
      %p145 = scmp.lt.s32.totalorder %s144, 15
      %s146 = scalar_select %p145, %s144, 15
      %s147 = smul.addr %s146, 4
      %s148 = scalar_lea.vmem %s0, %s147
      %p149 = pneg %p35
      %p150 = pneg %p32
      %p151 = pneg %p56
      %p152 = pneg %p53
      %p153 = pneg %p77
      %p154 = pneg %p74
      %p155 = pneg %p103
      %p156 = pneg %p100
      %s157 = smul.u32 8, %s14
      %p158 = scmp.lt.s32.totalorder %s157, 15
      %s159 = scalar_select %p158, %s157, 15
      %s160 = smul.addr %s159, 4
      %s161 = scalar_lea.vmem %s3, %s160
      %s162 = smul.u32 8, %s14
      %p163 = scmp.lt.s32.totalorder %s162, 15
      %s164 = scalar_select %p163, %s162, 15
      %s165 = smul.addr %s164, 4
      %s166 = scalar_lea.vmem %s0, %s165
      %s167 = smul.u32 8, %s14
      %s168 = smul.u32 8, %s14
      %p169 = scmp.lt.s32.totalorder %s168, 15
      %s170 = scalar_select %p169, %s168, 15
      %s171 = smul.addr %s170, 4
      %s172 = scalar_lea.vmem %s3, %s171
      %s173 = smul.u32 8, %s14
      %v175 = vld [vmem:[%s166] sm:$0xf]
      %v176 = vld [vmem:[%s166 + $0x4] sm:$0xf]
      %v177 = vld [vmem:[%s166 + $0x8] sm:$0xf]
      %v178 = vld [vmem:[%s166 + $0xc] sm:$0xf]
      %v179 = vld [vmem:[%s166 + $0x10] sm:$0xf]
      %v180 = vld [vmem:[%s166 + $0x14] sm:$0xf]
      %v181 = vld [vmem:[%s166 + $0x18] sm:$0xf]
      %v182 = vld [vmem:[%s166 + $0x1c] sm:$0xf]
      %v183 = vld [vmem:[%s1] sm:$0xf]
      %v184 = vld [vmem:[%s1 + $0x4] sm:$0xf]
      %v185 = vld [vmem:[%s1 + $0x8] sm:$0xf]
      %v186 = vld [vmem:[%s1 + $0xc] sm:$0x3]
      %v187 = vld [vmem:[%s2] sm:$0x1]
      %v189 = vlaneseq
      %v190 = vshrl.u32 %v189, 7
      %v191 = vsub.s32 0, %v190
      %v192 = vrot.slane %v187, %v191
      %v202 = vunpack.c.l.b16 %v175
      %v203 = vunpack.c.l.b16 %v176
      %v204 = vunpack.c.l.b16 %v177
      %v205 = vunpack.c.l.b16 %v178
      %v206 = vunpack.c.l.b16 %v179
      %v207 = vunpack.c.l.b16 %v180
      %v208 = vunpack.c.l.b16 %v181
      %v209 = vunpack.c.l.b16 %v182
      %v210 = vpack.c.b16 %v203, %v202
      %v211 = vpack.c.b16 %v205, %v204
      %v212 = vpack.c.b16 %v207, %v206
      %v213 = vpack.c.b16 %v209, %v208
      %v218 = vunpack.c.l.b16 %v183
      %v219 = vunpack.c.l.b16 %v184
      %v220 = vunpack.c.l.b16 %v185
      %v221 = vunpack.c.l.b16 %v186
      %v222 = vpack.c.b16 %v219, %v218
      %v223 = vpack.c.b16 %v221, %v220
      %vm225 = vcmask 220160
      %v227 = vsel %vm225, %v210, 0
      %v230 = vsel %vm225, %v211, 0
      %v233 = vsel %vm225, %v212, 0
      %v236 = vsel %vm225, %v213, 0
      %vm238 = vcmask 1044480
      %vm239 = vcmask 1045504
      %v240 = vsel %vm238, 4294967295, 65535
      %v241 = vsel %vm239, %v240, 0
      %v243 = vand.u32 %v223, %v241
      %245 = vmatprep.subr.bf16.mxu0 0
      %246 = vmatpush1.bf16.msra.mxu0 %v222
      %247 = vmatprep.subr.bf16.mxu0 0
      %248 = vmatpush1.bf16.msra.mxu0 %v243
      %249 = vmatprep.subr.bf16.mxu0 0
      %250 = vmatpush1.bf16.msra.mxu0 0
      %251 = vmatprep.subr.bf16.mxu0 0
      %252 = vmatpush1.bf16.msra.mxu0 0
      %253 = vmatprep.subr.bf16.mxu0 0
      %254 = vmatpush1.bf16.msra.mxu0 0
      %255 = vmatprep.subr.bf16.mxu0 0
      %256 = vmatpush1.bf16.msra.mxu0 0
      %257 = vmatprep.subr.bf16.mxu0 0
      %258 = vmatpush1.bf16.msra.mxu0 0
      %259 = vmatprep.subr.bf16.mxu0 0
      %260 = vmatpush1.bf16.msra.mxu0 0
      %261 = vmatprep.subr.bf16.mxu0 0
      %262 = vmatpush1.bf16.msra.mxu0 0
      %263 = vmatprep.subr.bf16.mxu0 0
      %264 = vmatpush1.bf16.msra.mxu0 0
      %265 = vmatprep.subr.bf16.mxu0 0
      %266 = vmatpush1.bf16.msra.mxu0 0
      %267 = vmatprep.subr.bf16.mxu0 0
      %268 = vmatpush1.bf16.msra.mxu0 0
      %269 = vmatprep.subr.bf16.mxu0 0
      %270 = vmatpush1.bf16.msra.mxu0 0
      %271 = vmatprep.subr.bf16.mxu0 0
      %272 = vmatpush1.bf16.msra.mxu0 0
      %273 = vmatprep.subr.bf16.mxu0 0
      %274 = vmatpush1.bf16.msra.mxu0 0
      %275 = vmatprep.subr.bf16.mxu0 0
      %276 = vmatpush1.bf16.msra.mxu0 0
      %277 = vmatprep.mubr.bf16.mxu0 0
      %278 = vmatmul.mubr.bf16.gmra.mrb[0].mxu0 %v227
      %v279 = vpop.f32.mrb[0].mxu0
      %v280 = vadd.f32 %v192, %v279
      %v281 = vpop.f32.mrb[0].mxu0
      %v282 = vpop.f32.mrb[0].mxu0
      %v283 = vadd.f32 %v192, %v282
      %v284 = vpop.f32.mrb[0].mxu0
      %285 = vmatprep.mubr.bf16.mxu0 0
      %286 = vmatmul.mubr.bf16.gmra.mrb[0].mxu0 %v230
      %v287 = vpop.f32.mrb[0].mxu0
      %v288 = vadd.f32 %v192, %v287
      %v289 = vpop.f32.mrb[0].mxu0
      %v290 = vpop.f32.mrb[0].mxu0
      %v291 = vadd.f32 %v192, %v290
      %v292 = vpop.f32.mrb[0].mxu0
      %293 = vmatprep.mubr.bf16.mxu0 0
      %294 = vmatmul.mubr.bf16.gmra.mrb[0].mxu0 %v233
      %v295 = vpop.f32.mrb[0].mxu0
      %v296 = vadd.f32 %v192, %v295
      %v297 = vpop.f32.mrb[0].mxu0
      %v298 = vpop.f32.mrb[0].mxu0
      %v299 = vadd.f32 %v192, %v298
      %v300 = vpop.f32.mrb[0].mxu0
      %301 = vmatprep.mubr.bf16.mxu0 0
      %302 = vmatmul.mubr.bf16.gmra.mrb[0].mxu0 %v236
      %v303 = vpop.f32.mrb[0].mxu0
      %v304 = vadd.f32 %v192, %v303
      %v305 = vpop.f32.mrb[0].mxu0
      %v306 = vpop.f32.mrb[0].mxu0
      %v307 = vadd.f32 %v192, %v306
      %v308 = vpop.f32.mrb[0].mxu0
      %309 = vdwg.mxu0
      %v310 = vmax.f32 %v280, 0.0
      %v311 = vmax.f32 %v283, 0.0
      %v312 = vmax.f32 %v288, 0.0
      %v313 = vmax.f32 %v291, 0.0
      %v314 = vmax.f32 %v296, 0.0
      %v315 = vmax.f32 %v299, 0.0
      %v316 = vmax.f32 %v304, 0.0
      %v317 = vmax.f32 %v307, 0.0
      %v318 = vpack.c.bf16 %v311, %v310
      %v319 = vpack.c.bf16 %v313, %v312
      %v320 = vpack.c.bf16 %v315, %v314
      %v321 = vpack.c.bf16 %v317, %v316
      %v326 = vunpack.c.l.b16 %v318
      %v327 = vunpack.c.h.b16 %v318
      %v328 = vunpack.c.l.b16 %v319
      %v329 = vunpack.c.h.b16 %v319
      %v330 = vunpack.c.l.b16 %v320
      %v331 = vunpack.c.h.b16 %v320
      %v332 = vunpack.c.l.b16 %v321
      %v333 = vunpack.c.h.b16 %v321
      %v334 = vpack.c.b16 %v326, %v326
      %v335 = vpack.c.b16 %v327, %v327
      %v336 = vpack.c.b16 %v328, %v328
      %v337 = vpack.c.b16 %v329, %v329
      %v338 = vpack.c.b16 %v330, %v330
      %v339 = vpack.c.b16 %v331, %v331
      %v340 = vpack.c.b16 %v332, %v332
      %v341 = vpack.c.b16 %v333, %v333
      %vm350 = vcmask 125952
      %351 = vst.msk [vmem:[%s172] sm:$0xf] %vm350, %v334
      %352 = vst.msk [vmem:[%s172 + $0x4] sm:$0xf] %vm350, %v335
      %353 = vst.msk [vmem:[%s172 + $0x8] sm:$0xf] %vm350, %v336
      %354 = vst.msk [vmem:[%s172 + $0xc] sm:$0xf] %vm350, %v337
      %355 = vst.msk [vmem:[%s172 + $0x10] sm:$0xf] %vm350, %v338
      %356 = vst.msk [vmem:[%s172 + $0x14] sm:$0xf] %vm350, %v339
      %357 = vst.msk [vmem:[%s172 + $0x18] sm:$0xf] %vm350, %v340
      %358 = vst.msk [vmem:[%s172 + $0x1c] sm:$0xf] %vm350, %v341
      %s359 = smul.u32 8, %s14
      %p360 = scmp.lt.s32.totalorder %s359, 15
      %s361 = scalar_select %p360, %s359, 15
      %s362 = smul.addr %s361, 4
      %s363 = scalar_lea.vmem %s3, %s362
      // Predicated region
      $region33: #{_forward_impl.6} parent=31 // pred_check
        %p364 = pneg %p100
      $region34: #{_forward_impl.6} parent=31 // pred_check_branch
        %366 = sbr.rel (%p364) target = $region36
      $region35: #{_forward_impl.6} parent=31 // pred_region
        %s367 = smul.u32 8, %s14
      $region36: #{_forward_impl.6} parent=31 // pred_fallthru
        _
    $region32: #{_forward_impl.6} parent=5 // pred_fallthru
      _
    %p368 = scmp.le.s32.totalorder 2, %s9
    // Predicated region
    $region37: #{_forward_impl.6} parent=5 // pred_check
      %p369 = pneg %p368
    $region38: #{_forward_impl.6} parent=5 // pred_check_branch
      %371 = sbr.rel (%p369) target = $region40
    $region39: #{_forward_impl.6} parent=5 // pred_region
      %s372 = ssub.s32 %s9, 2
      // Predicated region
      $region41: #{_forward_impl.6} parent=39 // pred_check
        %p373 = pneg %p106
      $region42: #{_forward_impl.6} parent=39 // pred_check_branch
        %375 = sbr.rel (%p373) target = $region44
      $region43: #{_forward_impl.6} parent=39 // pred_region
        %s376 = smul.u32 8, %s15
        %p377 = scmp.lt.s32.totalorder %s376, 15
        %s378 = scalar_select %p377, %s376, 15
        %s379 = smul.addr %s378, 4
        %s380 = scalar_lea.vmem %s3, %s379
      $region44: #{_forward_impl.6} parent=39 // pred_fallthru
        _
    $region40: #{_forward_impl.6} parent=5 // pred_fallthru
      _
  $region6: #{_forward_impl.6} parent=0 // loop_footer
    %s13 = sadd.s32 1, %s9
  $region7: #{_forward_impl.6} parent=0 // loop_footer_branch
    %8 = sbr.rel target = $region3
  $region8: #{_forward_impl.6} parent=0 // loop_exit
    _

// kernel: _forward_impl.7
$region0: #{_forward_impl.7}
  #allocation0 [shape = 'u32[]', space=smem, size = 0x4, offset = 0x4, fixed_abs, tag = 'smem constant byte address 0x4 - core index']
  #allocation1 [shape = 'u32[144,128]{1,0:T(1,128)}', space=vmem, size = 0x12000, scoped, tag = 'internal scratch']
  %s0 = inlined_call_operand.vmem [shape: bf16[32,144], index: 0, kind: input, shape index: {}]
  %s1 = inlined_call_operand.vmem [shape: bf16[144,32], index: 1, kind: input, shape index: {}]
  %s2 = inlined_call_operand.vmem [shape: f32[1,32], index: 2, kind: input, shape index: {}]
  %s3 = inlined_call_operand.vmem [shape: bf16[32,32], index: 3, kind: output, shape index: {}]
  %s4 = sld [smem:[#allocation0]]
  $region45: #{_forward_impl.7} parent=0
    _
  %s6 = ssub.s32 1, %s4
  %s7 = scalar_select 0, %s6, %s4
  loop: start=0, step=1, limit=4
  $region2: #{_forward_impl.7} parent=0 // loop_pre_header
    _
  $region3: #{_forward_impl.7} parent=0 // loop_header
    %s9 = sphi 0, %s13
    %p10 = scmp.ge.s32.totalorder %s9, 4
    %s19 = sphi 0, %s21
    %s22 = sphi 0, %s19
    %s23 = sphi 0, %s22
    %s39 = sphi 0, %s23
    %s43 = sphi 0, %s43
    %s45 = sphi 0, %s43
    %s46 = sphi 0, %s45
    %s60 = sphi 0, %s46
    %s64 = sphi 0, %s64
    %s66 = sphi 0, %s64
    %s67 = sphi 0, %s66
    %s81 = sphi 0, %s67
    %s87 = sphi 0, %s89
    %s90 = sphi 0, %s87
    %s91 = sphi 0, %s90
    %s107 = sphi 0, %s91
  $region4: #{_forward_impl.7} parent=0 // loop_header_branch
    %12 = sbr.rel (%p10) target = $region8
  $region5: #{_forward_impl.7} parent=0 // loop_body
    %s14 = ssub.s32 %s9, 1
    %s15 = ssub.s32 %s9, 2
    %s16 = sadd.s32 %s9, 1
    %s17 = ssub.s32 %s9, %s16
    %p18 = scmp.eq.s32.totalorder %s17, 0
    %s20 = sadd.s32 %s19, 1
    %s21 = scalar_select %p18, %s19, %s20
    %p24 = pneg %p18
    %p25 = scmp.eq.s32.totalorder %s9, 1
    %p26 = por %p24, %p25
    %p27 = scmp.ne.s32.totalorder %s19, %s22
    %p28 = scmp.eq.s32.totalorder %s9, 0
    %p29 = por %p27, %p28
    %p30 = scmp.ne.s32.totalorder %s19, %s22
    %p31 = scmp.eq.s32.totalorder %s14, 1
    %p32 = por %p30, %p31
    %p33 = scmp.ne.s32.totalorder %s22, %s23
    %p34 = scmp.eq.s32.totalorder %s14, 0
    %p35 = por %p33, %p34
    %p36 = scmp.ne.s32.totalorder %s22, %s23
    %p37 = scmp.eq.s32.totalorder %s15, 1
    %p38 = por %p36, %p37
    %p40 = scmp.ne.s32.totalorder %s23, %s39
    %p41 = scmp.eq.s32.totalorder %s15, 0
    %p42 = por %p40, %p41
    %s44 = sadd.s32 %s43, 1
    %p47 = scmp.eq.s32.totalorder %s9, 1
    %p48 = scmp.ne.s32.totalorder %s43, %s45
    %p49 = scmp.eq.s32.totalorder %s9, 0
    %p50 = por %p48, %p49
    %p51 = scmp.ne.s32.totalorder %s43, %s45
    %p52 = scmp.eq.s32.totalorder %s14, 1
    %p53 = por %p51, %p52
    %p54 = scmp.ne.s32.totalorder %s45, %s46
    %p55 = scmp.eq.s32.totalorder %s14, 0
    %p56 = por %p54, %p55
    %p57 = scmp.ne.s32.totalorder %s45, %s46
    %p58 = scmp.eq.s32.totalorder %s15, 1
    %p59 = por %p57, %p58
    %p61 = scmp.ne.s32.totalorder %s46, %s60
    %p62 = scmp.eq.s32.totalorder %s15, 0
    %p63 = por %p61, %p62
    %s65 = sadd.s32 %s64, 1
    %p68 = scmp.eq.s32.totalorder %s9, 1
    %p69 = scmp.ne.s32.totalorder %s64, %s66
    %p70 = scmp.eq.s32.totalorder %s9, 0
    %p71 = por %p69, %p70
    %p72 = scmp.ne.s32.totalorder %s64, %s66
    %p73 = scmp.eq.s32.totalorder %s14, 1
    %p74 = por %p72, %p73
    %p75 = scmp.ne.s32.totalorder %s66, %s67
    %p76 = scmp.eq.s32.totalorder %s14, 0
    %p77 = por %p75, %p76
    %p78 = scmp.ne.s32.totalorder %s66, %s67
    %p79 = scmp.eq.s32.totalorder %s15, 1
    %p80 = por %p78, %p79
    %p82 = scmp.ne.s32.totalorder %s67, %s81
    %p83 = scmp.eq.s32.totalorder %s15, 0
    %p84 = por %p82, %p83
    %s85 = ssub.s32 %s9, %s16
    %p86 = scmp.eq.s32.totalorder %s85, 0
    %s88 = sadd.s32 %s87, 1
    %s89 = scalar_select %p86, %s87, %s88
    %p92 = pneg %p86
    %p93 = scmp.eq.s32.totalorder %s9, 1
    %p94 = por %p92, %p93
    %p95 = scmp.ne.s32.totalorder %s87, %s90
    %p96 = scmp.eq.s32.totalorder %s9, 0
    %p97 = por %p95, %p96
    %p98 = scmp.ne.s32.totalorder %s87, %s90
    %p99 = scmp.eq.s32.totalorder %s14, 1
    %p100 = por %p98, %p99
    %p101 = scmp.ne.s32.totalorder %s90, %s91
    %p102 = scmp.eq.s32.totalorder %s14, 0
    %p103 = por %p101, %p102
    %p104 = scmp.ne.s32.totalorder %s90, %s91
    %p105 = scmp.eq.s32.totalorder %s15, 1
    %p106 = por %p104, %p105
    %p108 = scmp.ne.s32.totalorder %s91, %s107
    %p109 = scmp.eq.s32.totalorder %s15, 0
    %p110 = por %p108, %p109
    %p111 = scmp.le.s32.totalorder 1, %s9
    %p112 = scmp.lt.s32.totalorder %s9, 3
    %p113 = pnand %p111, %p112
    %p114 = pneg %p113
    // Predicated region
    $region9: #{_forward_impl.7} parent=5 // pred_check
      _
    $region10: #{_forward_impl.7} parent=5 // pred_check_branch
      %116 = sbr.rel (%p113) target = $region12
    $region11: #{_forward_impl.7} parent=5 // pred_region
      %s117 = ssub.s32 %s9, 1
      // Predicated region
      $region13: #{_forward_impl.7} parent=11 // pred_check
        %p118 = pneg %p56
      $region14: #{_forward_impl.7} parent=11 // pred_check_branch
        %120 = sbr.rel (%p118) target = $region16
      $region15: #{_forward_impl.7} parent=11 // pred_region
        _
      $region16: #{_forward_impl.7} parent=11 // pred_fallthru
        _
      // Predicated region
      $region17: #{_forward_impl.7} parent=11 // pred_check
        %p121 = pneg %p77
      $region18: #{_forward_impl.7} parent=11 // pred_check_branch
        %123 = sbr.rel (%p121) target = $region20
      $region19: #{_forward_impl.7} parent=11 // pred_region
        _
      $region20: #{_forward_impl.7} parent=11 // pred_fallthru
        _
    $region12: #{_forward_impl.7} parent=5 // pred_fallthru
      _
    %p124 = scmp.lt.s32.totalorder %s9, 2
    // Predicated region
    $region21: #{_forward_impl.7} parent=5 // pred_check
      %p125 = pneg %p124
    $region22: #{_forward_impl.7} parent=5 // pred_check_branch
      %127 = sbr.rel (%p125) target = $region24
    $region23: #{_forward_impl.7} parent=5 // pred_region
      // Predicated region
      $region25: #{_forward_impl.7} parent=23 // pred_check
        %p128 = pneg %p29
      $region26: #{_forward_impl.7} parent=23 // pred_check_branch
        %130 = sbr.rel (%p128) target = $region28
      $region27: #{_forward_impl.7} parent=23 // pred_region
        %s131 = smul.u32 2, %s9
        %p132 = scmp.lt.s32.totalorder %s131, 3
        %s133 = scalar_select %p132, %s131, 3
        %s134 = smul.addr %s133, 2
        %s135 = smul.addr %s134, 4
        %s136 = scalar_lea.vmem %s0, %s135
        %s137 = smul.u32 2, %s9
      $region28: #{_forward_impl.7} parent=23 // pred_fallthru
        _
    $region24: #{_forward_impl.7} parent=5 // pred_fallthru
      _
    %p138 = scmp.le.s32.totalorder 1, %s9
    %p139 = scmp.lt.s32.totalorder %s9, 3
    %p140 = pnand %p138, %p139
    %p141 = pneg %p140
    // Predicated region
    $region29: #{_forward_impl.7} parent=5 // pred_check
      _
    $region30: #{_forward_impl.7} parent=5 // pred_check_branch
      %143 = sbr.rel (%p140) target = $region32
    $region31: #{_forward_impl.7} parent=5 // pred_region
      %s144 = ssub.s32 %s9, 1
      %s145 = smul.u32 2, %s14
      %p146 = scmp.lt.s32.totalorder %s145, 3
      %s147 = scalar_select %p146, %s145, 3
      %s148 = smul.addr %s147, 2
      %s149 = smul.addr %s148, 4
      %s150 = scalar_lea.vmem %s0, %s149
      %p151 = pneg %p35
      %p152 = pneg %p32
      %p153 = pneg %p56
      %p154 = pneg %p53
      %p155 = pneg %p77
      %p156 = pneg %p74
      %p157 = pneg %p103
      %p158 = pneg %p100
      %s159 = smul.u32 2, %s14
      %p160 = scmp.lt.s32.totalorder %s159, 3
      %s161 = scalar_select %p160, %s159, 3
      %s162 = smul.addr %s161, 4
      %s163 = scalar_lea.vmem %s3, %s162
      %s164 = smul.u32 2, %s14
      %p165 = scmp.lt.s32.totalorder %s164, 3
      %s166 = scalar_select %p165, %s164, 3
      %s167 = smul.addr %s166, 2
      %s168 = smul.addr %s167, 4
      %s169 = scalar_lea.vmem %s0, %s168
      %s170 = smul.u32 2, %s14
      %s171 = smul.u32 2, %s14
      %p172 = scmp.lt.s32.totalorder %s171, 3
      %s173 = scalar_select %p172, %s171, 3
      %s174 = smul.addr %s173, 4
      %s175 = scalar_lea.vmem %s3, %s174
      %s176 = smul.u32 2, %s14
      %v178 = vld [vmem:[%s169] sm:$0xff]
      %v179 = vld [vmem:[%s169 + $0x8] sm:$0xff]
      %v180 = vld [vmem:[%s1] sm:$0xf]
      %v181 = vld [vmem:[%s1 + $0x4] sm:$0xf]
      %v182 = vld [vmem:[%s1 + $0x8] sm:$0xf]
      %v183 = vld [vmem:[%s1 + $0xc] sm:$0xf]
      %v184 = vld [vmem:[%s1 + $0x10] sm:$0xf]
      %v185 = vld [vmem:[%s1 + $0x14] sm:$0xf]
      %v186 = vld [vmem:[%s1 + $0x18] sm:$0xf]
      %v187 = vld [vmem:[%s1 + $0x1c] sm:$0xf]
      %v188 = vld [vmem:[%s1 + $0x20] sm:$0xf]
      %v189 = vld [vmem:[%s1 + $0x24] sm:$0xf]
      %v190 = vld [vmem:[%s1 + $0x28] sm:$0xf]
      %v191 = vld [vmem:[%s1 + $0x2c] sm:$0xf]
      %v192 = vld [vmem:[%s1 + $0x30] sm:$0xf]
      %v193 = vld [vmem:[%s1 + $0x34] sm:$0xf]
      %v194 = vld [vmem:[%s1 + $0x38] sm:$0xf]
      %v195 = vld [vmem:[%s1 + $0x3c] sm:$0xf]
      %v196 = vld [vmem:[%s1 + $0x40] sm:$0xf]
      %v197 = vld [vmem:[%s1 + $0x44] sm:$0xf]
      %v198 = vld [vmem:[%s2] sm:$0x1]
      %v200 = vlaneseq
      %v201 = vshrl.u32 %v200, 7
      %v202 = vsub.s32 0, %v201
      %v203 = vrot.slane %v198, %v202
      %v207 = vunpack.c.l.b16 %v178
      %v208 = vunpack.c.h.b16 %v178
      %v209 = vunpack.c.l.b16 %v179
      %v210 = vunpack.c.h.b16 %v179
      %v211 = vpack.c.b16 %v209, %v207
      %v212 = vpack.c.b16 %v210, %v208
      %v232 = vunpack.c.l.b16 %v180
      %v233 = vunpack.c.l.b16 %v181
      %v234 = vunpack.c.l.b16 %v182
      %v235 = vunpack.c.l.b16 %v183
      %v236 = vunpack.c.l.b16 %v184
      %v237 = vunpack.c.l.b16 %v185
      %v238 = vunpack.c.l.b16 %v186
      %v239 = vunpack.c.l.b16 %v187
      %v240 = vunpack.c.l.b16 %v188
      %v241 = vunpack.c.l.b16 %v189
      %v242 = vunpack.c.l.b16 %v190
      %v243 = vunpack.c.l.b16 %v191
      %v244 = vunpack.c.l.b16 %v192
      %v245 = vunpack.c.l.b16 %v193
      %v246 = vunpack.c.l.b16 %v194
      %v247 = vunpack.c.l.b16 %v195
      %v248 = vunpack.c.l.b16 %v196
      %v249 = vunpack.c.l.b16 %v197
      %v250 = vpack.c.b16 %v233, %v232
      %v251 = vpack.c.b16 %v235, %v234
      %v252 = vpack.c.b16 %v237, %v236
      %v253 = vpack.c.b16 %v239, %v238
      %v254 = vpack.c.b16 %v241, %v240
      %v255 = vpack.c.b16 %v243, %v242
      %v256 = vpack.c.b16 %v245, %v244
      %v257 = vpack.c.b16 %v247, %v246
      %v258 = vpack.c.b16 %v249, %v248
      %vm268 = vcmask 130048
      %v270 = vsel %vm268, %v212, 0
      %272 = vmatprep.subr.bf16.mxu0 0
      %273 = vmatpush1.bf16.msra.mxu0 %v250
      %274 = vmatprep.subr.bf16.mxu0 0
      %275 = vmatpush1.bf16.msra.mxu0 %v251
      %276 = vmatprep.subr.bf16.mxu0 0
      %277 = vmatpush1.bf16.msra.mxu0 %v252
      %278 = vmatprep.subr.bf16.mxu0 0
      %279 = vmatpush1.bf16.msra.mxu0 %v253
      %280 = vmatprep.subr.bf16.mxu0 0
      %281 = vmatpush1.bf16.msra.mxu0 %v254
      %282 = vmatprep.subr.bf16.mxu0 0
      %283 = vmatpush1.bf16.msra.mxu0 %v255
      %284 = vmatprep.subr.bf16.mxu0 0
      %285 = vmatpush1.bf16.msra.mxu0 %v256
      %286 = vmatprep.subr.bf16.mxu0 0
      %287 = vmatpush1.bf16.msra.mxu0 %v257
      %288 = vmatprep.subr.bf16.mxu0 0
      %289 = vmatpush1.bf16.msra.mxu0 %v258
      %290 = vmatprep.subr.bf16.mxu0 0
      %291 = vmatpush1.bf16.msra.mxu0 0
      %292 = vmatprep.subr.bf16.mxu0 0
      %293 = vmatpush1.bf16.msra.mxu0 0
      %294 = vmatprep.subr.bf16.mxu0 0
      %295 = vmatpush1.bf16.msra.mxu0 0
      %296 = vmatprep.subr.bf16.mxu0 0
      %297 = vmatpush1.bf16.msra.mxu0 0
      %298 = vmatprep.subr.bf16.mxu0 0
      %299 = vmatpush1.bf16.msra.mxu0 0
      %300 = vmatprep.subr.bf16.mxu0 0
      %301 = vmatpush1.bf16.msra.mxu0 0
      %302 = vmatprep.subr.bf16.mxu0 0
      %303 = vmatpush1.bf16.msra.mxu0 0
      %304 = vmatprep.mubr.bf16.mxu0 %v270
      %305 = vmatmul.mubr.bf16.gmra.mrb[0].mxu0 %v211
      %v306 = vpop.f32.mrb[0].mxu0
      %v307 = vadd.f32 %v203, %v306
      %v308 = vpop.f32.mrb[0].mxu0
      %v309 = vpop.f32.mrb[0].mxu0
      %v310 = vadd.f32 %v203, %v309
      %v311 = vpop.f32.mrb[0].mxu0
      %312 = vdwg.mxu0
      %v313 = vmax.f32 %v307, 0.0
      %v314 = vmax.f32 %v310, 0.0
      %v315 = vpack.c.bf16 %v314, %v313
      %v317 = vunpack.c.l.b16 %v315
      %v318 = vunpack.c.h.b16 %v315
      %v319 = vpack.c.b16 %v317, %v317
      %v320 = vpack.c.b16 %v318, %v318
      %vm323 = vcmask 257024
      %324 = vst.msk [vmem:[%s175] sm:$0xf] %vm323, %v319
      %325 = vst.msk [vmem:[%s175 + $0x4] sm:$0xf] %vm323, %v320
      %s326 = smul.u32 2, %s14
      %p327 = scmp.lt.s32.totalorder %s326, 3
      %s328 = scalar_select %p327, %s326, 3
      %s329 = smul.addr %s328, 4
      %s330 = scalar_lea.vmem %s3, %s329
      // Predicated region
      $region33: #{_forward_impl.7} parent=31 // pred_check
        %p331 = pneg %p100
      $region34: #{_forward_impl.7} parent=31 // pred_check_branch
        %333 = sbr.rel (%p331) target = $region36
      $region35: #{_forward_impl.7} parent=31 // pred_region
        %s334 = smul.u32 2, %s14
      $region36: #{_forward_impl.7} parent=31 // pred_fallthru
        _
    $region32: #{_forward_impl.7} parent=5 // pred_fallthru
      _
    %p335 = scmp.le.s32.totalorder 2, %s9
    // Predicated region
    $region37: #{_forward_impl.7} parent=5 // pred_check
      %p336 = pneg %p335
    $region38: #{_forward_impl.7} parent=5 // pred_check_branch
      %338 = sbr.rel (%p336) target = $region40
    $region39: #{_forward_impl.7} parent=5 // pred_region
      %s339 = ssub.s32 %s9, 2
      // Predicated region
      $region41: #{_forward_impl.7} parent=39 // pred_check
        %p340 = pneg %p106
      $region42: #{_forward_impl.7} parent=39 // pred_check_branch
        %342 = sbr.rel (%p340) target = $region44
      $region43: #{_forward_impl.7} parent=39 // pred_region
        %s343 = smul.u32 2, %s15
        %p344 = scmp.lt.s32.totalorder %s343, 3
        %s345 = scalar_select %p344, %s343, 3
        %s346 = smul.addr %s345, 4
        %s347 = scalar_lea.vmem %s3, %s346
      $region44: #{_forward_impl.7} parent=39 // pred_fallthru
        _
    $region40: #{_forward_impl.7} parent=5 // pred_fallthru
      _
  $region6: #{_forward_impl.7} parent=0 // loop_footer
    %s13 = sadd.s32 1, %s9
  $region7: #{_forward_impl.7} parent=0 // loop_footer_branch
    %8 = sbr.rel target = $region3
  $region8: #{_forward_impl.7} parent=0 // loop_exit
    _

// kernel: _forward_impl.8
$region0: #{_forward_impl.8}
  #allocation0 [shape = 'u32[]', space=smem, size = 0x4, offset = 0x4, fixed_abs, tag = 'smem constant byte address 0x4 - core index']
  #allocation1 [shape = 'u32[144,128]{1,0:T(1,128)}', space=vmem, size = 0x12000, scoped, tag = 'internal scratch']
  %s0 = inlined_call_operand.vmem [shape: bf16[8,288], index: 0, kind: input, shape index: {}]
  %s1 = inlined_call_operand.vmem [shape: bf16[288,64], index: 1, kind: input, shape index: {}]
  %s2 = inlined_call_operand.vmem [shape: f32[1,64], index: 2, kind: input, shape index: {}]
  %s3 = inlined_call_operand.vmem [shape: bf16[8,64], index: 3, kind: output, shape index: {}]
  %s4 = sld [smem:[#allocation0]]
  $region22: #{_forward_impl.8} parent=0
    _
  %s6 = ssub.s32 1, %s4
  %s7 = scalar_select 0, %s6, %s4
  // Predicated region
  $region2: #{_forward_impl.8} parent=0 // pred_check
    _
  $region3: #{_forward_impl.8} parent=0 // pred_check_branch
    %9 = sbr.rel (0) target = $region5
  $region4: #{_forward_impl.8} parent=0 // pred_region
    _
  $region5: #{_forward_impl.8} parent=0 // pred_fallthru
    _
  // Predicated region
  $region6: #{_forward_impl.8} parent=0 // pred_check
    _
  $region7: #{_forward_impl.8} parent=0 // pred_check_branch
    %11 = sbr.rel (0) target = $region9
  $region8: #{_forward_impl.8} parent=0 // pred_region
    _
  $region9: #{_forward_impl.8} parent=0 // pred_fallthru
    _
  // Predicated region
  $region10: #{_forward_impl.8} parent=0 // pred_check
    _
  $region11: #{_forward_impl.8} parent=0 // pred_check_branch
    %13 = sbr.rel (0) target = $region13
  $region12: #{_forward_impl.8} parent=0 // pred_region
    _
  $region13: #{_forward_impl.8} parent=0 // pred_fallthru
    _
  %v15 = vld [vmem:[%s0] sm:$0xff]
  %v16 = vld [vmem:[%s0 + $0x8] sm:$0xf]
  %v17 = vld [vmem:[%s1] sm:$0xf]
  %v18 = vld [vmem:[%s1 + $0x4] sm:$0xf]
  %v19 = vld [vmem:[%s1 + $0x8] sm:$0xf]
  %v20 = vld [vmem:[%s1 + $0xc] sm:$0xf]
  %v21 = vld [vmem:[%s1 + $0x10] sm:$0xf]
  %v22 = vld [vmem:[%s1 + $0x14] sm:$0xf]
  %v23 = vld [vmem:[%s1 + $0x18] sm:$0xf]
  %v24 = vld [vmem:[%s1 + $0x1c] sm:$0xf]
  %v25 = vld [vmem:[%s1 + $0x20] sm:$0xf]
  %v26 = vld [vmem:[%s1 + $0x24] sm:$0xf]
  %v27 = vld [vmem:[%s1 + $0x28] sm:$0xf]
  %v28 = vld [vmem:[%s1 + $0x2c] sm:$0xf]
  %v29 = vld [vmem:[%s1 + $0x30] sm:$0xf]
  %v30 = vld [vmem:[%s1 + $0x34] sm:$0xf]
  %v31 = vld [vmem:[%s1 + $0x38] sm:$0xf]
  %v32 = vld [vmem:[%s1 + $0x3c] sm:$0xf]
  %v33 = vld [vmem:[%s1 + $0x40] sm:$0xf]
  %v34 = vld [vmem:[%s1 + $0x44] sm:$0xf]
  %v35 = vld [vmem:[%s1 + $0x48] sm:$0xf]
  %v36 = vld [vmem:[%s1 + $0x4c] sm:$0xf]
  %v37 = vld [vmem:[%s1 + $0x50] sm:$0xf]
  %v38 = vld [vmem:[%s1 + $0x54] sm:$0xf]
  %v39 = vld [vmem:[%s1 + $0x58] sm:$0xf]
  %v40 = vld [vmem:[%s1 + $0x5c] sm:$0xf]
  %v41 = vld [vmem:[%s1 + $0x60] sm:$0xf]
  %v42 = vld [vmem:[%s1 + $0x64] sm:$0xf]
  %v43 = vld [vmem:[%s1 + $0x68] sm:$0xf]
  %v44 = vld [vmem:[%s1 + $0x6c] sm:$0xf]
  %v45 = vld [vmem:[%s1 + $0x70] sm:$0xf]
  %v46 = vld [vmem:[%s1 + $0x74] sm:$0xf]
  %v47 = vld [vmem:[%s1 + $0x78] sm:$0xf]
  %v48 = vld [vmem:[%s1 + $0x7c] sm:$0xf]
  %v49 = vld [vmem:[%s1 + $0x80] sm:$0xf]
  %v50 = vld [vmem:[%s1 + $0x84] sm:$0xf]
  %v51 = vld [vmem:[%s1 + $0x88] sm:$0xf]
  %v52 = vld [vmem:[%s1 + $0x8c] sm:$0xf]
  %v53 = vld [vmem:[%s2] sm:$0x1]
  %v55 = vlaneseq
  %v56 = vshrl.u32 %v55, 7
  %v57 = vsub.s32 0, %v56
  %v58 = vrot.slane %v53, %v57
  %v62 = vunpack.c.l.b16 %v15
  %v63 = vunpack.c.h.b16 %v15
  %v64 = vunpack.c.l.b16 %v16
  %v65 = vpack.c.b16 %v62, %v62
  %v66 = vpack.c.b16 %v63, %v63
  %v67 = vpack.c.b16 %v64, %v64
  %v106 = vunpack.c.l.b16 %v17
  %v107 = vunpack.c.l.b16 %v18
  %v108 = vunpack.c.l.b16 %v19
  %v109 = vunpack.c.l.b16 %v20
  %v110 = vunpack.c.l.b16 %v21
  %v111 = vunpack.c.l.b16 %v22
  %v112 = vunpack.c.l.b16 %v23
  %v113 = vunpack.c.l.b16 %v24
  %v114 = vunpack.c.l.b16 %v25
  %v115 = vunpack.c.l.b16 %v26
  %v116 = vunpack.c.l.b16 %v27
  %v117 = vunpack.c.l.b16 %v28
  %v118 = vunpack.c.l.b16 %v29
  %v119 = vunpack.c.l.b16 %v30
  %v120 = vunpack.c.l.b16 %v31
  %v121 = vunpack.c.l.b16 %v32
  %v122 = vunpack.c.l.b16 %v33
  %v123 = vunpack.c.l.b16 %v34
  %v124 = vunpack.c.l.b16 %v35
  %v125 = vunpack.c.l.b16 %v36
  %v126 = vunpack.c.l.b16 %v37
  %v127 = vunpack.c.l.b16 %v38
  %v128 = vunpack.c.l.b16 %v39
  %v129 = vunpack.c.l.b16 %v40
  %v130 = vunpack.c.l.b16 %v41
  %v131 = vunpack.c.l.b16 %v42
  %v132 = vunpack.c.l.b16 %v43
  %v133 = vunpack.c.l.b16 %v44
  %v134 = vunpack.c.l.b16 %v45
  %v135 = vunpack.c.l.b16 %v46
  %v136 = vunpack.c.l.b16 %v47
  %v137 = vunpack.c.l.b16 %v48
  %v138 = vunpack.c.l.b16 %v49
  %v139 = vunpack.c.l.b16 %v50
  %v140 = vunpack.c.l.b16 %v51
  %v141 = vunpack.c.l.b16 %v52
  %v142 = vpack.c.b16 %v107, %v106
  %v143 = vpack.c.b16 %v109, %v108
  %v144 = vpack.c.b16 %v111, %v110
  %v145 = vpack.c.b16 %v113, %v112
  %v146 = vpack.c.b16 %v115, %v114
  %v147 = vpack.c.b16 %v117, %v116
  %v148 = vpack.c.b16 %v119, %v118
  %v149 = vpack.c.b16 %v121, %v120
  %v150 = vpack.c.b16 %v123, %v122
  %v151 = vpack.c.b16 %v125, %v124
  %v152 = vpack.c.b16 %v127, %v126
  %v153 = vpack.c.b16 %v129, %v128
  %v154 = vpack.c.b16 %v131, %v130
  %v155 = vpack.c.b16 %v133, %v132
  %v156 = vpack.c.b16 %v135, %v134
  %v157 = vpack.c.b16 %v137, %v136
  %v158 = vpack.c.b16 %v139, %v138
  %v159 = vpack.c.b16 %v141, %v140
  %vm178 = vcmask 261120
  %v180 = vsel %vm178, %v67, 0
  %182 = vmatprep.subr.bf16.mxu0 0
  %183 = vmatpush1.bf16.msra.mxu0 %v142
  %184 = vmatprep.subr.bf16.mxu0 0
  %185 = vmatpush1.bf16.msra.mxu0 %v143
  %186 = vmatprep.subr.bf16.mxu0 0
  %187 = vmatpush1.bf16.msra.mxu0 %v144
  %188 = vmatprep.subr.bf16.mxu0 0
  %189 = vmatpush1.bf16.msra.mxu0 %v145
  %190 = vmatprep.subr.bf16.mxu0 0
  %191 = vmatpush1.bf16.msra.mxu0 %v146
  %192 = vmatprep.subr.bf16.mxu0 0
  %193 = vmatpush1.bf16.msra.mxu0 %v147
  %194 = vmatprep.subr.bf16.mxu0 0
  %195 = vmatpush1.bf16.msra.mxu0 %v148
  %196 = vmatprep.subr.bf16.mxu0 0
  %197 = vmatpush1.bf16.msra.mxu0 %v149
  %198 = vmatprep.subr.bf16.mxu0 0
  %199 = vmatpush1.bf16.msra.mxu0 %v150
  %200 = vmatprep.subr.bf16.mxu0 0
  %201 = vmatpush1.bf16.msra.mxu0 %v151
  %202 = vmatprep.subr.bf16.mxu0 0
  %203 = vmatpush1.bf16.msra.mxu0 %v152
  %204 = vmatprep.subr.bf16.mxu0 0
  %205 = vmatpush1.bf16.msra.mxu0 %v153
  %206 = vmatprep.subr.bf16.mxu0 0
  %207 = vmatpush1.bf16.msra.mxu0 %v154
  %208 = vmatprep.subr.bf16.mxu0 0
  %209 = vmatpush1.bf16.msra.mxu0 %v155
  %210 = vmatprep.subr.bf16.mxu0 0
  %211 = vmatpush1.bf16.msra.mxu0 %v156
  %212 = vmatprep.subr.bf16.mxu0 0
  %213 = vmatpush1.bf16.msra.mxu0 %v157
  %214 = vmatprep.mubr.bf16.mxu0 %v66
  %215 = vmatmul.mubr.bf16.gmra.mrb[0].mxu0 %v65
  %v216 = vpop.f32.mrb[0].mxu0
  %v217 = vadd.f32 %v58, %v216
  %v218 = vpop.f32.mrb[0].mxu0
  %v219 = vpop.f32.mrb[0].mxu0
  %v220 = vpop.f32.mrb[0].mxu0
  %221 = vdwg.mxu0
  %222 = vmatprep.subr.bf16.mxu0 0
  %223 = vmatpush1.bf16.msra.mxu0 %v158
  %224 = vmatprep.subr.bf16.mxu0 0
  %225 = vmatpush1.bf16.msra.mxu0 %v159
  %226 = vmatprep.subr.bf16.mxu0 0
  %227 = vmatpush1.bf16.msra.mxu0 0
  %228 = vmatprep.subr.bf16.mxu0 0
  %229 = vmatpush1.bf16.msra.mxu0 0
  %230 = vmatprep.subr.bf16.mxu0 0
  %231 = vmatpush1.bf16.msra.mxu0 0
  %232 = vmatprep.subr.bf16.mxu0 0
  %233 = vmatpush1.bf16.msra.mxu0 0
  %234 = vmatprep.subr.bf16.mxu0 0
  %235 = vmatpush1.bf16.msra.mxu0 0
  %236 = vmatprep.subr.bf16.mxu0 0
  %237 = vmatpush1.bf16.msra.mxu0 0
  %238 = vmatprep.subr.bf16.mxu0 0
  %239 = vmatpush1.bf16.msra.mxu0 0
  %240 = vmatprep.subr.bf16.mxu0 0
  %241 = vmatpush1.bf16.msra.mxu0 0
  %242 = vmatprep.subr.bf16.mxu0 0
  %243 = vmatpush1.bf16.msra.mxu0 0
  %244 = vmatprep.subr.bf16.mxu0 0
  %245 = vmatpush1.bf16.msra.mxu0 0
  %246 = vmatprep.subr.bf16.mxu0 0
  %247 = vmatpush1.bf16.msra.mxu0 0
  %248 = vmatprep.subr.bf16.mxu0 0
  %249 = vmatpush1.bf16.msra.mxu0 0
  %250 = vmatprep.subr.bf16.mxu0 0
  %251 = vmatpush1.bf16.msra.mxu0 0
  %252 = vmatprep.subr.bf16.mxu0 0
  %253 = vmatpush1.bf16.msra.mxu0 0
  %254 = vmatprep.mubr.bf16.mxu0 0
  %255 = vmatmul.mubr.bf16.gmra.mrb[0].mxu0 %v180
  %v256 = vpop.f32.mrb[0].mxu0
  %v257 = vadd.f32 %v217, %v256
  %v258 = vpop.f32.mrb[0].mxu0
  %v259 = vpop.f32.mrb[0].mxu0
  %v260 = vpop.f32.mrb[0].mxu0
  %261 = vdwg.mxu0
  %v262 = vmax.f32 %v257, 0.0
  %v263 = vpack.c.bf16 %v262, %v262
  %vm264 = vcmask 519168
  %265 = vst.msk [vmem:[%s3] sm:$0xf] %vm264, %v263
  // Predicated region
  $region14: #{_forward_impl.8} parent=0 // pred_check
    _
  $region15: #{_forward_impl.8} parent=0 // pred_check_branch
    %267 = sbr.rel (0) target = $region17
  $region16: #{_forward_impl.8} parent=0 // pred_region
    _
  $region17: #{_forward_impl.8} parent=0 // pred_fallthru
    _
  // Predicated region
  $region18: #{_forward_impl.8} parent=0 // pred_check
    _
  $region19: #{_forward_impl.8} parent=0 // pred_check_branch
    %269 = sbr.rel (0) target = $region21
  $region20: #{_forward_impl.8} parent=0 // pred_region
    _
  $region21: #{_forward_impl.8} parent=0 // pred_fallthru
    _

// kernel: _forward_impl.9
$region0: #{_forward_impl.9}
  #allocation0 [shape = 'u32[]', space=smem, size = 0x4, offset = 0x4, fixed_abs, tag = 'smem constant byte address 0x4 - core index']
  #allocation1 [shape = 'u32[144,128]{1,0:T(1,128)}', space=vmem, size = 0x12000, scoped, tag = 'internal scratch']
  %s0 = inlined_call_operand.vmem [shape: bf16[2,3,3,64], index: 0, kind: input, shape index: {}]
  %s1 = inlined_call_operand.vmem [shape: bf16[2,1,3,64], index: 1, kind: input, shape index: {}]
  %s2 = inlined_call_operand.vmem [shape: bf16[256,128], index: 2, kind: input, shape index: {}]
  %s3 = inlined_call_operand.vmem [shape: f32[1,128], index: 3, kind: input, shape index: {}]
  %s4 = inlined_call_operand.vmem [shape: bf16[2,2,2,128], index: 4, kind: output, shape index: {}]
  %s5 = sld [smem:[#allocation0]]
  $region49: #{_forward_impl.9} parent=0
    _
  %s7 = ssub.s32 1, %s5
  %s8 = scalar_select 0, %s7, %s5
  loop: start=0, step=1, limit=4
  $region2: #{_forward_impl.9} parent=0 // loop_pre_header
    _
  $region3: #{_forward_impl.9} parent=0 // loop_header
    %s10 = sphi 0, %s14
    %p11 = scmp.ge.s32.totalorder %s10, 4
    %s17 = sphi 0, %s29
    %s18 = sphi 0, %s25
    %s19 = sphi 0, %s17
    %s20 = sphi 0, %s18
    %s21 = sphi 0, %s19
    %s22 = sphi 0, %s20
    %s34 = sphi 0, %s36
    %s37 = sphi 0, %s34
    %s38 = sphi 0, %s37
    %s54 = sphi 0, %s38
    %s62 = sphi 0, %s64
    %s65 = sphi 0, %s62
    %s66 = sphi 0, %s65
    %s82 = sphi 0, %s66
    %s86 = sphi 0, %s86
    %s88 = sphi 0, %s86
    %s89 = sphi 0, %s88
    %s103 = sphi 0, %s89
    %s107 = sphi 0, %s107
    %s109 = sphi 0, %s107
    %s110 = sphi 0, %s109
    %s124 = sphi 0, %s110
    %s132 = sphi 0, %s134
    %s135 = sphi 0, %s132
    %s136 = sphi 0, %s135
    %s152 = sphi 0, %s136
  $region4: #{_forward_impl.9} parent=0 // loop_header_branch
    %13 = sbr.rel (%p11) target = $region8
  $region5: #{_forward_impl.9} parent=0 // loop_body
    %s15 = ssub.s32 %s10, 1
    %s16 = ssub.s32 %s10, 2
    %s23 = sadd.s32 1, %s18
    %p24 = scmp.ge.s32.totalorder %s23, 1
    %s25 = scalar_select %p24, 0, %s23
    %s26 = sadd.s32 1, %s17
    %s27 = scalar_select %p24, %s26, %s17
    %p28 = scmp.ge.s32.totalorder %s27, 2
    %s29 = scalar_select %p28, 0, %s27
    %s30 = ssub.s32 %s17, %s29
    %s31 = ssub.s32 %s18, %s25
    %s32 = sor.u32 %s30, %s31
    %p33 = scmp.eq.s32.totalorder %s32, 0
    %s35 = sadd.s32 %s34, 1
    %s36 = scalar_select %p33, %s34, %s35
    %p39 = pneg %p33
    %p40 = scmp.eq.s32.totalorder %s10, 1
    %p41 = por %p39, %p40
    %p42 = scmp.ne.s32.totalorder %s34, %s37
    %p43 = scmp.eq.s32.totalorder %s10, 0
    %p44 = por %p42, %p43
    %p45 = scmp.ne.s32.totalorder %s34, %s37
    %p46 = scmp.eq.s32.totalorder %s15, 1
    %p47 = por %p45, %p46
    %p48 = scmp.ne.s32.totalorder %s37, %s38
    %p49 = scmp.eq.s32.totalorder %s15, 0
    %p50 = por %p48, %p49
    %p51 = scmp.ne.s32.totalorder %s37, %s38
    %p52 = scmp.eq.s32.totalorder %s16, 1
    %p53 = por %p51, %p52
    %p55 = scmp.ne.s32.totalorder %s38, %s54
    %p56 = scmp.eq.s32.totalorder %s16, 0
    %p57 = por %p55, %p56
    %s58 = ssub.s32 %s17, %s29
    %s59 = ssub.s32 %s18, %s25
    %s60 = sor.u32 %s58, %s59
    %p61 = scmp.eq.s32.totalorder %s60, 0
    %s63 = sadd.s32 %s62, 1
    %s64 = scalar_select %p61, %s62, %s63
    %p67 = pneg %p61
    %p68 = scmp.eq.s32.totalorder %s10, 1
    %p69 = por %p67, %p68
    %p70 = scmp.ne.s32.totalorder %s62, %s65
    %p71 = scmp.eq.s32.totalorder %s10, 0
    %p72 = por %p70, %p71
    %p73 = scmp.ne.s32.totalorder %s62, %s65
    %p74 = scmp.eq.s32.totalorder %s15, 1
    %p75 = por %p73, %p74
    %p76 = scmp.ne.s32.totalorder %s65, %s66
    %p77 = scmp.eq.s32.totalorder %s15, 0
    %p78 = por %p76, %p77
    %p79 = scmp.ne.s32.totalorder %s65, %s66
    %p80 = scmp.eq.s32.totalorder %s16, 1
    %p81 = por %p79, %p80
    %p83 = scmp.ne.s32.totalorder %s66, %s82
    %p84 = scmp.eq.s32.totalorder %s16, 0
    %p85 = por %p83, %p84
    %s87 = sadd.s32 %s86, 1
    %p90 = scmp.eq.s32.totalorder %s10, 1
    %p91 = scmp.ne.s32.totalorder %s86, %s88
    %p92 = scmp.eq.s32.totalorder %s10, 0
    %p93 = por %p91, %p92
    %p94 = scmp.ne.s32.totalorder %s86, %s88
    %p95 = scmp.eq.s32.totalorder %s15, 1
    %p96 = por %p94, %p95
    %p97 = scmp.ne.s32.totalorder %s88, %s89
    %p98 = scmp.eq.s32.totalorder %s15, 0
    %p99 = por %p97, %p98
    %p100 = scmp.ne.s32.totalorder %s88, %s89
    %p101 = scmp.eq.s32.totalorder %s16, 1
    %p102 = por %p100, %p101
    %p104 = scmp.ne.s32.totalorder %s89, %s103
    %p105 = scmp.eq.s32.totalorder %s16, 0
    %p106 = por %p104, %p105
    %s108 = sadd.s32 %s107, 1
    %p111 = scmp.eq.s32.totalorder %s10, 1
    %p112 = scmp.ne.s32.totalorder %s107, %s109
    %p113 = scmp.eq.s32.totalorder %s10, 0
    %p114 = por %p112, %p113
    %p115 = scmp.ne.s32.totalorder %s107, %s109
    %p116 = scmp.eq.s32.totalorder %s15, 1
    %p117 = por %p115, %p116
    %p118 = scmp.ne.s32.totalorder %s109, %s110
    %p119 = scmp.eq.s32.totalorder %s15, 0
    %p120 = por %p118, %p119
    %p121 = scmp.ne.s32.totalorder %s109, %s110
    %p122 = scmp.eq.s32.totalorder %s16, 1
    %p123 = por %p121, %p122
    %p125 = scmp.ne.s32.totalorder %s110, %s124
    %p126 = scmp.eq.s32.totalorder %s16, 0
    %p127 = por %p125, %p126
    %s128 = ssub.s32 %s17, %s29
    %s129 = ssub.s32 %s18, %s25
    %s130 = sor.u32 %s128, %s129
    %p131 = scmp.eq.s32.totalorder %s130, 0
    %s133 = sadd.s32 %s132, 1
    %s134 = scalar_select %p131, %s132, %s133
    %p137 = pneg %p131
    %p138 = scmp.eq.s32.totalorder %s10, 1
    %p139 = por %p137, %p138
    %p140 = scmp.ne.s32.totalorder %s132, %s135
    %p141 = scmp.eq.s32.totalorder %s10, 0
    %p142 = por %p140, %p141
    %p143 = scmp.ne.s32.totalorder %s132, %s135
    %p144 = scmp.eq.s32.totalorder %s15, 1
    %p145 = por %p143, %p144
    %p146 = scmp.ne.s32.totalorder %s135, %s136
    %p147 = scmp.eq.s32.totalorder %s15, 0
    %p148 = por %p146, %p147
    %p149 = scmp.ne.s32.totalorder %s135, %s136
    %p150 = scmp.eq.s32.totalorder %s16, 1
    %p151 = por %p149, %p150
    %p153 = scmp.ne.s32.totalorder %s136, %s152
    %p154 = scmp.eq.s32.totalorder %s16, 0
    %p155 = por %p153, %p154
    %p156 = scmp.le.s32.totalorder 1, %s10
    %p157 = scmp.lt.s32.totalorder %s10, 3
    %p158 = pnand %p156, %p157
    %p159 = pneg %p158
    // Predicated region
    $region9: #{_forward_impl.9} parent=5 // pred_check
      _
    $region10: #{_forward_impl.9} parent=5 // pred_check_branch
      %161 = sbr.rel (%p158) target = $region12
    $region11: #{_forward_impl.9} parent=5 // pred_region
      %s162 = ssub.s32 %s10, 1
      // Predicated region
      $region13: #{_forward_impl.9} parent=11 // pred_check
        %p163 = pneg %p99
      $region14: #{_forward_impl.9} parent=11 // pred_check_branch
        %165 = sbr.rel (%p163) target = $region16
      $region15: #{_forward_impl.9} parent=11 // pred_region
        _
      $region16: #{_forward_impl.9} parent=11 // pred_fallthru
        _
      // Predicated region
      $region17: #{_forward_impl.9} parent=11 // pred_check
        %p166 = pneg %p120
      $region18: #{_forward_impl.9} parent=11 // pred_check_branch
        %168 = sbr.rel (%p166) target = $region20
      $region19: #{_forward_impl.9} parent=11 // pred_region
        _
      $region20: #{_forward_impl.9} parent=11 // pred_fallthru
        _
    $region12: #{_forward_impl.9} parent=5 // pred_fallthru
      _
    %p169 = scmp.lt.s32.totalorder %s10, 2
    // Predicated region
    $region21: #{_forward_impl.9} parent=5 // pred_check
      %p170 = pneg %p169
    $region22: #{_forward_impl.9} parent=5 // pred_check_branch
      %172 = sbr.rel (%p170) target = $region24
    $region23: #{_forward_impl.9} parent=5 // pred_region
      // Predicated region
      $region25: #{_forward_impl.9} parent=23 // pred_check
        %p173 = pneg %p44
      $region26: #{_forward_impl.9} parent=23 // pred_check_branch
        %175 = sbr.rel (%p173) target = $region28
      $region27: #{_forward_impl.9} parent=23 // pred_region
        %s176 = smul.u32 2, %s18
        %s177 = ssub.s32 3, %s176
        %p178 = scmp.lt.s32.totalorder %s177, 2
        %s179 = scalar_select %p178, %s177, 2
        %s180 = smul.u32 32, %s179
        %p181 = scmp.lt.s32.totalorder %s17, 1
        %s182 = scalar_select %p181, %s17, 1
        %p183 = scmp.lt.s32.totalorder %s176, 2
        %s184 = scalar_select %p183, %s176, 2
        %s185 = smul.addr %s182, 3
        %s186 = sadd.s32 %s184, %s185
        %s187 = smul.addr %s186, 2
        %s188 = scalar_lea.vmem %s0, %s187
        %s189 = smul.u32 2, %s18
        %s190 = ssub.s32 3, %s189
        %p191 = scmp.lt.s32.totalorder %s190, 2
        %s192 = scalar_select %p191, %s190, 2
        %s193 = smul.u32 32, %s192
      $region28: #{_forward_impl.9} parent=23 // pred_fallthru
        _
      // Predicated region
      $region29: #{_forward_impl.9} parent=23 // pred_check
        %p194 = pneg %p72
      $region30: #{_forward_impl.9} parent=23 // pred_check_branch
        %196 = sbr.rel (%p194) target = $region32
      $region31: #{_forward_impl.9} parent=23 // pred_region
        %p197 = scmp.lt.s32.totalorder %s17, 1
        %s198 = scalar_select %p197, %s17, 1
        %p199 = scmp.lt.s32.totalorder %s18, 0
        %s200 = scalar_select %p199, %s18, 0
        %s201 = sadd.s32 %s200, %s198
        %s202 = smul.addr %s201, 2
        %s203 = scalar_lea.vmem %s1, %s202
      $region32: #{_forward_impl.9} parent=23 // pred_fallthru
        _
    $region24: #{_forward_impl.9} parent=5 // pred_fallthru
      _
    %p204 = scmp.le.s32.totalorder 1, %s10
    %p205 = scmp.lt.s32.totalorder %s10, 3
    %p206 = pnand %p204, %p205
    %p207 = pneg %p206
    // Predicated region
    $region33: #{_forward_impl.9} parent=5 // pred_check
      _
    $region34: #{_forward_impl.9} parent=5 // pred_check_branch
      %209 = sbr.rel (%p206) target = $region36
    $region35: #{_forward_impl.9} parent=5 // pred_region
      %s210 = ssub.s32 %s10, 1
      %s211 = smul.u32 2, %s20
      %s212 = ssub.s32 3, %s211
      %p213 = scmp.lt.s32.totalorder %s212, 2
      %s214 = scalar_select %p213, %s212, 2
      %s215 = smul.u32 32, %s214
      %p216 = scmp.lt.s32.totalorder %s19, 1
      %s217 = scalar_select %p216, %s19, 1
      %p218 = scmp.lt.s32.totalorder %s211, 2
      %s219 = scalar_select %p218, %s211, 2
      %s220 = smul.addr %s217, 3
      %s221 = sadd.s32 %s219, %s220
      %s222 = smul.addr %s221, 2
      %s223 = scalar_lea.vmem %s0, %s222
      %p224 = pneg %p50
      %p225 = pneg %p47
      %p226 = scmp.lt.s32.totalorder %s19, 1
      %s227 = scalar_select %p226, %s19, 1
      %p228 = scmp.lt.s32.totalorder %s20, 0
      %s229 = scalar_select %p228, %s20, 0
      %s230 = sadd.s32 %s229, %s227
      %s231 = smul.addr %s230, 2
      %s232 = scalar_lea.vmem %s1, %s231
      %p233 = pneg %p78
      %p234 = pneg %p75
      %p235 = pneg %p99
      %p236 = pneg %p96
      %p237 = pneg %p120
      %p238 = pneg %p117
      %p239 = pneg %p148
      %p240 = pneg %p145
      %s241 = smul.u32 2, %s20
      %p242 = scmp.lt.s32.totalorder %s19, 1
      %s243 = scalar_select %p242, %s19, 1
      %p244 = scmp.lt.s32.totalorder %s241, 1
      %s245 = scalar_select %p244, %s241, 1
      %s246 = smul.addr %s243, 2
      %s247 = sadd.s32 %s245, %s246
      %s248 = scalar_lea.vmem %s4, %s247
      %s249 = smul.u32 2, %s20
      %s250 = ssub.s32 3, %s249
      %p251 = scmp.lt.s32.totalorder %s250, 2
      %s252 = scalar_select %p251, %s250, 2
      %s253 = smul.u32 32, %s252
      %p254 = scmp.lt.s32.totalorder %s19, 1
      %s255 = scalar_select %p254, %s19, 1
      %p256 = scmp.lt.s32.totalorder %s249, 2
      %s257 = scalar_select %p256, %s249, 2
      %s258 = smul.addr %s255, 3
      %s259 = sadd.s32 %s257, %s258
      %s260 = smul.addr %s259, 2
      %s261 = scalar_lea.vmem %s0, %s260
      %s262 = smul.u32 2, %s20
      %s263 = ssub.s32 3, %s262
      %p264 = scmp.lt.s32.totalorder %s263, 2
      %s265 = scalar_select %p264, %s263, 2
      %s266 = smul.u32 32, %s265
      %p267 = scmp.lt.s32.totalorder %s19, 1
      %s268 = scalar_select %p267, %s19, 1
      %p269 = scmp.lt.s32.totalorder %s20, 0
      %s270 = scalar_select %p269, %s20, 0
      %s271 = sadd.s32 %s270, %s268
      %s272 = smul.addr %s271, 2
      %s273 = scalar_lea.vmem %s1, %s272
      %s274 = smul.u32 2, %s20
      %p275 = scmp.lt.s32.totalorder %s19, 1
      %s276 = scalar_select %p275, %s19, 1
      %p277 = scmp.lt.s32.totalorder %s274, 1
      %s278 = scalar_select %p277, %s274, 1
      %s279 = smul.addr %s276, 2
      %s280 = sadd.s32 %s278, %s279
      %s281 = scalar_lea.vmem %s4, %s280
      %s282 = smul.u32 2, %s20
      %v284 = vld [vmem:[%s261] sm:$0x3]
      %v285 = vld [vmem:[%s261 + $0x2] sm:$0x3]
      %v286 = vld [vmem:[%s273] sm:$0x3]
      %v287 = vld [vmem:[%s2] sm:$0xf]
      %v288 = vld [vmem:[%s2 + $0x4] sm:$0xf]
      %v289 = vld [vmem:[%s2 + $0x8] sm:$0xf]
      %v290 = vld [vmem:[%s2 + $0xc] sm:$0xf]
      %v291 = vld [vmem:[%s2 + $0x10] sm:$0xf]
      %v292 = vld [vmem:[%s2 + $0x14] sm:$0xf]
      %v293 = vld [vmem:[%s2 + $0x18] sm:$0xf]
      %v294 = vld [vmem:[%s2 + $0x1c] sm:$0xf]
      %v298 = vunpack.c.l.s4 1966171168
      %v299 = vunpack.c.0.s8 %v298
      %v300 = vlaneseq
      %v301 = vshrl.u32 %v300, 7
      %v302 = vsub.s32 %v299, %v301
      %v303 = vrot.slane %v284, %v302
      %v304 = vcombine.high %v303, %v303
      %v306 = vunpack.c.l.s4 1966171168
      %v307 = vunpack.c.0.s8 %v306
      %v308 = vlaneseq
      %v309 = vshrl.u32 %v308, 7
      %v310 = vsub.s32 %v307, %v309
      %v311 = vrot.slane %v285, %v310
      %v312 = vcombine.high %v311, %v311
      %vm313 = vsmask.f32 256
      %vm314 = vsmask.f32 1284
      %vm315 = vmor %vm313, %vm314
      %vm316 = vsmask.f32 2312
      %vm317 = vmor %vm315, %vm316
      %vm318 = vsmask.f32 3340
      %vm319 = vmor %vm317, %vm318
      %vm320 = vsmask.f32 4368
      %vm321 = vmor %vm319, %vm320
      %vm322 = vsmask.f32 5396
      %vm323 = vmor %vm321, %vm322
      %vm324 = vsmask.f32 6424
      %vm325 = vmor %vm323, %vm324
      %vm326 = vsmask.f32 7452
      %vm327 = vmor %vm325, %vm326
      %v329 = vshrl.u32 %v303, 16
      %v331 = vrot.slane %v329, 7
      %v332 = vrot.slane %v331, 1
      %v334 = vshll.u32 %v304, 16
      %v336 = vsel %vm327, %v332, %v334
      %v338 = vshrl.u32 %v311, 16
      %v340 = vrot.slane %v338, 7
      %v341 = vrot.slane %v340, 1
      %v343 = vshll.u32 %v312, 16
      %v345 = vsel %vm327, %v341, %v343
      %v346 = vld [vmem:[%s2 + $0x20] sm:$0xf]
      %v347 = vld [vmem:[%s2 + $0x24] sm:$0xf]
      %v348 = vld [vmem:[%s2 + $0x28] sm:$0xf]
      %v349 = vld [vmem:[%s2 + $0x2c] sm:$0xf]
      %v350 = vld [vmem:[%s2 + $0x30] sm:$0xf]
      %v351 = vld [vmem:[%s2 + $0x34] sm:$0xf]
      %v352 = vld [vmem:[%s2 + $0x38] sm:$0xf]
      %v353 = vld [vmem:[%s2 + $0x3c] sm:$0xf]
      %v354 = vcombine.low %v336, %v345
      %v356 = vunpack.c.l.s4 1966171168
      %v357 = vunpack.c.0.s8 %v356
      %v358 = vlaneseq
      %v359 = vshrl.u32 %v358, 7
      %v360 = vsub.s32 %v357, %v359
      %v361 = vrot.slane %v354, %v360
      %v363 = vunpack.c.l.s4 1966171168
      %v364 = vunpack.c.0.s8 %v363
      %v365 = vlaneseq
      %v366 = vshrl.u32 %v365, 7
      %v367 = vsub.s32 %v364, %v366
      %v368 = vrot.slane %v361, %v367
      %v377 = vunpack.c.l.b16 %v346
      %v378 = vunpack.c.l.b16 %v347
      %v379 = vunpack.c.l.b16 %v348
      %v380 = vunpack.c.l.b16 %v349
      %v381 = vunpack.c.l.b16 %v350
      %v382 = vunpack.c.l.b16 %v351
      %v383 = vunpack.c.l.b16 %v352
      %v384 = vunpack.c.l.b16 %v353
      %v385 = vpack.c.b16 %v378, %v377
      %v386 = vpack.c.b16 %v380, %v379
      %v387 = vpack.c.b16 %v382, %v381
      %v388 = vpack.c.b16 %v384, %v383
      %vm393 = vcmask 523264
      %v395 = vsel %vm393, %v368, 0
      %397 = vmatprep.subr.bf16.mxu0 0
      %398 = vmatpush1.bf16.msra.mxu0 %v385
      %399 = vmatprep.subr.bf16.mxu0 0
      %400 = vmatpush1.bf16.msra.mxu0 %v386
      %401 = vmatprep.subr.bf16.mxu0 0
      %402 = vmatpush1.bf16.msra.mxu0 %v387
      %403 = vmatprep.subr.bf16.mxu0 0
      %404 = vmatpush1.bf16.msra.mxu0 %v388
      %405 = vmatprep.subr.bf16.mxu0 0
      %406 = vmatpush1.bf16.msra.mxu0 0
      %407 = vmatprep.subr.bf16.mxu0 0
      %408 = vmatpush1.bf16.msra.mxu0 0
      %409 = vmatprep.subr.bf16.mxu0 0
      %410 = vmatpush1.bf16.msra.mxu0 0
      %411 = vmatprep.subr.bf16.mxu0 0
      %412 = vmatpush1.bf16.msra.mxu0 0
      %413 = vmatprep.subr.bf16.mxu0 0
      %414 = vmatpush1.bf16.msra.mxu0 0
      %415 = vmatprep.subr.bf16.mxu0 0
      %416 = vmatpush1.bf16.msra.mxu0 0
      %417 = vmatprep.subr.bf16.mxu0 0
      %418 = vmatpush1.bf16.msra.mxu0 0
      %419 = vmatprep.subr.bf16.mxu0 0
      %420 = vmatpush1.bf16.msra.mxu0 0
      %421 = vmatprep.subr.bf16.mxu0 0
      %422 = vmatpush1.bf16.msra.mxu0 0
      %423 = vmatprep.subr.bf16.mxu0 0
      %424 = vmatpush1.bf16.msra.mxu0 0
      %425 = vmatprep.subr.bf16.mxu0 0
      %426 = vmatpush1.bf16.msra.mxu0 0
      %427 = vmatprep.subr.bf16.mxu0 0
      %428 = vmatpush1.bf16.msra.mxu0 0
      %429 = vmatprep.mubr.bf16.mxu0 0
      %430 = vmatmul.mubr.bf16.gmra.mrb[0].mxu0 %v395
      %v431 = vpop.f32.mrb[0].mxu0
      %v432 = vadd.f32 0.0, %v431
      %v433 = vpop.f32.mrb[0].mxu0
      %v434 = vpop.f32.mrb[0].mxu0
      %v435 = vpop.f32.mrb[0].mxu0
      %436 = vdwg.mxu0
      %v437 = vcombine.low %v284, %v285
      %v439 = vunpack.c.l.s4 1966171168
      %v440 = vunpack.c.0.s8 %v439
      %v441 = vlaneseq
      %v442 = vshrl.u32 %v441, 7
      %v443 = vsub.s32 %v440, %v442
      %v444 = vrot.slane %v437, %v443
      %v446 = vunpack.c.l.s4 1966171168
      %v447 = vunpack.c.0.s8 %v446
      %v448 = vlaneseq
      %v449 = vshrl.u32 %v448, 7
      %v450 = vsub.s32 %v447, %v449
      %v451 = vrot.slane %v444, %v450
      %v460 = vunpack.c.l.b16 %v287
      %v461 = vunpack.c.l.b16 %v288
      %v462 = vunpack.c.l.b16 %v289
      %v463 = vunpack.c.l.b16 %v290
      %v464 = vunpack.c.l.b16 %v291
      %v465 = vunpack.c.l.b16 %v292
      %v466 = vunpack.c.l.b16 %v293
      %v467 = vunpack.c.l.b16 %v294
      %v468 = vpack.c.b16 %v461, %v460
      %v469 = vpack.c.b16 %v463, %v462
      %v470 = vpack.c.b16 %v465, %v464
      %v471 = vpack.c.b16 %v467, %v466
      %v477 = vsel %vm393, %v451, 0
      %479 = vmatprep.subr.bf16.mxu0 0
      %480 = vmatpush1.bf16.msra.mxu0 %v468
      %481 = vmatprep.subr.bf16.mxu0 0
      %482 = vmatpush1.bf16.msra.mxu0 %v469
      %483 = vmatprep.subr.bf16.mxu0 0
      %484 = vmatpush1.bf16.msra.mxu0 %v470
      %485 = vmatprep.subr.bf16.mxu0 0
      %486 = vmatpush1.bf16.msra.mxu0 %v471
      %487 = vmatprep.subr.bf16.mxu0 0
      %488 = vmatpush1.bf16.msra.mxu0 0
      %489 = vmatprep.subr.bf16.mxu0 0
      %490 = vmatpush1.bf16.msra.mxu0 0
      %491 = vmatprep.subr.bf16.mxu0 0
      %492 = vmatpush1.bf16.msra.mxu0 0
      %493 = vmatprep.subr.bf16.mxu0 0
      %494 = vmatpush1.bf16.msra.mxu0 0
      %495 = vmatprep.subr.bf16.mxu0 0
      %496 = vmatpush1.bf16.msra.mxu0 0
      %497 = vmatprep.subr.bf16.mxu0 0
      %498 = vmatpush1.bf16.msra.mxu0 0
      %499 = vmatprep.subr.bf16.mxu0 0
      %500 = vmatpush1.bf16.msra.mxu0 0
      %501 = vmatprep.subr.bf16.mxu0 0
      %502 = vmatpush1.bf16.msra.mxu0 0
      %503 = vmatprep.subr.bf16.mxu0 0
      %504 = vmatpush1.bf16.msra.mxu0 0
      %505 = vmatprep.subr.bf16.mxu0 0
      %506 = vmatpush1.bf16.msra.mxu0 0
      %507 = vmatprep.subr.bf16.mxu0 0
      %508 = vmatpush1.bf16.msra.mxu0 0
      %509 = vmatprep.subr.bf16.mxu0 0
      %510 = vmatpush1.bf16.msra.mxu0 0
      %511 = vmatprep.mubr.bf16.mxu0 0
      %512 = vmatmul.mubr.bf16.gmra.mrb[0].mxu0 %v477
      %v513 = vpop.f32.mrb[0].mxu0
      %v514 = vadd.f32 %v432, %v513
      %v515 = vpop.f32.mrb[0].mxu0
      %v516 = vpop.f32.mrb[0].mxu0
      %v517 = vpop.f32.mrb[0].mxu0
      %518 = vdwg.mxu0
      %v519 = vld [vmem:[%s2 + $0x40] sm:$0xf]
      %v520 = vld [vmem:[%s2 + $0x44] sm:$0xf]
      %v521 = vld [vmem:[%s2 + $0x48] sm:$0xf]
      %v522 = vld [vmem:[%s2 + $0x4c] sm:$0xf]
      %v523 = vld [vmem:[%s2 + $0x50] sm:$0xf]
      %v524 = vld [vmem:[%s2 + $0x54] sm:$0xf]
      %v525 = vld [vmem:[%s2 + $0x58] sm:$0xf]
      %v526 = vld [vmem:[%s2 + $0x5c] sm:$0xf]
      %v528 = vcombine.low %v285, %v286
      %v530 = vunpack.c.l.s4 1966171168
      %v531 = vunpack.c.0.s8 %v530
      %v532 = vlaneseq
      %v533 = vshrl.u32 %v532, 7
      %v534 = vsub.s32 %v531, %v533
      %v535 = vrot.slane %v528, %v534
      %v537 = vunpack.c.l.s4 1966171168
      %v538 = vunpack.c.0.s8 %v537
      %v539 = vlaneseq
      %v540 = vshrl.u32 %v539, 7
      %v541 = vsub.s32 %v538, %v540
      %v542 = vrot.slane %v535, %v541
      %v551 = vunpack.c.l.b16 %v519
      %v552 = vunpack.c.l.b16 %v520
      %v553 = vunpack.c.l.b16 %v521
      %v554 = vunpack.c.l.b16 %v522
      %v555 = vunpack.c.l.b16 %v523
      %v556 = vunpack.c.l.b16 %v524
      %v557 = vunpack.c.l.b16 %v525
      %v558 = vunpack.c.l.b16 %v526
      %v559 = vpack.c.b16 %v552, %v551
      %v560 = vpack.c.b16 %v554, %v553
      %v561 = vpack.c.b16 %v556, %v555
      %v562 = vpack.c.b16 %v558, %v557
      %v568 = vsel %vm393, %v542, 0
      %570 = vmatprep.subr.bf16.mxu0 0
      %571 = vmatpush1.bf16.msra.mxu0 %v559
      %572 = vmatprep.subr.bf16.mxu0 0
      %573 = vmatpush1.bf16.msra.mxu0 %v560
      %574 = vmatprep.subr.bf16.mxu0 0
      %575 = vmatpush1.bf16.msra.mxu0 %v561
      %576 = vmatprep.subr.bf16.mxu0 0
      %577 = vmatpush1.bf16.msra.mxu0 %v562
      %578 = vmatprep.subr.bf16.mxu0 0
      %579 = vmatpush1.bf16.msra.mxu0 0
      %580 = vmatprep.subr.bf16.mxu0 0
      %581 = vmatpush1.bf16.msra.mxu0 0
      %582 = vmatprep.subr.bf16.mxu0 0
      %583 = vmatpush1.bf16.msra.mxu0 0
      %584 = vmatprep.subr.bf16.mxu0 0
      %585 = vmatpush1.bf16.msra.mxu0 0
      %586 = vmatprep.subr.bf16.mxu0 0
      %587 = vmatpush1.bf16.msra.mxu0 0
      %588 = vmatprep.subr.bf16.mxu0 0
      %589 = vmatpush1.bf16.msra.mxu0 0
      %590 = vmatprep.subr.bf16.mxu0 0
      %591 = vmatpush1.bf16.msra.mxu0 0
      %592 = vmatprep.subr.bf16.mxu0 0
      %593 = vmatpush1.bf16.msra.mxu0 0
      %594 = vmatprep.subr.bf16.mxu0 0
      %595 = vmatpush1.bf16.msra.mxu0 0
      %596 = vmatprep.subr.bf16.mxu0 0
      %597 = vmatpush1.bf16.msra.mxu0 0
      %598 = vmatprep.subr.bf16.mxu0 0
      %599 = vmatpush1.bf16.msra.mxu0 0
      %600 = vmatprep.subr.bf16.mxu0 0
      %601 = vmatpush1.bf16.msra.mxu0 0
      %602 = vmatprep.mubr.bf16.mxu0 0
      %603 = vmatmul.mubr.bf16.gmra.mrb[0].mxu0 %v568
      %v604 = vpop.f32.mrb[0].mxu0
      %v605 = vadd.f32 0.0, %v604
      %v606 = vpop.f32.mrb[0].mxu0
      %v607 = vpop.f32.mrb[0].mxu0
      %v608 = vpop.f32.mrb[0].mxu0
      %609 = vdwg.mxu0
      %v610 = vadd.f32 %v514, %v605
      %v612 = vunpack.c.l.s4 1966171168
      %v613 = vunpack.c.0.s8 %v612
      %v614 = vlaneseq
      %v615 = vshrl.u32 %v614, 7
      %v616 = vsub.s32 %v613, %v615
      %v617 = vrot.slane %v286, %v616
      %v618 = vcombine.high %v617, %v617
      %v620 = vshrl.u32 %v617, 16
      %v622 = vrot.slane %v620, 7
      %v623 = vrot.slane %v622, 1
      %v625 = vshll.u32 %v618, 16
      %v627 = vsel %vm327, %v623, %v625
      %v628 = vld [vmem:[%s2 + $0x60] sm:$0xf]
      %v629 = vld [vmem:[%s2 + $0x64] sm:$0xf]
      %v630 = vld [vmem:[%s2 + $0x68] sm:$0xf]
      %v631 = vld [vmem:[%s2 + $0x6c] sm:$0xf]
      %v632 = vld [vmem:[%s2 + $0x70] sm:$0xf]
      %v633 = vld [vmem:[%s2 + $0x74] sm:$0xf]
      %v634 = vld [vmem:[%s2 + $0x78] sm:$0xf]
      %v635 = vld [vmem:[%s2 + $0x7c] sm:$0xf]
      %v636 = vcombine.low %v345, %v627
      %v638 = vunpack.c.l.s4 1966171168
      %v639 = vunpack.c.0.s8 %v638
      %v640 = vlaneseq
      %v641 = vshrl.u32 %v640, 7
      %v642 = vsub.s32 %v639, %v641
      %v643 = vrot.slane %v636, %v642
      %v645 = vunpack.c.l.s4 1966171168
      %v646 = vunpack.c.0.s8 %v645
      %v647 = vlaneseq
      %v648 = vshrl.u32 %v647, 7
      %v649 = vsub.s32 %v646, %v648
      %v650 = vrot.slane %v643, %v649
      %v659 = vunpack.c.l.b16 %v628
      %v660 = vunpack.c.l.b16 %v629
      %v661 = vunpack.c.l.b16 %v630
      %v662 = vunpack.c.l.b16 %v631
      %v663 = vunpack.c.l.b16 %v632
      %v664 = vunpack.c.l.b16 %v633
      %v665 = vunpack.c.l.b16 %v634
      %v666 = vunpack.c.l.b16 %v635
      %v667 = vpack.c.b16 %v660, %v659
      %v668 = vpack.c.b16 %v662, %v661
      %v669 = vpack.c.b16 %v664, %v663
      %v670 = vpack.c.b16 %v666, %v665
      %v676 = vsel %vm393, %v650, 0
      %678 = vmatprep.subr.bf16.mxu0 0
      %679 = vmatpush1.bf16.msra.mxu0 %v667
      %680 = vmatprep.subr.bf16.mxu0 0
      %681 = vmatpush1.bf16.msra.mxu0 %v668
      %682 = vmatprep.subr.bf16.mxu0 0
      %683 = vmatpush1.bf16.msra.mxu0 %v669
      %684 = vmatprep.subr.bf16.mxu0 0
      %685 = vmatpush1.bf16.msra.mxu0 %v670
      %686 = vmatprep.subr.bf16.mxu0 0
      %687 = vmatpush1.bf16.msra.mxu0 0
      %688 = vmatprep.subr.bf16.mxu0 0
      %689 = vmatpush1.bf16.msra.mxu0 0
      %690 = vmatprep.subr.bf16.mxu0 0
      %691 = vmatpush1.bf16.msra.mxu0 0
      %692 = vmatprep.subr.bf16.mxu0 0
      %693 = vmatpush1.bf16.msra.mxu0 0
      %694 = vmatprep.subr.bf16.mxu0 0
      %695 = vmatpush1.bf16.msra.mxu0 0
      %696 = vmatprep.subr.bf16.mxu0 0
      %697 = vmatpush1.bf16.msra.mxu0 0
      %698 = vmatprep.subr.bf16.mxu0 0
      %699 = vmatpush1.bf16.msra.mxu0 0
      %700 = vmatprep.subr.bf16.mxu0 0
      %701 = vmatpush1.bf16.msra.mxu0 0
      %702 = vmatprep.subr.bf16.mxu0 0
      %703 = vmatpush1.bf16.msra.mxu0 0
      %704 = vmatprep.subr.bf16.mxu0 0
      %705 = vmatpush1.bf16.msra.mxu0 0
      %706 = vmatprep.subr.bf16.mxu0 0
      %707 = vmatpush1.bf16.msra.mxu0 0
      %708 = vmatprep.subr.bf16.mxu0 0
      %709 = vmatpush1.bf16.msra.mxu0 0
      %710 = vmatprep.mubr.bf16.mxu0 0
      %711 = vmatmul.mubr.bf16.gmra.mrb[0].mxu0 %v676
      %v712 = vpop.f32.mrb[0].mxu0
      %v713 = vadd.f32 0.0, %v712
      %v714 = vpop.f32.mrb[0].mxu0
      %v715 = vpop.f32.mrb[0].mxu0
      %v716 = vpop.f32.mrb[0].mxu0
      %717 = vdwg.mxu0
      %v718 = vadd.f32 %v610, %v713
      %v719 = vld [vmem:[%s3] sm:$0x1]
      %v721 = vlaneseq
      %v722 = vshrl.u32 %v721, 7
      %v723 = vsub.s32 0, %v722
      %v724 = vrot.slane %v719, %v723
      %v726 = vadd.f32 %v718, %v724
      %v727 = vmax.f32 %v726, 0.0
      %v728 = vpack.c.bf16 %v727, %v727
      %v731 = vunpack.c.l.s4 1966171168
      %v732 = vunpack.c.0.s8 %v731
      %v733 = vlaneseq
      %v734 = vshrl.u32 %v733, 7
      %v735 = vsub.s32 %v732, %v734
      %v736 = vrot.slane %v728, %v735
      %v737 = vcombine.high %v736, %v736
      %v739 = vunpack.c.l.s4 1966171168
      %v740 = vunpack.c.0.s8 %v739
      %v741 = vlaneseq
      %v742 = vshrl.u32 %v741, 7
      %v743 = vsub.s32 %v740, %v742
      %v744 = vrot.slane %v736, %v743
      %v746 = vunpack.c.l.s4 1966171168
      %v747 = vunpack.c.0.s8 %v746
      %v748 = vlaneseq
      %v749 = vshrl.u32 %v748, 7
      %v750 = vsub.s32 %v747, %v749
      %v751 = vrot.slane %v737, %v750
      %754 = vst [vmem:[%s281] sm:$0x1] %v744
      %755 = vst [vmem:[%s281 + $0x1] sm:$0x1] %v751
      %s756 = smul.u32 2, %s20
      %p757 = scmp.lt.s32.totalorder %s19, 1
      %s758 = scalar_select %p757, %s19, 1
      %p759 = scmp.lt.s32.totalorder %s756, 1
      %s760 = scalar_select %p759, %s756, 1
      %s761 = smul.addr %s758, 2
      %s762 = sadd.s32 %s760, %s761
      %s763 = scalar_lea.vmem %s4, %s762
      // Predicated region
      $region37: #{_forward_impl.9} parent=35 // pred_check
        %p764 = pneg %p145
      $region38: #{_forward_impl.9} parent=35 // pred_check_branch
        %766 = sbr.rel (%p764) target = $region40
      $region39: #{_forward_impl.9} parent=35 // pred_region
        %s767 = smul.u32 2, %s20
      $region40: #{_forward_impl.9} parent=35 // pred_fallthru
        _
    $region36: #{_forward_impl.9} parent=5 // pred_fallthru
      _
    %p768 = scmp.le.s32.totalorder 2, %s10
    // Predicated region
    $region41: #{_forward_impl.9} parent=5 // pred_check
      %p769 = pneg %p768
    $region42: #{_forward_impl.9} parent=5 // pred_check_branch
      %771 = sbr.rel (%p769) target = $region44
    $region43: #{_forward_impl.9} parent=5 // pred_region
      %s772 = ssub.s32 %s10, 2
      // Predicated region
      $region45: #{_forward_impl.9} parent=43 // pred_check
        %p773 = pneg %p151
      $region46: #{_forward_impl.9} parent=43 // pred_check_branch
        %775 = sbr.rel (%p773) target = $region48
      $region47: #{_forward_impl.9} parent=43 // pred_region
        %s776 = smul.u32 2, %s22
        %p777 = scmp.lt.s32.totalorder %s21, 1
        %s778 = scalar_select %p777, %s21, 1
        %p779 = scmp.lt.s32.totalorder %s776, 1
        %s780 = scalar_select %p779, %s776, 1
        %s781 = smul.addr %s778, 2
        %s782 = sadd.s32 %s780, %s781
        %s783 = scalar_lea.vmem %s4, %s782
      $region48: #{_forward_impl.9} parent=43 // pred_fallthru
        _
    $region44: #{_forward_impl.9} parent=5 // pred_fallthru
      _
  $region6: #{_forward_impl.9} parent=0 // loop_footer
    %s14 = sadd.s32 1, %s10
  $region7: #{_forward_impl.9} parent=0 // loop_footer_branch
    %9 = sbr.rel target = $region3
  $region8: #{_forward_impl.9} parent=0 // loop_exit
    _

// kernel: _forward_impl.10
$region0: #{_forward_impl.10}
  #allocation0 [shape = 'u32[]', space=smem, size = 0x4, offset = 0x4, fixed_abs, tag = 'smem constant byte address 0x4 - core index']
  #allocation1 [shape = 'u32[144,128]{1,0:T(1,128)}', space=vmem, size = 0x12000, scoped, tag = 'internal scratch']
  %s0 = inlined_call_operand.vmem [shape: bf16[2,5,5,32], index: 0, kind: input, shape index: {}]
  %s1 = inlined_call_operand.vmem [shape: bf16[2,1,5,32], index: 1, kind: input, shape index: {}]
  %s2 = inlined_call_operand.vmem [shape: bf16[128,64], index: 2, kind: input, shape index: {}]
  %s3 = inlined_call_operand.vmem [shape: f32[1,64], index: 3, kind: input, shape index: {}]
  %s4 = inlined_call_operand.vmem [shape: bf16[2,4,4,64], index: 4, kind: output, shape index: {}]
  %s5 = sld [smem:[#allocation0]]
  $region49: #{_forward_impl.10} parent=0
    _
  %s7 = ssub.s32 1, %s5
  %s8 = scalar_select 0, %s7, %s5
  loop: start=0, step=1, limit=4
  $region2: #{_forward_impl.10} parent=0 // loop_pre_header
    _
  $region3: #{_forward_impl.10} parent=0 // loop_header
    %s10 = sphi 0, %s14
    %p11 = scmp.ge.s32.totalorder %s10, 4
    %s17 = sphi 0, %s29
    %s18 = sphi 0, %s25
    %s19 = sphi 0, %s17
    %s20 = sphi 0, %s18
    %s21 = sphi 0, %s19
    %s22 = sphi 0, %s20
    %s34 = sphi 0, %s36
    %s37 = sphi 0, %s34
    %s38 = sphi 0, %s37
    %s54 = sphi 0, %s38
    %s62 = sphi 0, %s64
    %s65 = sphi 0, %s62
    %s66 = sphi 0, %s65
    %s82 = sphi 0, %s66
    %s86 = sphi 0, %s86
    %s88 = sphi 0, %s86
    %s89 = sphi 0, %s88
    %s103 = sphi 0, %s89
    %s107 = sphi 0, %s107
    %s109 = sphi 0, %s107
    %s110 = sphi 0, %s109
    %s124 = sphi 0, %s110
    %s132 = sphi 0, %s134
    %s135 = sphi 0, %s132
    %s136 = sphi 0, %s135
    %s152 = sphi 0, %s136
  $region4: #{_forward_impl.10} parent=0 // loop_header_branch
    %13 = sbr.rel (%p11) target = $region8
  $region5: #{_forward_impl.10} parent=0 // loop_body
    %s15 = ssub.s32 %s10, 1
    %s16 = ssub.s32 %s10, 2
    %s23 = sadd.s32 1, %s18
    %p24 = scmp.ge.s32.totalorder %s23, 1
    %s25 = scalar_select %p24, 0, %s23
    %s26 = sadd.s32 1, %s17
    %s27 = scalar_select %p24, %s26, %s17
    %p28 = scmp.ge.s32.totalorder %s27, 2
    %s29 = scalar_select %p28, 0, %s27
    %s30 = ssub.s32 %s17, %s29
    %s31 = ssub.s32 %s18, %s25
    %s32 = sor.u32 %s30, %s31
    %p33 = scmp.eq.s32.totalorder %s32, 0
    %s35 = sadd.s32 %s34, 1
    %s36 = scalar_select %p33, %s34, %s35
    %p39 = pneg %p33
    %p40 = scmp.eq.s32.totalorder %s10, 1
    %p41 = por %p39, %p40
    %p42 = scmp.ne.s32.totalorder %s34, %s37
    %p43 = scmp.eq.s32.totalorder %s10, 0
    %p44 = por %p42, %p43
    %p45 = scmp.ne.s32.totalorder %s34, %s37
    %p46 = scmp.eq.s32.totalorder %s15, 1
    %p47 = por %p45, %p46
    %p48 = scmp.ne.s32.totalorder %s37, %s38
    %p49 = scmp.eq.s32.totalorder %s15, 0
    %p50 = por %p48, %p49
    %p51 = scmp.ne.s32.totalorder %s37, %s38
    %p52 = scmp.eq.s32.totalorder %s16, 1
    %p53 = por %p51, %p52
    %p55 = scmp.ne.s32.totalorder %s38, %s54
    %p56 = scmp.eq.s32.totalorder %s16, 0
    %p57 = por %p55, %p56
    %s58 = ssub.s32 %s17, %s29
    %s59 = ssub.s32 %s18, %s25
    %s60 = sor.u32 %s58, %s59
    %p61 = scmp.eq.s32.totalorder %s60, 0
    %s63 = sadd.s32 %s62, 1
    %s64 = scalar_select %p61, %s62, %s63
    %p67 = pneg %p61
    %p68 = scmp.eq.s32.totalorder %s10, 1
    %p69 = por %p67, %p68
    %p70 = scmp.ne.s32.totalorder %s62, %s65
    %p71 = scmp.eq.s32.totalorder %s10, 0
    %p72 = por %p70, %p71
    %p73 = scmp.ne.s32.totalorder %s62, %s65
    %p74 = scmp.eq.s32.totalorder %s15, 1
    %p75 = por %p73, %p74
    %p76 = scmp.ne.s32.totalorder %s65, %s66
    %p77 = scmp.eq.s32.totalorder %s15, 0
    %p78 = por %p76, %p77
    %p79 = scmp.ne.s32.totalorder %s65, %s66
    %p80 = scmp.eq.s32.totalorder %s16, 1
    %p81 = por %p79, %p80
    %p83 = scmp.ne.s32.totalorder %s66, %s82
    %p84 = scmp.eq.s32.totalorder %s16, 0
    %p85 = por %p83, %p84
    %s87 = sadd.s32 %s86, 1
    %p90 = scmp.eq.s32.totalorder %s10, 1
    %p91 = scmp.ne.s32.totalorder %s86, %s88
    %p92 = scmp.eq.s32.totalorder %s10, 0
    %p93 = por %p91, %p92
    %p94 = scmp.ne.s32.totalorder %s86, %s88
    %p95 = scmp.eq.s32.totalorder %s15, 1
    %p96 = por %p94, %p95
    %p97 = scmp.ne.s32.totalorder %s88, %s89
    %p98 = scmp.eq.s32.totalorder %s15, 0
    %p99 = por %p97, %p98
    %p100 = scmp.ne.s32.totalorder %s88, %s89
    %p101 = scmp.eq.s32.totalorder %s16, 1
    %p102 = por %p100, %p101
    %p104 = scmp.ne.s32.totalorder %s89, %s103
    %p105 = scmp.eq.s32.totalorder %s16, 0
    %p106 = por %p104, %p105
    %s108 = sadd.s32 %s107, 1
    %p111 = scmp.eq.s32.totalorder %s10, 1
    %p112 = scmp.ne.s32.totalorder %s107, %s109
    %p113 = scmp.eq.s32.totalorder %s10, 0
    %p114 = por %p112, %p113
    %p115 = scmp.ne.s32.totalorder %s107, %s109
    %p116 = scmp.eq.s32.totalorder %s15, 1
    %p117 = por %p115, %p116
    %p118 = scmp.ne.s32.totalorder %s109, %s110
    %p119 = scmp.eq.s32.totalorder %s15, 0
    %p120 = por %p118, %p119
    %p121 = scmp.ne.s32.totalorder %s109, %s110
    %p122 = scmp.eq.s32.totalorder %s16, 1
    %p123 = por %p121, %p122
    %p125 = scmp.ne.s32.totalorder %s110, %s124
    %p126 = scmp.eq.s32.totalorder %s16, 0
    %p127 = por %p125, %p126
    %s128 = ssub.s32 %s17, %s29
    %s129 = ssub.s32 %s18, %s25
    %s130 = sor.u32 %s128, %s129
    %p131 = scmp.eq.s32.totalorder %s130, 0
    %s133 = sadd.s32 %s132, 1
    %s134 = scalar_select %p131, %s132, %s133
    %p137 = pneg %p131
    %p138 = scmp.eq.s32.totalorder %s10, 1
    %p139 = por %p137, %p138
    %p140 = scmp.ne.s32.totalorder %s132, %s135
    %p141 = scmp.eq.s32.totalorder %s10, 0
    %p142 = por %p140, %p141
    %p143 = scmp.ne.s32.totalorder %s132, %s135
    %p144 = scmp.eq.s32.totalorder %s15, 1
    %p145 = por %p143, %p144
    %p146 = scmp.ne.s32.totalorder %s135, %s136
    %p147 = scmp.eq.s32.totalorder %s15, 0
    %p148 = por %p146, %p147
    %p149 = scmp.ne.s32.totalorder %s135, %s136
    %p150 = scmp.eq.s32.totalorder %s16, 1
    %p151 = por %p149, %p150
    %p153 = scmp.ne.s32.totalorder %s136, %s152
    %p154 = scmp.eq.s32.totalorder %s16, 0
    %p155 = por %p153, %p154
    %p156 = scmp.le.s32.totalorder 1, %s10
    %p157 = scmp.lt.s32.totalorder %s10, 3
    %p158 = pnand %p156, %p157
    %p159 = pneg %p158
    // Predicated region
    $region9: #{_forward_impl.10} parent=5 // pred_check
      _
    $region10: #{_forward_impl.10} parent=5 // pred_check_branch
      %161 = sbr.rel (%p158) target = $region12
    $region11: #{_forward_impl.10} parent=5 // pred_region
      %s162 = ssub.s32 %s10, 1
      // Predicated region
      $region13: #{_forward_impl.10} parent=11 // pred_check
        %p163 = pneg %p99
      $region14: #{_forward_impl.10} parent=11 // pred_check_branch
        %165 = sbr.rel (%p163) target = $region16
      $region15: #{_forward_impl.10} parent=11 // pred_region
        _
      $region16: #{_forward_impl.10} parent=11 // pred_fallthru
        _
      // Predicated region
      $region17: #{_forward_impl.10} parent=11 // pred_check
        %p166 = pneg %p120
      $region18: #{_forward_impl.10} parent=11 // pred_check_branch
        %168 = sbr.rel (%p166) target = $region20
      $region19: #{_forward_impl.10} parent=11 // pred_region
        _
      $region20: #{_forward_impl.10} parent=11 // pred_fallthru
        _
    $region12: #{_forward_impl.10} parent=5 // pred_fallthru
      _
    %p169 = scmp.lt.s32.totalorder %s10, 2
    // Predicated region
    $region21: #{_forward_impl.10} parent=5 // pred_check
      %p170 = pneg %p169
    $region22: #{_forward_impl.10} parent=5 // pred_check_branch
      %172 = sbr.rel (%p170) target = $region24
    $region23: #{_forward_impl.10} parent=5 // pred_region
      // Predicated region
      $region25: #{_forward_impl.10} parent=23 // pred_check
        %p173 = pneg %p44
      $region26: #{_forward_impl.10} parent=23 // pred_check_branch
        %175 = sbr.rel (%p173) target = $region28
      $region27: #{_forward_impl.10} parent=23 // pred_region
        %s176 = smul.u32 4, %s18
        %s177 = ssub.s32 5, %s176
        %p178 = scmp.lt.s32.totalorder %s177, 4
        %s179 = scalar_select %p178, %s177, 4
        %s180 = smul.u32 64, %s179
        %p181 = scmp.lt.s32.totalorder %s17, 1
        %s182 = scalar_select %p181, %s17, 1
        %p183 = scmp.lt.s32.totalorder %s176, 4
        %s184 = scalar_select %p183, %s176, 4
        %s185 = smul.addr %s182, 5
        %s186 = sadd.s32 %s184, %s185
        %s187 = smul.addr %s186, 4
        %s188 = scalar_lea.vmem %s0, %s187
        %s189 = smul.u32 4, %s18
        %s190 = ssub.s32 5, %s189
        %p191 = scmp.lt.s32.totalorder %s190, 4
        %s192 = scalar_select %p191, %s190, 4
        %s193 = smul.u32 64, %s192
      $region28: #{_forward_impl.10} parent=23 // pred_fallthru
        _
      // Predicated region
      $region29: #{_forward_impl.10} parent=23 // pred_check
        %p194 = pneg %p72
      $region30: #{_forward_impl.10} parent=23 // pred_check_branch
        %196 = sbr.rel (%p194) target = $region32
      $region31: #{_forward_impl.10} parent=23 // pred_region
        %p197 = scmp.lt.s32.totalorder %s17, 1
        %s198 = scalar_select %p197, %s17, 1
        %p199 = scmp.lt.s32.totalorder %s18, 0
        %s200 = scalar_select %p199, %s18, 0
        %s201 = sadd.s32 %s200, %s198
        %s202 = smul.addr %s201, 4
        %s203 = scalar_lea.vmem %s1, %s202
      $region32: #{_forward_impl.10} parent=23 // pred_fallthru
        _
    $region24: #{_forward_impl.10} parent=5 // pred_fallthru
      _
    %p204 = scmp.le.s32.totalorder 1, %s10
    %p205 = scmp.lt.s32.totalorder %s10, 3
    %p206 = pnand %p204, %p205
    %p207 = pneg %p206
    // Predicated region
    $region33: #{_forward_impl.10} parent=5 // pred_check
      _
    $region34: #{_forward_impl.10} parent=5 // pred_check_branch
      %209 = sbr.rel (%p206) target = $region36
    $region35: #{_forward_impl.10} parent=5 // pred_region
      %s210 = ssub.s32 %s10, 1
      %s211 = smul.u32 4, %s20
      %s212 = ssub.s32 5, %s211
      %p213 = scmp.lt.s32.totalorder %s212, 4
      %s214 = scalar_select %p213, %s212, 4
      %s215 = smul.u32 64, %s214
      %p216 = scmp.lt.s32.totalorder %s19, 1
      %s217 = scalar_select %p216, %s19, 1
      %p218 = scmp.lt.s32.totalorder %s211, 4
      %s219 = scalar_select %p218, %s211, 4
      %s220 = smul.addr %s217, 5
      %s221 = sadd.s32 %s219, %s220
      %s222 = smul.addr %s221, 4
      %s223 = scalar_lea.vmem %s0, %s222
      %p224 = pneg %p50
      %p225 = pneg %p47
      %p226 = scmp.lt.s32.totalorder %s19, 1
      %s227 = scalar_select %p226, %s19, 1
      %p228 = scmp.lt.s32.totalorder %s20, 0
      %s229 = scalar_select %p228, %s20, 0
      %s230 = sadd.s32 %s229, %s227
      %s231 = smul.addr %s230, 4
      %s232 = scalar_lea.vmem %s1, %s231
      %p233 = pneg %p78
      %p234 = pneg %p75
      %p235 = pneg %p99
      %p236 = pneg %p96
      %p237 = pneg %p120
      %p238 = pneg %p117
      %p239 = pneg %p148
      %p240 = pneg %p145
      %s241 = smul.u32 4, %s20
      %p242 = scmp.lt.s32.totalorder %s19, 1
      %s243 = scalar_select %p242, %s19, 1
      %p244 = scmp.lt.s32.totalorder %s241, 3
      %s245 = scalar_select %p244, %s241, 3
      %s246 = smul.addr %s243, 4
      %s247 = sadd.s32 %s245, %s246
      %s248 = smul.addr %s247, 2
      %s249 = scalar_lea.vmem %s4, %s248
      %s250 = smul.u32 4, %s20
      %s251 = ssub.s32 5, %s250
      %p252 = scmp.lt.s32.totalorder %s251, 4
      %s253 = scalar_select %p252, %s251, 4
      %s254 = smul.u32 64, %s253
      %p255 = scmp.lt.s32.totalorder %s19, 1
      %s256 = scalar_select %p255, %s19, 1
      %p257 = scmp.lt.s32.totalorder %s250, 4
      %s258 = scalar_select %p257, %s250, 4
      %s259 = smul.addr %s256, 5
      %s260 = sadd.s32 %s258, %s259
      %s261 = smul.addr %s260, 4
      %s262 = scalar_lea.vmem %s0, %s261
      %s263 = smul.u32 4, %s20
      %s264 = ssub.s32 5, %s263
      %p265 = scmp.lt.s32.totalorder %s264, 4
      %s266 = scalar_select %p265, %s264, 4
      %s267 = smul.u32 64, %s266
      %p268 = scmp.lt.s32.totalorder %s19, 1
      %s269 = scalar_select %p268, %s19, 1
      %p270 = scmp.lt.s32.totalorder %s20, 0
      %s271 = scalar_select %p270, %s20, 0
      %s272 = sadd.s32 %s271, %s269
      %s273 = smul.addr %s272, 4
      %s274 = scalar_lea.vmem %s1, %s273
      %s275 = smul.u32 4, %s20
      %p276 = scmp.lt.s32.totalorder %s19, 1
      %s277 = scalar_select %p276, %s19, 1
      %p278 = scmp.lt.s32.totalorder %s275, 3
      %s279 = scalar_select %p278, %s275, 3
      %s280 = smul.addr %s277, 4
      %s281 = sadd.s32 %s279, %s280
      %s282 = smul.addr %s281, 2
      %s283 = scalar_lea.vmem %s4, %s282
      %s284 = smul.u32 4, %s20
      %v286 = vld [vmem:[%s262] sm:$0x7]
      %v287 = vld [vmem:[%s262 + $0x4] sm:$0x7]
      %v288 = vld [vmem:[%s262 + $0x8] sm:$0x7]
      %v289 = vld [vmem:[%s262 + $0xc] sm:$0x7]
      %v290 = vld [vmem:[%s274] sm:$0x7]
      %v291 = vld [vmem:[%s2] sm:$0xf]
      %v292 = vld [vmem:[%s2 + $0x4] sm:$0xf]
      %v293 = vld [vmem:[%s2 + $0x8] sm:$0xf]
      %v294 = vld [vmem:[%s2 + $0xc] sm:$0xf]
      %v300 = vunpack.c.l.s4 1983009808
      %v301 = vunpack.c.0.s8 %v300
      %v302 = vlaneseq
      %v303 = vshrl.u32 %v302, 7
      %v304 = vsub.s32 %v301, %v303
      %v305 = vrot.slane %v286, %v304
      %v306 = vcombine.high %v305, %v305
      %v308 = vunpack.c.l.s4 1983009808
      %v309 = vunpack.c.0.s8 %v308
      %v310 = vlaneseq
      %v311 = vshrl.u32 %v310, 7
      %v312 = vsub.s32 %v309, %v311
      %v313 = vrot.slane %v287, %v312
      %v314 = vcombine.high %v313, %v313
      %v316 = vunpack.c.l.s4 1983009808
      %v317 = vunpack.c.0.s8 %v316
      %v318 = vlaneseq
      %v319 = vshrl.u32 %v318, 7
      %v320 = vsub.s32 %v317, %v319
      %v321 = vrot.slane %v288, %v320
      %v322 = vcombine.high %v321, %v321
      %v324 = vunpack.c.l.s4 1983009808
      %v325 = vunpack.c.0.s8 %v324
      %v326 = vlaneseq
      %v327 = vshrl.u32 %v326, 7
      %v328 = vsub.s32 %v325, %v327
      %v329 = vrot.slane %v289, %v328
      %v330 = vcombine.high %v329, %v329
      %vm331 = vsmask.f32 1280
      %vm332 = vsmask.f32 3336
      %vm333 = vmor %vm331, %vm332
      %vm334 = vsmask.f32 5392
      %vm335 = vmor %vm333, %vm334
      %vm336 = vsmask.f32 7448
      %vm337 = vmor %vm335, %vm336
      %v339 = vshrl.u32 %v305, 16
      %v341 = vrot.slane %v339, 6
      %v342 = vshll.u32 %v305, 16
      %v344 = vrot.slane %v342, 7
      %v345 = vor.u32 %v341, %v344
      %v346 = vrot.slane %v345, 2
      %v348 = vshll.u32 %v306, 16
      %v350 = vrot.slane %v348, 7
      %v351 = vsel %vm337, %v346, %v350
      %v353 = vshrl.u32 %v313, 16
      %v355 = vrot.slane %v353, 6
      %v356 = vshll.u32 %v313, 16
      %v358 = vrot.slane %v356, 7
      %v359 = vor.u32 %v355, %v358
      %v360 = vrot.slane %v359, 2
      %v362 = vshll.u32 %v314, 16
      %v364 = vrot.slane %v362, 7
      %v365 = vsel %vm337, %v360, %v364
      %v367 = vshrl.u32 %v321, 16
      %v369 = vrot.slane %v367, 6
      %v370 = vshll.u32 %v321, 16
      %v372 = vrot.slane %v370, 7
      %v373 = vor.u32 %v369, %v372
      %v374 = vrot.slane %v373, 2
      %v376 = vshll.u32 %v322, 16
      %v378 = vrot.slane %v376, 7
      %v379 = vsel %vm337, %v374, %v378
      %v381 = vshrl.u32 %v329, 16
      %v383 = vrot.slane %v381, 6
      %v384 = vshll.u32 %v329, 16
      %v386 = vrot.slane %v384, 7
      %v387 = vor.u32 %v383, %v386
      %v388 = vrot.slane %v387, 2
      %v390 = vshll.u32 %v330, 16
      %v392 = vrot.slane %v390, 7
      %v393 = vsel %vm337, %v388, %v392
      %v394 = vld [vmem:[%s2 + $0x10] sm:$0xf]
      %v395 = vld [vmem:[%s2 + $0x14] sm:$0xf]
      %v396 = vld [vmem:[%s2 + $0x18] sm:$0xf]
      %v397 = vld [vmem:[%s2 + $0x1c] sm:$0xf]
      %v398 = vcombine.low %v351, %v365
      %v399 = vcombine.low %v379, %v393
      %v401 = vunpack.c.l.s4 1983009808
      %v402 = vunpack.c.0.s8 %v401
      %v403 = vlaneseq
      %v404 = vshrl.u32 %v403, 7
      %v405 = vsub.s32 %v402, %v404
      %v406 = vrot.slane %v398, %v405
      %v408 = vunpack.c.l.s4 1983009808
      %v409 = vunpack.c.0.s8 %v408
      %v410 = vlaneseq
      %v411 = vshrl.u32 %v410, 7
      %v412 = vsub.s32 %v409, %v411
      %v413 = vrot.slane %v399, %v412
      %v414 = vcombine.low %v406, %v413
      %v419 = vunpack.c.l.b16 %v394
      %v420 = vunpack.c.l.b16 %v395
      %v421 = vunpack.c.l.b16 %v396
      %v422 = vunpack.c.l.b16 %v397
      %v423 = vpack.c.b16 %v420, %v419
      %v424 = vpack.c.b16 %v422, %v421
      %vm427 = vcmask 261120
      %v429 = vsel %vm427, %v414, 0
      %431 = vmatprep.subr.bf16.mxu0 0
      %432 = vmatpush1.bf16.msra.mxu0 %v423
      %433 = vmatprep.subr.bf16.mxu0 0
      %434 = vmatpush1.bf16.msra.mxu0 %v424
      %435 = vmatprep.subr.bf16.mxu0 0
      %436 = vmatpush1.bf16.msra.mxu0 0
      %437 = vmatprep.subr.bf16.mxu0 0
      %438 = vmatpush1.bf16.msra.mxu0 0
      %439 = vmatprep.subr.bf16.mxu0 0
      %440 = vmatpush1.bf16.msra.mxu0 0
      %441 = vmatprep.subr.bf16.mxu0 0
      %442 = vmatpush1.bf16.msra.mxu0 0
      %443 = vmatprep.subr.bf16.mxu0 0
      %444 = vmatpush1.bf16.msra.mxu0 0
      %445 = vmatprep.subr.bf16.mxu0 0
      %446 = vmatpush1.bf16.msra.mxu0 0
      %447 = vmatprep.subr.bf16.mxu0 0
      %448 = vmatpush1.bf16.msra.mxu0 0
      %449 = vmatprep.subr.bf16.mxu0 0
      %450 = vmatpush1.bf16.msra.mxu0 0
      %451 = vmatprep.subr.bf16.mxu0 0
      %452 = vmatpush1.bf16.msra.mxu0 0
      %453 = vmatprep.subr.bf16.mxu0 0
      %454 = vmatpush1.bf16.msra.mxu0 0
      %455 = vmatprep.subr.bf16.mxu0 0
      %456 = vmatpush1.bf16.msra.mxu0 0
      %457 = vmatprep.subr.bf16.mxu0 0
      %458 = vmatpush1.bf16.msra.mxu0 0
      %459 = vmatprep.subr.bf16.mxu0 0
      %460 = vmatpush1.bf16.msra.mxu0 0
      %461 = vmatprep.subr.bf16.mxu0 0
      %462 = vmatpush1.bf16.msra.mxu0 0
      %463 = vmatprep.mubr.bf16.mxu0 0
      %464 = vmatmul.mubr.bf16.gmra.mrb[0].mxu0 %v429
      %v465 = vpop.f32.mrb[0].mxu0
      %v466 = vadd.f32 0.0, %v465
      %v467 = vpop.f32.mrb[0].mxu0
      %v468 = vpop.f32.mrb[0].mxu0
      %v469 = vadd.f32 0.0, %v468
      %v470 = vpop.f32.mrb[0].mxu0
      %471 = vdwg.mxu0
      %v472 = vcombine.low %v286, %v287
      %v473 = vcombine.low %v288, %v289
      %v475 = vunpack.c.l.s4 1983009808
      %v476 = vunpack.c.0.s8 %v475
      %v477 = vlaneseq
      %v478 = vshrl.u32 %v477, 7
      %v479 = vsub.s32 %v476, %v478
      %v480 = vrot.slane %v472, %v479
      %v482 = vunpack.c.l.s4 1983009808
      %v483 = vunpack.c.0.s8 %v482
      %v484 = vlaneseq
      %v485 = vshrl.u32 %v484, 7
      %v486 = vsub.s32 %v483, %v485
      %v487 = vrot.slane %v473, %v486
      %v488 = vcombine.low %v480, %v487
      %v493 = vunpack.c.l.b16 %v291
      %v494 = vunpack.c.l.b16 %v292
      %v495 = vunpack.c.l.b16 %v293
      %v496 = vunpack.c.l.b16 %v294
      %v497 = vpack.c.b16 %v494, %v493
      %v498 = vpack.c.b16 %v496, %v495
      %v502 = vsel %vm427, %v488, 0
      %504 = vmatprep.subr.bf16.mxu0 0
      %505 = vmatpush1.bf16.msra.mxu0 %v497
      %506 = vmatprep.subr.bf16.mxu0 0
      %507 = vmatpush1.bf16.msra.mxu0 %v498
      %508 = vmatprep.subr.bf16.mxu0 0
      %509 = vmatpush1.bf16.msra.mxu0 0
      %510 = vmatprep.subr.bf16.mxu0 0
      %511 = vmatpush1.bf16.msra.mxu0 0
      %512 = vmatprep.subr.bf16.mxu0 0
      %513 = vmatpush1.bf16.msra.mxu0 0
      %514 = vmatprep.subr.bf16.mxu0 0
      %515 = vmatpush1.bf16.msra.mxu0 0
      %516 = vmatprep.subr.bf16.mxu0 0
      %517 = vmatpush1.bf16.msra.mxu0 0
      %518 = vmatprep.subr.bf16.mxu0 0
      %519 = vmatpush1.bf16.msra.mxu0 0
      %520 = vmatprep.subr.bf16.mxu0 0
      %521 = vmatpush1.bf16.msra.mxu0 0
      %522 = vmatprep.subr.bf16.mxu0 0
      %523 = vmatpush1.bf16.msra.mxu0 0
      %524 = vmatprep.subr.bf16.mxu0 0
      %525 = vmatpush1.bf16.msra.mxu0 0
      %526 = vmatprep.subr.bf16.mxu0 0
      %527 = vmatpush1.bf16.msra.mxu0 0
      %528 = vmatprep.subr.bf16.mxu0 0
      %529 = vmatpush1.bf16.msra.mxu0 0
      %530 = vmatprep.subr.bf16.mxu0 0
      %531 = vmatpush1.bf16.msra.mxu0 0
      %532 = vmatprep.subr.bf16.mxu0 0
      %533 = vmatpush1.bf16.msra.mxu0 0
      %534 = vmatprep.subr.bf16.mxu0 0
      %535 = vmatpush1.bf16.msra.mxu0 0
      %536 = vmatprep.mubr.bf16.mxu0 0
      %537 = vmatmul.mubr.bf16.gmra.mrb[0].mxu0 %v502
      %v538 = vpop.f32.mrb[0].mxu0
      %v539 = vadd.f32 %v466, %v538
      %v540 = vpop.f32.mrb[0].mxu0
      %v541 = vpop.f32.mrb[0].mxu0
      %v542 = vadd.f32 %v469, %v541
      %v543 = vpop.f32.mrb[0].mxu0
      %544 = vdwg.mxu0
      %v545 = vld [vmem:[%s2 + $0x20] sm:$0xf]
      %v546 = vld [vmem:[%s2 + $0x24] sm:$0xf]
      %v547 = vld [vmem:[%s2 + $0x28] sm:$0xf]
      %v548 = vld [vmem:[%s2 + $0x2c] sm:$0xf]
      %v550 = vcombine.low %v287, %v288
      %v551 = vcombine.low %v289, %v290
      %v553 = vunpack.c.l.s4 1983009808
      %v554 = vunpack.c.0.s8 %v553
      %v555 = vlaneseq
      %v556 = vshrl.u32 %v555, 7
      %v557 = vsub.s32 %v554, %v556
      %v558 = vrot.slane %v550, %v557
      %v560 = vunpack.c.l.s4 1983009808
      %v561 = vunpack.c.0.s8 %v560
      %v562 = vlaneseq
      %v563 = vshrl.u32 %v562, 7
      %v564 = vsub.s32 %v561, %v563
      %v565 = vrot.slane %v551, %v564
      %v566 = vcombine.low %v558, %v565
      %v571 = vunpack.c.l.b16 %v545
      %v572 = vunpack.c.l.b16 %v546
      %v573 = vunpack.c.l.b16 %v547
      %v574 = vunpack.c.l.b16 %v548
      %v575 = vpack.c.b16 %v572, %v571
      %v576 = vpack.c.b16 %v574, %v573
      %v580 = vsel %vm427, %v566, 0
      %582 = vmatprep.subr.bf16.mxu0 0
      %583 = vmatpush1.bf16.msra.mxu0 %v575
      %584 = vmatprep.subr.bf16.mxu0 0
      %585 = vmatpush1.bf16.msra.mxu0 %v576
      %586 = vmatprep.subr.bf16.mxu0 0
      %587 = vmatpush1.bf16.msra.mxu0 0
      %588 = vmatprep.subr.bf16.mxu0 0
      %589 = vmatpush1.bf16.msra.mxu0 0
      %590 = vmatprep.subr.bf16.mxu0 0
      %591 = vmatpush1.bf16.msra.mxu0 0
      %592 = vmatprep.subr.bf16.mxu0 0
      %593 = vmatpush1.bf16.msra.mxu0 0
      %594 = vmatprep.subr.bf16.mxu0 0
      %595 = vmatpush1.bf16.msra.mxu0 0
      %596 = vmatprep.subr.bf16.mxu0 0
      %597 = vmatpush1.bf16.msra.mxu0 0
      %598 = vmatprep.subr.bf16.mxu0 0
      %599 = vmatpush1.bf16.msra.mxu0 0
      %600 = vmatprep.subr.bf16.mxu0 0
      %601 = vmatpush1.bf16.msra.mxu0 0
      %602 = vmatprep.subr.bf16.mxu0 0
      %603 = vmatpush1.bf16.msra.mxu0 0
      %604 = vmatprep.subr.bf16.mxu0 0
      %605 = vmatpush1.bf16.msra.mxu0 0
      %606 = vmatprep.subr.bf16.mxu0 0
      %607 = vmatpush1.bf16.msra.mxu0 0
      %608 = vmatprep.subr.bf16.mxu0 0
      %609 = vmatpush1.bf16.msra.mxu0 0
      %610 = vmatprep.subr.bf16.mxu0 0
      %611 = vmatpush1.bf16.msra.mxu0 0
      %612 = vmatprep.subr.bf16.mxu0 0
      %613 = vmatpush1.bf16.msra.mxu0 0
      %614 = vmatprep.mubr.bf16.mxu0 0
      %615 = vmatmul.mubr.bf16.gmra.mrb[0].mxu0 %v580
      %v616 = vpop.f32.mrb[0].mxu0
      %v617 = vadd.f32 0.0, %v616
      %v618 = vpop.f32.mrb[0].mxu0
      %v619 = vpop.f32.mrb[0].mxu0
      %v620 = vadd.f32 0.0, %v619
      %v621 = vpop.f32.mrb[0].mxu0
      %622 = vdwg.mxu0
      %v623 = vadd.f32 %v539, %v617
      %v624 = vadd.f32 %v542, %v620
      %v626 = vunpack.c.l.s4 1983009808
      %v627 = vunpack.c.0.s8 %v626
      %v628 = vlaneseq
      %v629 = vshrl.u32 %v628, 7
      %v630 = vsub.s32 %v627, %v629
      %v631 = vrot.slane %v290, %v630
      %v632 = vcombine.high %v631, %v631
      %v634 = vshrl.u32 %v631, 16
      %v636 = vrot.slane %v634, 6
      %v637 = vshll.u32 %v631, 16
      %v639 = vrot.slane %v637, 7
      %v640 = vor.u32 %v636, %v639
      %v641 = vrot.slane %v640, 2
      %v643 = vshll.u32 %v632, 16
      %v645 = vrot.slane %v643, 7
      %v646 = vsel %vm337, %v641, %v645
      %v647 = vld [vmem:[%s2 + $0x30] sm:$0xf]
      %v648 = vld [vmem:[%s2 + $0x34] sm:$0xf]
      %v649 = vld [vmem:[%s2 + $0x38] sm:$0xf]
      %v650 = vld [vmem:[%s2 + $0x3c] sm:$0xf]
      %v651 = vcombine.low %v365, %v379
      %v652 = vcombine.low %v393, %v646
      %v654 = vunpack.c.l.s4 1983009808
      %v655 = vunpack.c.0.s8 %v654
      %v656 = vlaneseq
      %v657 = vshrl.u32 %v656, 7
      %v658 = vsub.s32 %v655, %v657
      %v659 = vrot.slane %v651, %v658
      %v661 = vunpack.c.l.s4 1983009808
      %v662 = vunpack.c.0.s8 %v661
      %v663 = vlaneseq
      %v664 = vshrl.u32 %v663, 7
      %v665 = vsub.s32 %v662, %v664
      %v666 = vrot.slane %v652, %v665
      %v667 = vcombine.low %v659, %v666
      %v672 = vunpack.c.l.b16 %v647
      %v673 = vunpack.c.l.b16 %v648
      %v674 = vunpack.c.l.b16 %v649
      %v675 = vunpack.c.l.b16 %v650
      %v676 = vpack.c.b16 %v673, %v672
      %v677 = vpack.c.b16 %v675, %v674
      %v681 = vsel %vm427, %v667, 0
      %683 = vmatprep.subr.bf16.mxu0 0
      %684 = vmatpush1.bf16.msra.mxu0 %v676
      %685 = vmatprep.subr.bf16.mxu0 0
      %686 = vmatpush1.bf16.msra.mxu0 %v677
      %687 = vmatprep.subr.bf16.mxu0 0
      %688 = vmatpush1.bf16.msra.mxu0 0
      %689 = vmatprep.subr.bf16.mxu0 0
      %690 = vmatpush1.bf16.msra.mxu0 0
      %691 = vmatprep.subr.bf16.mxu0 0
      %692 = vmatpush1.bf16.msra.mxu0 0
      %693 = vmatprep.subr.bf16.mxu0 0
      %694 = vmatpush1.bf16.msra.mxu0 0
      %695 = vmatprep.subr.bf16.mxu0 0
      %696 = vmatpush1.bf16.msra.mxu0 0
      %697 = vmatprep.subr.bf16.mxu0 0
      %698 = vmatpush1.bf16.msra.mxu0 0
      %699 = vmatprep.subr.bf16.mxu0 0
      %700 = vmatpush1.bf16.msra.mxu0 0
      %701 = vmatprep.subr.bf16.mxu0 0
      %702 = vmatpush1.bf16.msra.mxu0 0
      %703 = vmatprep.subr.bf16.mxu0 0
      %704 = vmatpush1.bf16.msra.mxu0 0
      %705 = vmatprep.subr.bf16.mxu0 0
      %706 = vmatpush1.bf16.msra.mxu0 0
      %707 = vmatprep.subr.bf16.mxu0 0
      %708 = vmatpush1.bf16.msra.mxu0 0
      %709 = vmatprep.subr.bf16.mxu0 0
      %710 = vmatpush1.bf16.msra.mxu0 0
      %711 = vmatprep.subr.bf16.mxu0 0
      %712 = vmatpush1.bf16.msra.mxu0 0
      %713 = vmatprep.subr.bf16.mxu0 0
      %714 = vmatpush1.bf16.msra.mxu0 0
      %715 = vmatprep.mubr.bf16.mxu0 0
      %716 = vmatmul.mubr.bf16.gmra.mrb[0].mxu0 %v681
      %v717 = vpop.f32.mrb[0].mxu0
      %v718 = vadd.f32 0.0, %v717
      %v719 = vpop.f32.mrb[0].mxu0
      %v720 = vpop.f32.mrb[0].mxu0
      %v721 = vadd.f32 0.0, %v720
      %v722 = vpop.f32.mrb[0].mxu0
      %723 = vdwg.mxu0
      %v724 = vadd.f32 %v623, %v718
      %v725 = vadd.f32 %v624, %v721
      %v726 = vld [vmem:[%s3] sm:$0x1]
      %v728 = vlaneseq
      %v729 = vshrl.u32 %v728, 7
      %v730 = vsub.s32 0, %v729
      %v731 = vrot.slane %v726, %v730
      %v733 = vadd.f32 %v724, %v731
      %v734 = vadd.f32 %v725, %v731
      %v735 = vmax.f32 %v733, 0.0
      %v736 = vmax.f32 %v734, 0.0
      %v737 = vpack.c.bf16 %v736, %v735
      %v739 = vcombine.high %v737, %v737
      %v741 = vunpack.c.l.s4 1983009808
      %v742 = vunpack.c.0.s8 %v741
      %v743 = vlaneseq
      %v744 = vshrl.u32 %v743, 7
      %v745 = vsub.s32 %v742, %v744
      %v746 = vrot.slane %v737, %v745
      %v748 = vunpack.c.l.s4 1983009808
      %v749 = vunpack.c.0.s8 %v748
      %v750 = vlaneseq
      %v751 = vshrl.u32 %v750, 7
      %v752 = vsub.s32 %v749, %v751
      %v753 = vrot.slane %v739, %v752
      %v754 = vcombine.high %v746, %v746
      %v755 = vcombine.high %v753, %v753
      %vm760 = vcmask 517120
      %761 = vst.msk [vmem:[%s283] sm:$0x3] %vm760, %v746
      %762 = vst.msk [vmem:[%s283 + $0x2] sm:$0x3] %vm760, %v754
      %763 = vst.msk [vmem:[%s283 + $0x4] sm:$0x3] %vm760, %v753
      %764 = vst.msk [vmem:[%s283 + $0x6] sm:$0x3] %vm760, %v755
      %s765 = smul.u32 4, %s20
      %p766 = scmp.lt.s32.totalorder %s19, 1
      %s767 = scalar_select %p766, %s19, 1
      %p768 = scmp.lt.s32.totalorder %s765, 3
      %s769 = scalar_select %p768, %s765, 3
      %s770 = smul.addr %s767, 4
      %s771 = sadd.s32 %s769, %s770
      %s772 = smul.addr %s771, 2
      %s773 = scalar_lea.vmem %s4, %s772
      // Predicated region
      $region37: #{_forward_impl.10} parent=35 // pred_check
        %p774 = pneg %p145
      $region38: #{_forward_impl.10} parent=35 // pred_check_branch
        %776 = sbr.rel (%p774) target = $region40
      $region39: #{_forward_impl.10} parent=35 // pred_region
        %s777 = smul.u32 4, %s20
      $region40: #{_forward_impl.10} parent=35 // pred_fallthru
        _
    $region36: #{_forward_impl.10} parent=5 // pred_fallthru
      _
    %p778 = scmp.le.s32.totalorder 2, %s10
    // Predicated region
    $region41: #{_forward_impl.10} parent=5 // pred_check
      %p779 = pneg %p778
    $region42: #{_forward_impl.10} parent=5 // pred_check_branch
      %781 = sbr.rel (%p779) target = $region44
    $region43: #{_forward_impl.10} parent=5 // pred_region
      %s782 = ssub.s32 %s10, 2
      // Predicated region
      $region45: #{_forward_impl.10} parent=43 // pred_check
        %p783 = pneg %p151
      $region46: #{_forward_impl.10} parent=43 // pred_check_branch
        %785 = sbr.rel (%p783) target = $region48
      $region47: #{_forward_impl.10} parent=43 // pred_region
        %s786 = smul.u32 4, %s22
        %p787 = scmp.lt.s32.totalorder %s21, 1
        %s788 = scalar_select %p787, %s21, 1
        %p789 = scmp.lt.s32.totalorder %s786, 3
        %s790 = scalar_select %p789, %s786, 3
        %s791 = smul.addr %s788, 4
        %s792 = sadd.s32 %s790, %s791
        %s793 = smul.addr %s792, 2
        %s794 = scalar_lea.vmem %s4, %s793
      $region48: #{_forward_impl.10} parent=43 // pred_fallthru
        _
    $region44: #{_forward_impl.10} parent=5 // pred_fallthru
      _
  $region6: #{_forward_impl.10} parent=0 // loop_footer
    %s14 = sadd.s32 1, %s10
  $region7: #{_forward_impl.10} parent=0 // loop_footer_branch
    %9 = sbr.rel target = $region3
  $region8: #{_forward_impl.10} parent=0 // loop_exit
    _

// kernel: _forward_impl.11
$region0: #{_forward_impl.11}
  #allocation0 [shape = 'u32[]', space=smem, size = 0x4, offset = 0x4, fixed_abs, tag = 'smem constant byte address 0x4 - core index']
  #allocation1 [shape = 'u32[144,128]{1,0:T(1,128)}', space=vmem, size = 0x12000, scoped, tag = 'internal scratch']
  %s0 = inlined_call_operand.vmem [shape: bf16[2,9,9,16], index: 0, kind: input, shape index: {}]
  %s1 = inlined_call_operand.vmem [shape: bf16[2,1,9,16], index: 1, kind: input, shape index: {}]
  %s2 = inlined_call_operand.vmem [shape: bf16[64,12], index: 2, kind: input, shape index: {}]
  %s3 = inlined_call_operand.vmem [shape: f32[1,12], index: 3, kind: input, shape index: {}]
  %s4 = inlined_call_operand.vmem [shape: bf16[2,8,8,12], index: 4, kind: output, shape index: {}]
  %s5 = sld [smem:[#allocation0]]
  $region49: #{_forward_impl.11} parent=0
    _
  %s7 = ssub.s32 1, %s5
  %s8 = scalar_select 0, %s7, %s5
  loop: start=0, step=1, limit=4
  $region2: #{_forward_impl.11} parent=0 // loop_pre_header
    _
  $region3: #{_forward_impl.11} parent=0 // loop_header
    %s10 = sphi 0, %s14
    %p11 = scmp.ge.s32.totalorder %s10, 4
    %s17 = sphi 0, %s29
    %s18 = sphi 0, %s25
    %s19 = sphi 0, %s17
    %s20 = sphi 0, %s18
    %s21 = sphi 0, %s19
    %s22 = sphi 0, %s20
    %s34 = sphi 0, %s36
    %s37 = sphi 0, %s34
    %s38 = sphi 0, %s37
    %s54 = sphi 0, %s38
    %s62 = sphi 0, %s64
    %s65 = sphi 0, %s62
    %s66 = sphi 0, %s65
    %s82 = sphi 0, %s66
    %s86 = sphi 0, %s86
    %s88 = sphi 0, %s86
    %s89 = sphi 0, %s88
    %s103 = sphi 0, %s89
    %s107 = sphi 0, %s107
    %s109 = sphi 0, %s107
    %s110 = sphi 0, %s109
    %s124 = sphi 0, %s110
    %s132 = sphi 0, %s134
    %s135 = sphi 0, %s132
    %s136 = sphi 0, %s135
    %s152 = sphi 0, %s136
  $region4: #{_forward_impl.11} parent=0 // loop_header_branch
    %13 = sbr.rel (%p11) target = $region8
  $region5: #{_forward_impl.11} parent=0 // loop_body
    %s15 = ssub.s32 %s10, 1
    %s16 = ssub.s32 %s10, 2
    %s23 = sadd.s32 1, %s18
    %p24 = scmp.ge.s32.totalorder %s23, 1
    %s25 = scalar_select %p24, 0, %s23
    %s26 = sadd.s32 1, %s17
    %s27 = scalar_select %p24, %s26, %s17
    %p28 = scmp.ge.s32.totalorder %s27, 2
    %s29 = scalar_select %p28, 0, %s27
    %s30 = ssub.s32 %s17, %s29
    %s31 = ssub.s32 %s18, %s25
    %s32 = sor.u32 %s30, %s31
    %p33 = scmp.eq.s32.totalorder %s32, 0
    %s35 = sadd.s32 %s34, 1
    %s36 = scalar_select %p33, %s34, %s35
    %p39 = pneg %p33
    %p40 = scmp.eq.s32.totalorder %s10, 1
    %p41 = por %p39, %p40
    %p42 = scmp.ne.s32.totalorder %s34, %s37
    %p43 = scmp.eq.s32.totalorder %s10, 0
    %p44 = por %p42, %p43
    %p45 = scmp.ne.s32.totalorder %s34, %s37
    %p46 = scmp.eq.s32.totalorder %s15, 1
    %p47 = por %p45, %p46
    %p48 = scmp.ne.s32.totalorder %s37, %s38
    %p49 = scmp.eq.s32.totalorder %s15, 0
    %p50 = por %p48, %p49
    %p51 = scmp.ne.s32.totalorder %s37, %s38
    %p52 = scmp.eq.s32.totalorder %s16, 1
    %p53 = por %p51, %p52
    %p55 = scmp.ne.s32.totalorder %s38, %s54
    %p56 = scmp.eq.s32.totalorder %s16, 0
    %p57 = por %p55, %p56
    %s58 = ssub.s32 %s17, %s29
    %s59 = ssub.s32 %s18, %s25
    %s60 = sor.u32 %s58, %s59
    %p61 = scmp.eq.s32.totalorder %s60, 0
    %s63 = sadd.s32 %s62, 1
    %s64 = scalar_select %p61, %s62, %s63
    %p67 = pneg %p61
    %p68 = scmp.eq.s32.totalorder %s10, 1
    %p69 = por %p67, %p68
    %p70 = scmp.ne.s32.totalorder %s62, %s65
    %p71 = scmp.eq.s32.totalorder %s10, 0
    %p72 = por %p70, %p71
    %p73 = scmp.ne.s32.totalorder %s62, %s65
    %p74 = scmp.eq.s32.totalorder %s15, 1
    %p75 = por %p73, %p74
    %p76 = scmp.ne.s32.totalorder %s65, %s66
    %p77 = scmp.eq.s32.totalorder %s15, 0
    %p78 = por %p76, %p77
    %p79 = scmp.ne.s32.totalorder %s65, %s66
    %p80 = scmp.eq.s32.totalorder %s16, 1
    %p81 = por %p79, %p80
    %p83 = scmp.ne.s32.totalorder %s66, %s82
    %p84 = scmp.eq.s32.totalorder %s16, 0
    %p85 = por %p83, %p84
    %s87 = sadd.s32 %s86, 1
    %p90 = scmp.eq.s32.totalorder %s10, 1
    %p91 = scmp.ne.s32.totalorder %s86, %s88
    %p92 = scmp.eq.s32.totalorder %s10, 0
    %p93 = por %p91, %p92
    %p94 = scmp.ne.s32.totalorder %s86, %s88
    %p95 = scmp.eq.s32.totalorder %s15, 1
    %p96 = por %p94, %p95
    %p97 = scmp.ne.s32.totalorder %s88, %s89
    %p98 = scmp.eq.s32.totalorder %s15, 0
    %p99 = por %p97, %p98
    %p100 = scmp.ne.s32.totalorder %s88, %s89
    %p101 = scmp.eq.s32.totalorder %s16, 1
    %p102 = por %p100, %p101
    %p104 = scmp.ne.s32.totalorder %s89, %s103
    %p105 = scmp.eq.s32.totalorder %s16, 0
    %p106 = por %p104, %p105
    %s108 = sadd.s32 %s107, 1
    %p111 = scmp.eq.s32.totalorder %s10, 1
    %p112 = scmp.ne.s32.totalorder %s107, %s109
    %p113 = scmp.eq.s32.totalorder %s10, 0
    %p114 = por %p112, %p113
    %p115 = scmp.ne.s32.totalorder %s107, %s109
    %p116 = scmp.eq.s32.totalorder %s15, 1
    %p117 = por %p115, %p116
    %p118 = scmp.ne.s32.totalorder %s109, %s110
    %p119 = scmp.eq.s32.totalorder %s15, 0
    %p120 = por %p118, %p119
    %p121 = scmp.ne.s32.totalorder %s109, %s110
    %p122 = scmp.eq.s32.totalorder %s16, 1
    %p123 = por %p121, %p122
    %p125 = scmp.ne.s32.totalorder %s110, %s124
    %p126 = scmp.eq.s32.totalorder %s16, 0
    %p127 = por %p125, %p126
    %s128 = ssub.s32 %s17, %s29
    %s129 = ssub.s32 %s18, %s25
    %s130 = sor.u32 %s128, %s129
    %p131 = scmp.eq.s32.totalorder %s130, 0
    %s133 = sadd.s32 %s132, 1
    %s134 = scalar_select %p131, %s132, %s133
    %p137 = pneg %p131
    %p138 = scmp.eq.s32.totalorder %s10, 1
    %p139 = por %p137, %p138
    %p140 = scmp.ne.s32.totalorder %s132, %s135
    %p141 = scmp.eq.s32.totalorder %s10, 0
    %p142 = por %p140, %p141
    %p143 = scmp.ne.s32.totalorder %s132, %s135
    %p144 = scmp.eq.s32.totalorder %s15, 1
    %p145 = por %p143, %p144
    %p146 = scmp.ne.s32.totalorder %s135, %s136
    %p147 = scmp.eq.s32.totalorder %s15, 0
    %p148 = por %p146, %p147
    %p149 = scmp.ne.s32.totalorder %s135, %s136
    %p150 = scmp.eq.s32.totalorder %s16, 1
    %p151 = por %p149, %p150
    %p153 = scmp.ne.s32.totalorder %s136, %s152
    %p154 = scmp.eq.s32.totalorder %s16, 0
    %p155 = por %p153, %p154
    %p156 = scmp.le.s32.totalorder 1, %s10
    %p157 = scmp.lt.s32.totalorder %s10, 3
    %p158 = pnand %p156, %p157
    %p159 = pneg %p158
    // Predicated region
    $region9: #{_forward_impl.11} parent=5 // pred_check
      _
    $region10: #{_forward_impl.11} parent=5 // pred_check_branch
      %161 = sbr.rel (%p158) target = $region12
    $region11: #{_forward_impl.11} parent=5 // pred_region
      %s162 = ssub.s32 %s10, 1
      // Predicated region
      $region13: #{_forward_impl.11} parent=11 // pred_check
        %p163 = pneg %p99
      $region14: #{_forward_impl.11} parent=11 // pred_check_branch
        %165 = sbr.rel (%p163) target = $region16
      $region15: #{_forward_impl.11} parent=11 // pred_region
        _
      $region16: #{_forward_impl.11} parent=11 // pred_fallthru
        _
      // Predicated region
      $region17: #{_forward_impl.11} parent=11 // pred_check
        %p166 = pneg %p120
      $region18: #{_forward_impl.11} parent=11 // pred_check_branch
        %168 = sbr.rel (%p166) target = $region20
      $region19: #{_forward_impl.11} parent=11 // pred_region
        _
      $region20: #{_forward_impl.11} parent=11 // pred_fallthru
        _
    $region12: #{_forward_impl.11} parent=5 // pred_fallthru
      _
    %p169 = scmp.lt.s32.totalorder %s10, 2
    // Predicated region
    $region21: #{_forward_impl.11} parent=5 // pred_check
      %p170 = pneg %p169
    $region22: #{_forward_impl.11} parent=5 // pred_check_branch
      %172 = sbr.rel (%p170) target = $region24
    $region23: #{_forward_impl.11} parent=5 // pred_region
      // Predicated region
      $region25: #{_forward_impl.11} parent=23 // pred_check
        %p173 = pneg %p44
      $region26: #{_forward_impl.11} parent=23 // pred_check_branch
        %175 = sbr.rel (%p173) target = $region28
      $region27: #{_forward_impl.11} parent=23 // pred_region
        %s176 = smul.u32 8, %s18
        %s177 = ssub.s32 9, %s176
        %p178 = scmp.lt.s32.totalorder %s177, 8
        %s179 = scalar_select %p178, %s177, 8
        %s180 = smul.u32 64, %s179
        %s181 = smul.u32 %s180, 2
        %p182 = scmp.lt.s32.totalorder %s17, 1
        %s183 = scalar_select %p182, %s17, 1
        %p184 = scmp.lt.s32.totalorder %s176, 8
        %s185 = scalar_select %p184, %s176, 8
        %s186 = smul.addr %s185, 2
        %s187 = smul.addr %s183, 18
        %s188 = sadd.s32 %s186, %s187
        %s189 = smul.addr %s188, 4
        %s190 = scalar_lea.vmem %s0, %s189
        %s191 = smul.u32 8, %s18
        %s192 = ssub.s32 9, %s191
        %p193 = scmp.lt.s32.totalorder %s192, 8
        %s194 = scalar_select %p193, %s192, 8
        %s195 = smul.u32 64, %s194
        %s196 = smul.u32 %s195, 2
      $region28: #{_forward_impl.11} parent=23 // pred_fallthru
        _
      // Predicated region
      $region29: #{_forward_impl.11} parent=23 // pred_check
        %p197 = pneg %p72
      $region30: #{_forward_impl.11} parent=23 // pred_check_branch
        %199 = sbr.rel (%p197) target = $region32
      $region31: #{_forward_impl.11} parent=23 // pred_region
        %p200 = scmp.lt.s32.totalorder %s17, 1
        %s201 = scalar_select %p200, %s17, 1
        %p202 = scmp.lt.s32.totalorder %s18, 0
        %s203 = scalar_select %p202, %s18, 0
        %s204 = smul.addr %s203, 2
        %s205 = smul.addr %s201, 2
        %s206 = sadd.s32 %s204, %s205
        %s207 = smul.addr %s206, 4
        %s208 = scalar_lea.vmem %s1, %s207
      $region32: #{_forward_impl.11} parent=23 // pred_fallthru
        _
    $region24: #{_forward_impl.11} parent=5 // pred_fallthru
      _
    %p209 = scmp.le.s32.totalorder 1, %s10
    %p210 = scmp.lt.s32.totalorder %s10, 3
    %p211 = pnand %p209, %p210
    %p212 = pneg %p211
    // Predicated region
    $region33: #{_forward_impl.11} parent=5 // pred_check
      _
    $region34: #{_forward_impl.11} parent=5 // pred_check_branch
      %214 = sbr.rel (%p211) target = $region36
    $region35: #{_forward_impl.11} parent=5 // pred_region
      %s215 = ssub.s32 %s10, 1
      %s216 = smul.u32 8, %s20
      %s217 = ssub.s32 9, %s216
      %p218 = scmp.lt.s32.totalorder %s217, 8
      %s219 = scalar_select %p218, %s217, 8
      %s220 = smul.u32 64, %s219
      %s221 = smul.u32 %s220, 2
      %p222 = scmp.lt.s32.totalorder %s19, 1
      %s223 = scalar_select %p222, %s19, 1
      %p224 = scmp.lt.s32.totalorder %s216, 8
      %s225 = scalar_select %p224, %s216, 8
      %s226 = smul.addr %s225, 2
      %s227 = smul.addr %s223, 18
      %s228 = sadd.s32 %s226, %s227
      %s229 = smul.addr %s228, 4
      %s230 = scalar_lea.vmem %s0, %s229
      %p231 = pneg %p50
      %p232 = pneg %p47
      %p233 = scmp.lt.s32.totalorder %s19, 1
      %s234 = scalar_select %p233, %s19, 1
      %p235 = scmp.lt.s32.totalorder %s20, 0
      %s236 = scalar_select %p235, %s20, 0
      %s237 = smul.addr %s236, 2
      %s238 = smul.addr %s234, 2
      %s239 = sadd.s32 %s237, %s238
      %s240 = smul.addr %s239, 4
      %s241 = scalar_lea.vmem %s1, %s240
      %p242 = pneg %p78
      %p243 = pneg %p75
      %p244 = pneg %p99
      %p245 = pneg %p96
      %p246 = pneg %p120
      %p247 = pneg %p117
      %p248 = pneg %p148
      %p249 = pneg %p145
      %s250 = smul.u32 8, %s20
      %p251 = scmp.lt.s32.totalorder %s19, 1
      %s252 = scalar_select %p251, %s19, 1
      %p253 = scmp.lt.s32.totalorder %s250, 7
      %s254 = scalar_select %p253, %s250, 7
      %s255 = smul.addr %s252, 8
      %s256 = sadd.s32 %s254, %s255
      %s257 = smul.addr %s256, 4
      %s258 = scalar_lea.vmem %s4, %s257
      %s259 = smul.u32 8, %s20
      %s260 = ssub.s32 9, %s259
      %p261 = scmp.lt.s32.totalorder %s260, 8
      %s262 = scalar_select %p261, %s260, 8
      %s263 = smul.u32 64, %s262
      %s264 = smul.u32 %s263, 2
      %p265 = scmp.lt.s32.totalorder %s19, 1
      %s266 = scalar_select %p265, %s19, 1
      %p267 = scmp.lt.s32.totalorder %s259, 8
      %s268 = scalar_select %p267, %s259, 8
      %s269 = smul.addr %s268, 2
      %s270 = smul.addr %s266, 18
      %s271 = sadd.s32 %s269, %s270
      %s272 = smul.addr %s271, 4
      %s273 = scalar_lea.vmem %s0, %s272
      %s274 = smul.u32 8, %s20
      %s275 = ssub.s32 9, %s274
      %p276 = scmp.lt.s32.totalorder %s275, 8
      %s277 = scalar_select %p276, %s275, 8
      %s278 = smul.u32 64, %s277
      %s279 = smul.u32 %s278, 2
      %p280 = scmp.lt.s32.totalorder %s19, 1
      %s281 = scalar_select %p280, %s19, 1
      %p282 = scmp.lt.s32.totalorder %s20, 0
      %s283 = scalar_select %p282, %s20, 0
      %s284 = smul.addr %s283, 2
      %s285 = smul.addr %s281, 2
      %s286 = sadd.s32 %s284, %s285
      %s287 = smul.addr %s286, 4
      %s288 = scalar_lea.vmem %s1, %s287
      %s289 = smul.u32 8, %s20
      %p290 = scmp.lt.s32.totalorder %s19, 1
      %s291 = scalar_select %p290, %s19, 1
      %p292 = scmp.lt.s32.totalorder %s289, 7
      %s293 = scalar_select %p292, %s289, 7
      %s294 = smul.addr %s291, 8
      %s295 = sadd.s32 %s293, %s294
      %s296 = smul.addr %s295, 4
      %s297 = scalar_lea.vmem %s4, %s296
      %s298 = smul.u32 8, %s20
      %v300 = vld [vmem:[%s273] sm:$0xf]
      %v301 = vld [vmem:[%s273 + $0x4] sm:$0x1]
      %v302 = vld [vmem:[%s273 + $0x8] sm:$0xf]
      %v303 = vld [vmem:[%s273 + $0xc] sm:$0x1]
      %v304 = vld [vmem:[%s273 + $0x10] sm:$0xf]
      %v305 = vld [vmem:[%s273 + $0x14] sm:$0x1]
      %v306 = vld [vmem:[%s273 + $0x18] sm:$0xf]
      %v307 = vld [vmem:[%s273 + $0x1c] sm:$0x1]
      %v308 = vld [vmem:[%s273 + $0x20] sm:$0xf]
      %v309 = vld [vmem:[%s273 + $0x24] sm:$0x1]
      %v310 = vld [vmem:[%s273 + $0x28] sm:$0xf]
      %v311 = vld [vmem:[%s273 + $0x2c] sm:$0x1]
      %v312 = vld [vmem:[%s273 + $0x30] sm:$0xf]
      %v313 = vld [vmem:[%s273 + $0x34] sm:$0x1]
      %v314 = vld [vmem:[%s273 + $0x38] sm:$0xf]
      %v315 = vld [vmem:[%s273 + $0x3c] sm:$0x1]
      %v316 = vld [vmem:[%s288] sm:$0xf]
      %v317 = vld [vmem:[%s288 + $0x4] sm:$0x1]
      %v318 = vld [vmem:[%s2] sm:$0xf]
      %v319 = vld [vmem:[%s2 + $0x4] sm:$0xf]
      %vm320 = vsmask.f32 3328
      %vm321 = vsmask.f32 7440
      %vm322 = vmor %vm320, %vm321
      %v324 = vshrl.u32 %v300, 16
      %v326 = vrot.slane %v324, 4
      %v327 = vshll.u32 %v300, 16
      %v329 = vrot.slane %v327, 5
      %v330 = vor.u32 %v326, %v329
      %v331 = vrot.slane %v330, 4
      %v333 = vshll.u32 %v301, 16
      %v335 = vrot.slane %v333, 5
      %v336 = vsel %vm322, %v331, %v335
      %v338 = vshrl.u32 %v302, 16
      %v340 = vrot.slane %v338, 4
      %v341 = vshll.u32 %v302, 16
      %v343 = vrot.slane %v341, 5
      %v344 = vor.u32 %v340, %v343
      %v345 = vrot.slane %v344, 4
      %v347 = vshll.u32 %v303, 16
      %v349 = vrot.slane %v347, 5
      %v350 = vsel %vm322, %v345, %v349
      %v352 = vshrl.u32 %v304, 16
      %v354 = vrot.slane %v352, 4
      %v355 = vshll.u32 %v304, 16
      %v357 = vrot.slane %v355, 5
      %v358 = vor.u32 %v354, %v357
      %v359 = vrot.slane %v358, 4
      %v361 = vshll.u32 %v305, 16
      %v363 = vrot.slane %v361, 5
      %v364 = vsel %vm322, %v359, %v363
      %v366 = vshrl.u32 %v306, 16
      %v368 = vrot.slane %v366, 4
      %v369 = vshll.u32 %v306, 16
      %v371 = vrot.slane %v369, 5
      %v372 = vor.u32 %v368, %v371
      %v373 = vrot.slane %v372, 4
      %v375 = vshll.u32 %v307, 16
      %v377 = vrot.slane %v375, 5
      %v378 = vsel %vm322, %v373, %v377
      %v380 = vshrl.u32 %v308, 16
      %v382 = vrot.slane %v380, 4
      %v383 = vshll.u32 %v308, 16
      %v385 = vrot.slane %v383, 5
      %v386 = vor.u32 %v382, %v385
      %v387 = vrot.slane %v386, 4
      %v389 = vshll.u32 %v309, 16
      %v391 = vrot.slane %v389, 5
      %v392 = vsel %vm322, %v387, %v391
      %v394 = vshrl.u32 %v310, 16
      %v396 = vrot.slane %v394, 4
      %v397 = vshll.u32 %v310, 16
      %v399 = vrot.slane %v397, 5
      %v400 = vor.u32 %v396, %v399
      %v401 = vrot.slane %v400, 4
      %v403 = vshll.u32 %v311, 16
      %v405 = vrot.slane %v403, 5
      %v406 = vsel %vm322, %v401, %v405
      %v408 = vshrl.u32 %v312, 16
      %v410 = vrot.slane %v408, 4
      %v411 = vshll.u32 %v312, 16
      %v413 = vrot.slane %v411, 5
      %v414 = vor.u32 %v410, %v413
      %v415 = vrot.slane %v414, 4
      %v417 = vshll.u32 %v313, 16
      %v419 = vrot.slane %v417, 5
      %v420 = vsel %vm322, %v415, %v419
      %v422 = vshrl.u32 %v314, 16
      %v424 = vrot.slane %v422, 4
      %v425 = vshll.u32 %v314, 16
      %v427 = vrot.slane %v425, 5
      %v428 = vor.u32 %v424, %v427
      %v429 = vrot.slane %v428, 4
      %v431 = vshll.u32 %v315, 16
      %v433 = vrot.slane %v431, 5
      %v434 = vsel %vm322, %v429, %v433
      %v435 = vld [vmem:[%s2 + $0x8] sm:$0xf]
      %v436 = vld [vmem:[%s2 + $0xc] sm:$0xf]
      %v437 = vunpack.c.l.b16 %v336
      %v438 = vunpack.c.l.b16 %v350
      %v439 = vunpack.c.l.b16 %v364
      %v440 = vunpack.c.l.b16 %v378
      %v441 = vunpack.c.l.b16 %v392
      %v442 = vunpack.c.l.b16 %v406
      %v443 = vunpack.c.l.b16 %v420
      %v444 = vunpack.c.l.b16 %v434
      %v445 = vpack.c.b16 %v438, %v437
      %v446 = vpack.c.b16 %v440, %v439
      %v447 = vpack.c.b16 %v442, %v441
      %v448 = vpack.c.b16 %v444, %v443
      %v451 = vunpack.c.l.b16 %v435
      %v452 = vunpack.c.l.b16 %v436
      %v453 = vpack.c.b16 %v452, %v451
      %vm455 = vcmask 130048
      %v457 = vsel %vm455, %v445, 0
      %v460 = vsel %vm455, %v446, 0
      %v463 = vsel %vm455, %v447, 0
      %v466 = vsel %vm455, %v448, 0
      %468 = vmatprep.subr.bf16.mxu0 0
      %469 = vmatpush1.bf16.msra.mxu0 %v453
      %470 = vmatprep.subr.bf16.mxu0 0
      %471 = vmatpush1.bf16.msra.mxu0 0
      %472 = vmatprep.subr.bf16.mxu0 0
      %473 = vmatpush1.bf16.msra.mxu0 0
      %474 = vmatprep.subr.bf16.mxu0 0
      %475 = vmatpush1.bf16.msra.mxu0 0
      %476 = vmatprep.subr.bf16.mxu0 0
      %477 = vmatpush1.bf16.msra.mxu0 0
      %478 = vmatprep.subr.bf16.mxu0 0
      %479 = vmatpush1.bf16.msra.mxu0 0
      %480 = vmatprep.subr.bf16.mxu0 0
      %481 = vmatpush1.bf16.msra.mxu0 0
      %482 = vmatprep.subr.bf16.mxu0 0
      %483 = vmatpush1.bf16.msra.mxu0 0
      %484 = vmatprep.subr.bf16.mxu0 0
      %485 = vmatpush1.bf16.msra.mxu0 0
      %486 = vmatprep.subr.bf16.mxu0 0
      %487 = vmatpush1.bf16.msra.mxu0 0
      %488 = vmatprep.subr.bf16.mxu0 0
      %489 = vmatpush1.bf16.msra.mxu0 0
      %490 = vmatprep.subr.bf16.mxu0 0
      %491 = vmatpush1.bf16.msra.mxu0 0
      %492 = vmatprep.subr.bf16.mxu0 0
      %493 = vmatpush1.bf16.msra.mxu0 0
      %494 = vmatprep.subr.bf16.mxu0 0
      %495 = vmatpush1.bf16.msra.mxu0 0
      %496 = vmatprep.subr.bf16.mxu0 0
      %497 = vmatpush1.bf16.msra.mxu0 0
      %498 = vmatprep.subr.bf16.mxu0 0
      %499 = vmatpush1.bf16.msra.mxu0 0
      %500 = vmatprep.mubr.bf16.mxu0 0
      %501 = vmatmul.mubr.bf16.gmra.mrb[0].mxu0 %v457
      %v502 = vpop.f32.mrb[0].mxu0
      %v503 = vadd.f32 0.0, %v502
      %v504 = vpop.f32.mrb[0].mxu0
      %v505 = vpop.f32.mrb[0].mxu0
      %v506 = vadd.f32 0.0, %v505
      %v507 = vpop.f32.mrb[0].mxu0
      %508 = vmatprep.mubr.bf16.mxu0 0
      %509 = vmatmul.mubr.bf16.gmra.mrb[0].mxu0 %v460
      %v510 = vpop.f32.mrb[0].mxu0
      %v511 = vadd.f32 0.0, %v510
      %v512 = vpop.f32.mrb[0].mxu0
      %v513 = vpop.f32.mrb[0].mxu0
      %v514 = vadd.f32 0.0, %v513
      %v515 = vpop.f32.mrb[0].mxu0
      %516 = vmatprep.mubr.bf16.mxu0 0
      %517 = vmatmul.mubr.bf16.gmra.mrb[0].mxu0 %v463
      %v518 = vpop.f32.mrb[0].mxu0
      %v519 = vadd.f32 0.0, %v518
      %v520 = vpop.f32.mrb[0].mxu0
      %v521 = vpop.f32.mrb[0].mxu0
      %v522 = vadd.f32 0.0, %v521
      %v523 = vpop.f32.mrb[0].mxu0
      %524 = vmatprep.mubr.bf16.mxu0 0
      %525 = vmatmul.mubr.bf16.gmra.mrb[0].mxu0 %v466
      %v526 = vpop.f32.mrb[0].mxu0
      %v527 = vadd.f32 0.0, %v526
      %v528 = vpop.f32.mrb[0].mxu0
      %v529 = vpop.f32.mrb[0].mxu0
      %v530 = vadd.f32 0.0, %v529
      %v531 = vpop.f32.mrb[0].mxu0
      %532 = vdwg.mxu0
      %v541 = vunpack.c.l.b16 %v300
      %v542 = vunpack.c.l.b16 %v302
      %v543 = vunpack.c.l.b16 %v304
      %v544 = vunpack.c.l.b16 %v306
      %v545 = vunpack.c.l.b16 %v308
      %v546 = vunpack.c.l.b16 %v310
      %v547 = vunpack.c.l.b16 %v312
      %v548 = vunpack.c.l.b16 %v314
      %v549 = vpack.c.b16 %v542, %v541
      %v550 = vpack.c.b16 %v544, %v543
      %v551 = vpack.c.b16 %v546, %v545
      %v552 = vpack.c.b16 %v548, %v547
      %v555 = vunpack.c.l.b16 %v318
      %v556 = vunpack.c.l.b16 %v319
      %v557 = vpack.c.b16 %v556, %v555
      %v560 = vsel %vm455, %v549, 0
      %v563 = vsel %vm455, %v550, 0
      %v566 = vsel %vm455, %v551, 0
      %v569 = vsel %vm455, %v552, 0
      %571 = vmatprep.subr.bf16.mxu0 0
      %572 = vmatpush1.bf16.msra.mxu0 %v557
      %573 = vmatprep.subr.bf16.mxu0 0
      %574 = vmatpush1.bf16.msra.mxu0 0
      %575 = vmatprep.subr.bf16.mxu0 0
      %576 = vmatpush1.bf16.msra.mxu0 0
      %577 = vmatprep.subr.bf16.mxu0 0
      %578 = vmatpush1.bf16.msra.mxu0 0
      %579 = vmatprep.subr.bf16.mxu0 0
      %580 = vmatpush1.bf16.msra.mxu0 0
      %581 = vmatprep.subr.bf16.mxu0 0
      %582 = vmatpush1.bf16.msra.mxu0 0
      %583 = vmatprep.subr.bf16.mxu0 0
      %584 = vmatpush1.bf16.msra.mxu0 0
      %585 = vmatprep.subr.bf16.mxu0 0
      %586 = vmatpush1.bf16.msra.mxu0 0
      %587 = vmatprep.subr.bf16.mxu0 0
      %588 = vmatpush1.bf16.msra.mxu0 0
      %589 = vmatprep.subr.bf16.mxu0 0
      %590 = vmatpush1.bf16.msra.mxu0 0
      %591 = vmatprep.subr.bf16.mxu0 0
      %592 = vmatpush1.bf16.msra.mxu0 0
      %593 = vmatprep.subr.bf16.mxu0 0
      %594 = vmatpush1.bf16.msra.mxu0 0
      %595 = vmatprep.subr.bf16.mxu0 0
      %596 = vmatpush1.bf16.msra.mxu0 0
      %597 = vmatprep.subr.bf16.mxu0 0
      %598 = vmatpush1.bf16.msra.mxu0 0
      %599 = vmatprep.subr.bf16.mxu0 0
      %600 = vmatpush1.bf16.msra.mxu0 0
      %601 = vmatprep.subr.bf16.mxu0 0
      %602 = vmatpush1.bf16.msra.mxu0 0
      %603 = vmatprep.mubr.bf16.mxu0 0
      %604 = vmatmul.mubr.bf16.gmra.mrb[0].mxu0 %v560
      %v605 = vpop.f32.mrb[0].mxu0
      %v606 = vadd.f32 %v503, %v605
      %v607 = vpop.f32.mrb[0].mxu0
      %v608 = vpop.f32.mrb[0].mxu0
      %v609 = vadd.f32 %v506, %v608
      %v610 = vpop.f32.mrb[0].mxu0
      %611 = vmatprep.mubr.bf16.mxu0 0
      %612 = vmatmul.mubr.bf16.gmra.mrb[0].mxu0 %v563
      %v613 = vpop.f32.mrb[0].mxu0
      %v614 = vadd.f32 %v511, %v613
      %v615 = vpop.f32.mrb[0].mxu0
      %v616 = vpop.f32.mrb[0].mxu0
      %v617 = vadd.f32 %v514, %v616
      %v618 = vpop.f32.mrb[0].mxu0
      %619 = vmatprep.mubr.bf16.mxu0 0
      %620 = vmatmul.mubr.bf16.gmra.mrb[0].mxu0 %v566
      %v621 = vpop.f32.mrb[0].mxu0
      %v622 = vadd.f32 %v519, %v621
      %v623 = vpop.f32.mrb[0].mxu0
      %v624 = vpop.f32.mrb[0].mxu0
      %v625 = vadd.f32 %v522, %v624
      %v626 = vpop.f32.mrb[0].mxu0
      %627 = vmatprep.mubr.bf16.mxu0 0
      %628 = vmatmul.mubr.bf16.gmra.mrb[0].mxu0 %v569
      %v629 = vpop.f32.mrb[0].mxu0
      %v630 = vadd.f32 %v527, %v629
      %v631 = vpop.f32.mrb[0].mxu0
      %v632 = vpop.f32.mrb[0].mxu0
      %v633 = vadd.f32 %v530, %v632
      %v634 = vpop.f32.mrb[0].mxu0
      %635 = vdwg.mxu0
      %v636 = vld [vmem:[%s2 + $0x10] sm:$0xf]
      %v637 = vld [vmem:[%s2 + $0x14] sm:$0xf]
      %v639 = vunpack.c.l.b16 %v316
      %v640 = vpack.c.b16 %v543, %v542
      %v641 = vpack.c.b16 %v545, %v544
      %v642 = vpack.c.b16 %v547, %v546
      %v643 = vpack.c.b16 %v639, %v548
      %v646 = vunpack.c.l.b16 %v636
      %v647 = vunpack.c.l.b16 %v637
      %v648 = vpack.c.b16 %v647, %v646
      %v651 = vsel %vm455, %v640, 0
      %v654 = vsel %vm455, %v641, 0
      %v657 = vsel %vm455, %v642, 0
      %v660 = vsel %vm455, %v643, 0
      %662 = vmatprep.subr.bf16.mxu0 0
      %663 = vmatpush1.bf16.msra.mxu0 %v648
      %664 = vmatprep.subr.bf16.mxu0 0
      %665 = vmatpush1.bf16.msra.mxu0 0
      %666 = vmatprep.subr.bf16.mxu0 0
      %667 = vmatpush1.bf16.msra.mxu0 0
      %668 = vmatprep.subr.bf16.mxu0 0
      %669 = vmatpush1.bf16.msra.mxu0 0
      %670 = vmatprep.subr.bf16.mxu0 0
      %671 = vmatpush1.bf16.msra.mxu0 0
      %672 = vmatprep.subr.bf16.mxu0 0
      %673 = vmatpush1.bf16.msra.mxu0 0
      %674 = vmatprep.subr.bf16.mxu0 0
      %675 = vmatpush1.bf16.msra.mxu0 0
      %676 = vmatprep.subr.bf16.mxu0 0
      %677 = vmatpush1.bf16.msra.mxu0 0
      %678 = vmatprep.subr.bf16.mxu0 0
      %679 = vmatpush1.bf16.msra.mxu0 0
      %680 = vmatprep.subr.bf16.mxu0 0
      %681 = vmatpush1.bf16.msra.mxu0 0
      %682 = vmatprep.subr.bf16.mxu0 0
      %683 = vmatpush1.bf16.msra.mxu0 0
      %684 = vmatprep.subr.bf16.mxu0 0
      %685 = vmatpush1.bf16.msra.mxu0 0
      %686 = vmatprep.subr.bf16.mxu0 0
      %687 = vmatpush1.bf16.msra.mxu0 0
      %688 = vmatprep.subr.bf16.mxu0 0
      %689 = vmatpush1.bf16.msra.mxu0 0
      %690 = vmatprep.subr.bf16.mxu0 0
      %691 = vmatpush1.bf16.msra.mxu0 0
      %692 = vmatprep.subr.bf16.mxu0 0
      %693 = vmatpush1.bf16.msra.mxu0 0
      %694 = vmatprep.mubr.bf16.mxu0 0
      %695 = vmatmul.mubr.bf16.gmra.mrb[0].mxu0 %v651
      %v696 = vpop.f32.mrb[0].mxu0
      %v697 = vadd.f32 0.0, %v696
      %v698 = vpop.f32.mrb[0].mxu0
      %v699 = vpop.f32.mrb[0].mxu0
      %v700 = vadd.f32 0.0, %v699
      %v701 = vpop.f32.mrb[0].mxu0
      %702 = vmatprep.mubr.bf16.mxu0 0
      %703 = vmatmul.mubr.bf16.gmra.mrb[0].mxu0 %v654
      %v704 = vpop.f32.mrb[0].mxu0
      %v705 = vadd.f32 0.0, %v704
      %v706 = vpop.f32.mrb[0].mxu0
      %v707 = vpop.f32.mrb[0].mxu0
      %v708 = vadd.f32 0.0, %v707
      %v709 = vpop.f32.mrb[0].mxu0
      %710 = vmatprep.mubr.bf16.mxu0 0
      %711 = vmatmul.mubr.bf16.gmra.mrb[0].mxu0 %v657
      %v712 = vpop.f32.mrb[0].mxu0
      %v713 = vadd.f32 0.0, %v712
      %v714 = vpop.f32.mrb[0].mxu0
      %v715 = vpop.f32.mrb[0].mxu0
      %v716 = vadd.f32 0.0, %v715
      %v717 = vpop.f32.mrb[0].mxu0
      %718 = vmatprep.mubr.bf16.mxu0 0
      %719 = vmatmul.mubr.bf16.gmra.mrb[0].mxu0 %v660
      %v720 = vpop.f32.mrb[0].mxu0
      %v721 = vadd.f32 0.0, %v720
      %v722 = vpop.f32.mrb[0].mxu0
      %v723 = vpop.f32.mrb[0].mxu0
      %v724 = vadd.f32 0.0, %v723
      %v725 = vpop.f32.mrb[0].mxu0
      %726 = vdwg.mxu0
      %v727 = vadd.f32 %v606, %v697
      %v728 = vadd.f32 %v609, %v700
      %v729 = vadd.f32 %v614, %v705
      %v730 = vadd.f32 %v617, %v708
      %v731 = vadd.f32 %v622, %v713
      %v732 = vadd.f32 %v625, %v716
      %v733 = vadd.f32 %v630, %v721
      %v734 = vadd.f32 %v633, %v724
      %v736 = vshrl.u32 %v316, 16
      %v738 = vrot.slane %v736, 4
      %v739 = vshll.u32 %v316, 16
      %v741 = vrot.slane %v739, 5
      %v742 = vor.u32 %v738, %v741
      %v743 = vrot.slane %v742, 4
      %v745 = vshll.u32 %v317, 16
      %v747 = vrot.slane %v745, 5
      %v748 = vsel %vm322, %v743, %v747
      %v749 = vld [vmem:[%s2 + $0x18] sm:$0xf]
      %v750 = vld [vmem:[%s2 + $0x1c] sm:$0xf]
      %v751 = vunpack.c.l.b16 %v748
      %v752 = vpack.c.b16 %v439, %v438
      %v753 = vpack.c.b16 %v441, %v440
      %v754 = vpack.c.b16 %v443, %v442
      %v755 = vpack.c.b16 %v751, %v444
      %v758 = vunpack.c.l.b16 %v749
      %v759 = vunpack.c.l.b16 %v750
      %v760 = vpack.c.b16 %v759, %v758
      %v763 = vsel %vm455, %v752, 0
      %v766 = vsel %vm455, %v753, 0
      %v769 = vsel %vm455, %v754, 0
      %v772 = vsel %vm455, %v755, 0
      %774 = vmatprep.subr.bf16.mxu0 0
      %775 = vmatpush1.bf16.msra.mxu0 %v760
      %776 = vmatprep.subr.bf16.mxu0 0
      %777 = vmatpush1.bf16.msra.mxu0 0
      %778 = vmatprep.subr.bf16.mxu0 0
      %779 = vmatpush1.bf16.msra.mxu0 0
      %780 = vmatprep.subr.bf16.mxu0 0
      %781 = vmatpush1.bf16.msra.mxu0 0
      %782 = vmatprep.subr.bf16.mxu0 0
      %783 = vmatpush1.bf16.msra.mxu0 0
      %784 = vmatprep.subr.bf16.mxu0 0
      %785 = vmatpush1.bf16.msra.mxu0 0
      %786 = vmatprep.subr.bf16.mxu0 0
      %787 = vmatpush1.bf16.msra.mxu0 0
      %788 = vmatprep.subr.bf16.mxu0 0
      %789 = vmatpush1.bf16.msra.mxu0 0
      %790 = vmatprep.subr.bf16.mxu0 0
      %791 = vmatpush1.bf16.msra.mxu0 0
      %792 = vmatprep.subr.bf16.mxu0 0
      %793 = vmatpush1.bf16.msra.mxu0 0
      %794 = vmatprep.subr.bf16.mxu0 0
      %795 = vmatpush1.bf16.msra.mxu0 0
      %796 = vmatprep.subr.bf16.mxu0 0
      %797 = vmatpush1.bf16.msra.mxu0 0
      %798 = vmatprep.subr.bf16.mxu0 0
      %799 = vmatpush1.bf16.msra.mxu0 0
      %800 = vmatprep.subr.bf16.mxu0 0
      %801 = vmatpush1.bf16.msra.mxu0 0
      %802 = vmatprep.subr.bf16.mxu0 0
      %803 = vmatpush1.bf16.msra.mxu0 0
      %804 = vmatprep.subr.bf16.mxu0 0
      %805 = vmatpush1.bf16.msra.mxu0 0
      %806 = vmatprep.mubr.bf16.mxu0 0
      %807 = vmatmul.mubr.bf16.gmra.mrb[0].mxu0 %v763
      %v808 = vpop.f32.mrb[0].mxu0
      %v809 = vadd.f32 0.0, %v808
      %v810 = vpop.f32.mrb[0].mxu0
      %v811 = vpop.f32.mrb[0].mxu0
      %v812 = vadd.f32 0.0, %v811
      %v813 = vpop.f32.mrb[0].mxu0
      %814 = vmatprep.mubr.bf16.mxu0 0
      %815 = vmatmul.mubr.bf16.gmra.mrb[0].mxu0 %v766
      %v816 = vpop.f32.mrb[0].mxu0
      %v817 = vadd.f32 0.0, %v816
      %v818 = vpop.f32.mrb[0].mxu0
      %v819 = vpop.f32.mrb[0].mxu0
      %v820 = vadd.f32 0.0, %v819
      %v821 = vpop.f32.mrb[0].mxu0
      %822 = vmatprep.mubr.bf16.mxu0 0
      %823 = vmatmul.mubr.bf16.gmra.mrb[0].mxu0 %v769
      %v824 = vpop.f32.mrb[0].mxu0
      %v825 = vadd.f32 0.0, %v824
      %v826 = vpop.f32.mrb[0].mxu0
      %v827 = vpop.f32.mrb[0].mxu0
      %v828 = vadd.f32 0.0, %v827
      %v829 = vpop.f32.mrb[0].mxu0
      %830 = vmatprep.mubr.bf16.mxu0 0
      %831 = vmatmul.mubr.bf16.gmra.mrb[0].mxu0 %v772
      %v832 = vpop.f32.mrb[0].mxu0
      %v833 = vadd.f32 0.0, %v832
      %v834 = vpop.f32.mrb[0].mxu0
      %v835 = vpop.f32.mrb[0].mxu0
      %v836 = vadd.f32 0.0, %v835
      %v837 = vpop.f32.mrb[0].mxu0
      %838 = vdwg.mxu0
      %v839 = vadd.f32 %v727, %v809
      %v840 = vadd.f32 %v728, %v812
      %v841 = vadd.f32 %v729, %v817
      %v842 = vadd.f32 %v730, %v820
      %v843 = vadd.f32 %v731, %v825
      %v844 = vadd.f32 %v732, %v828
      %v845 = vadd.f32 %v733, %v833
      %v846 = vadd.f32 %v734, %v836
      %v847 = vld [vmem:[%s3] sm:$0x1]
      %v849 = vlaneseq
      %v850 = vshrl.u32 %v849, 7
      %v851 = vsub.s32 0, %v850
      %v852 = vrot.slane %v847, %v851
      %v854 = vadd.f32 %v839, %v852
      %v855 = vadd.f32 %v840, %v852
      %v856 = vadd.f32 %v841, %v852
      %v857 = vadd.f32 %v842, %v852
      %v858 = vadd.f32 %v843, %v852
      %v859 = vadd.f32 %v844, %v852
      %v860 = vadd.f32 %v845, %v852
      %v861 = vadd.f32 %v846, %v852
      %v862 = vxor.u32 %v854, 2147483648
      %v863 = vxor.u32 %v855, 2147483648
      %v864 = vxor.u32 %v856, 2147483648
      %v865 = vxor.u32 %v857, 2147483648
      %v866 = vxor.u32 %v858, 2147483648
      %v867 = vxor.u32 %v859, 2147483648
      %v868 = vxor.u32 %v860, 2147483648
      %v869 = vxor.u32 %v861, 2147483648
      %v870 = vmul.f32 %v862, 1.442695
      %v871 = vpow.pop %v870
      %v872 = vmul.f32 %v863, 1.442695
      %v873 = vpow.pop %v872
      %v874 = vmul.f32 %v864, 1.442695
      %v875 = vpow.pop %v874
      %v876 = vmul.f32 %v865, 1.442695
      %v877 = vpow.pop %v876
      %v878 = vmul.f32 %v866, 1.442695
      %v879 = vpow.pop %v878
      %v880 = vmul.f32 %v867, 1.442695
      %v881 = vpow.pop %v880
      %v882 = vmul.f32 %v868, 1.442695
      %v883 = vpow.pop %v882
      %v884 = vmul.f32 %v869, 1.442695
      %v885 = vpow.pop %v884
      %v886 = vadd.f32 %v871, 1.0
      %v887 = vadd.f32 %v873, 1.0
      %v888 = vadd.f32 %v875, 1.0
      %v889 = vadd.f32 %v877, 1.0
      %v890 = vadd.f32 %v879, 1.0
      %v891 = vadd.f32 %v881, 1.0
      %v892 = vadd.f32 %v883, 1.0
      %v893 = vadd.f32 %v885, 1.0
      %v894 = vrcp.pop %v886
      %v895 = vmul.f32 1.0, %v894
      %v896 = vrcp.pop %v887
      %v897 = vmul.f32 1.0, %v896
      %v898 = vrcp.pop %v888
      %v899 = vmul.f32 1.0, %v898
      %v900 = vrcp.pop %v889
      %v901 = vmul.f32 1.0, %v900
      %v902 = vrcp.pop %v890
      %v903 = vmul.f32 1.0, %v902
      %v904 = vrcp.pop %v891
      %v905 = vmul.f32 1.0, %v904
      %v906 = vrcp.pop %v892
      %v907 = vmul.f32 1.0, %v906
      %v908 = vrcp.pop %v893
      %v909 = vmul.f32 1.0, %v908
      %v910 = vpack.c.bf16 %v897, %v895
      %v911 = vpack.c.bf16 %v901, %v899
      %v912 = vpack.c.bf16 %v905, %v903
      %v913 = vpack.c.bf16 %v909, %v907
      %v918 = vunpack.c.l.b16 %v910
      %v919 = vunpack.c.h.b16 %v910
      %v920 = vunpack.c.l.b16 %v911
      %v921 = vunpack.c.h.b16 %v911
      %v922 = vunpack.c.l.b16 %v912
      %v923 = vunpack.c.h.b16 %v912
      %v924 = vunpack.c.l.b16 %v913
      %v925 = vunpack.c.h.b16 %v913
      %v926 = vpack.c.b16 %v918, %v918
      %v927 = vpack.c.b16 %v919, %v919
      %v928 = vpack.c.b16 %v920, %v920
      %v929 = vpack.c.b16 %v921, %v921
      %v930 = vpack.c.b16 %v922, %v922
      %v931 = vpack.c.b16 %v923, %v923
      %v932 = vpack.c.b16 %v924, %v924
      %v933 = vpack.c.b16 %v925, %v925
      %vm942 = vcmask 93184
      %943 = vst.msk [vmem:[%s297] sm:$0xf] %vm942, %v926
      %944 = vst.msk [vmem:[%s297 + $0x4] sm:$0xf] %vm942, %v927
      %945 = vst.msk [vmem:[%s297 + $0x8] sm:$0xf] %vm942, %v928
      %946 = vst.msk [vmem:[%s297 + $0xc] sm:$0xf] %vm942, %v929
      %947 = vst.msk [vmem:[%s297 + $0x10] sm:$0xf] %vm942, %v930
      %948 = vst.msk [vmem:[%s297 + $0x14] sm:$0xf] %vm942, %v931
      %949 = vst.msk [vmem:[%s297 + $0x18] sm:$0xf] %vm942, %v932
      %950 = vst.msk [vmem:[%s297 + $0x1c] sm:$0xf] %vm942, %v933
      %s951 = smul.u32 8, %s20
      %p952 = scmp.lt.s32.totalorder %s19, 1
      %s953 = scalar_select %p952, %s19, 1
      %p954 = scmp.lt.s32.totalorder %s951, 7
      %s955 = scalar_select %p954, %s951, 7
      %s956 = smul.addr %s953, 8
      %s957 = sadd.s32 %s955, %s956
      %s958 = smul.addr %s957, 4
      %s959 = scalar_lea.vmem %s4, %s958
      // Predicated region
      $region37: #{_forward_impl.11} parent=35 // pred_check
        %p960 = pneg %p145
      $region38: #{_forward_impl.11} parent=35 // pred_check_branch
        %962 = sbr.rel (%p960) target = $region40
      $region39: #{_forward_impl.11} parent=35 // pred_region
        %s963 = smul.u32 8, %s20
      $region40: #{_forward_impl.11} parent=35 // pred_fallthru
        _
    $region36: #{_forward_impl.11} parent=5 // pred_fallthru
      _
    %p964 = scmp.le.s32.totalorder 2, %s10
    // Predicated region
    $region41: #{_forward_impl.11} parent=5 // pred_check
      %p965 = pneg %p964
    $region42: #{_forward_impl.11} parent=5 // pred_check_branch
      %967 = sbr.rel (%p965) target = $region44
    $region43: #{_forward_impl.11} parent=5 // pred_region
      %s968 = ssub.s32 %s10, 2
      // Predicated region
      $region45: #{_forward_impl.11} parent=43 // pred_check
        %p969 = pneg %p151
      $region46: #{_forward_impl.11} parent=43 // pred_check_branch
        %971 = sbr.rel (%p969) target = $region48
      $region47: #{_forward_impl.11} parent=43 // pred_region
        %s972 = smul.u32 8, %s22
        %p973 = scmp.lt.s32.totalorder %s21, 1
        %s974 = scalar_select %p973, %s21, 1
        %p975 = scmp.lt.s32.totalorder %s972, 7
        %s976 = scalar_select %p975, %s972, 7
        %s977 = smul.addr %s974, 8
        %s978 = sadd.s32 %s976, %s977
        %s979 = smul.addr %s978, 4
        %s980 = scalar_lea.vmem %s4, %s979
      $region48: #{_forward_impl.11} parent=43 // pred_fallthru
        _
    $region44: #{_forward_impl.11} parent=5 // pred_fallthru
      _
  $region6: #{_forward_impl.11} parent=0 // loop_footer
    %s14 = sadd.s32 1, %s10
  $region7: #{_forward_impl.11} parent=0 // loop_footer_branch
    %9 = sbr.rel target = $region3
  $region8: #{_forward_impl.11} parent=0 // loop_exit
    _

</llo_original>
